<compile_context>
chip_gen: v7x
topology: tpu7x:2x2x1
jax: 0.10.0
libtpu: 0.0.40
codegen_flags: <defaults>
</compile_context>

<pallas_src>
import functools
import math

import jax
import jax.numpy as jnp
from jax import lax
from jax.experimental import pallas as pl
from jax.experimental.pallas import tpu as pltpu


def _round_up(n, m):
    return ((n + m - 1) // m) * m


# -----------------------------------------------------------------------------
# Fused kernel: one batch chunk (bpc=8 rows) through all GRU layers + FC head.
# Gate order follows PyTorch: (r, z, n), concatenated along the lane axis.
# -----------------------------------------------------------------------------
def _fused_kernel(*refs, num_layers, seq_len, bpc, hidden):
    # refs layout:
    #   inputs : x_ref, (w_ih, w_hh, b_i, b_hn) * num_layers, fc_w, fc_b
    #   outputs: out_ref
    #   scratch: gi_s (T*bpc, 3H) f32, hseq_s (T*bpc, H) f32
    n_in = 1 + 4 * num_layers + 2
    x_ref = refs[0]
    layer_refs = refs[1:1 + 4 * num_layers]
    fcw_ref = refs[n_in - 2]
    fcb_ref = refs[n_in - 1]
    out_ref = refs[n_in]
    gi_s, hseq_s = refs[n_in + 1:]

    H = hidden
    unroll = True if seq_len <= 32 else 8

    seq = x_ref[...]                                   # (T*bpc, F) bf16
    for layer in range(num_layers):
        wih_ref, whh_ref, bi_ref, bhn_ref = layer_refs[4 * layer: 4 * layer + 4]

        # Hoisted input projection: ONE full-sequence matmul for all 3 gates.
        # (r/z hidden biases are pre-folded into bi_ref in the wrapper.)
        gi_s[...] = (jnp.dot(seq, wih_ref[...],
                             preferred_element_type=jnp.float32)
                     + bi_ref[...])

        # Recurrent weight / bias loaded & broadcast once per layer (hoisted).
        w_hh = whh_ref[...]                                        # (H, 3H) bf16
        b_hn = jnp.broadcast_to(bhn_ref[...], (bpc, H))            # (bpc, H) f32

        def step(t, h):
            off = pl.multiple_of(t * bpc, bpc)                     # 8-aligned rows
            gi = gi_s[pl.ds(off, bpc), :]                          # (bpc, 3H) f32
            # ONE recurrent matmul for all 3 gates (bf16 operands, f32 acc).
            hh = jnp.dot(h.astype(jnp.bfloat16), w_hh,
                         preferred_element_type=jnp.float32)       # (bpc, 3H) f32
            rz = jax.nn.sigmoid(gi[:, :2 * H] + hh[:, :2 * H])     # r|z in one op
            r = rz[:, :H]
            z = rz[:, H:]
            n = jnp.tanh(gi[:, 2 * H:] + r * (hh[:, 2 * H:] + b_hn))
            h_new = n + z * (h - n)                                # == (1-z)*n + z*h
            hseq_s[pl.ds(off, bpc), :] = h_new
            return h_new

        lax.fori_loop(0, seq_len, step,
                      jnp.zeros((bpc, H), jnp.float32), unroll=unroll)
        seq = hseq_s[...].astype(jnp.bfloat16)                     # (T*bpc, H)

    # Linear head on every (time, batch) row; single lane-dense (128-wide) store.
    out_ref[...] = (jnp.dot(seq, fcw_ref[...],
                            preferred_element_type=jnp.float32)
                    + fcb_ref[...]).astype(out_ref.dtype)


# -----------------------------------------------------------------------------
# Parameter init (PyTorch layout) and packing into the kernel layout.
# -----------------------------------------------------------------------------
def init_params(key, input_size, hidden_size, num_layers, num_classes):
    """PyTorch-style uniform(-1/sqrt(hidden), +1/sqrt(hidden)); PyTorch layout."""
    k = 1.0 / math.sqrt(hidden_size)
    params = {"gru": [], "fc": None}
    for layer in range(num_layers):
        in_f = input_size if layer == 0 else hidden_size
        key, k1, k2, k3, k4 = jax.random.split(key, 5)
        w_ih = jax.random.uniform(k1, (3 * hidden_size, in_f), jnp.float32, -k, k)
        w_hh = jax.random.uniform(k2, (3 * hidden_size, hidden_size), jnp.float32, -k, k)
        b_ih = jax.random.uniform(k3, (3 * hidden_size,), jnp.float32, -k, k)
        b_hh = jax.random.uniform(k4, (3 * hidden_size,), jnp.float32, -k, k)
        params["gru"].append((w_ih, w_hh, b_ih, b_hh))
    key, k1, k2 = jax.random.split(key, 3)
    fc_w = jax.random.uniform(k1, (num_classes, hidden_size), jnp.float32, -k, k)
    fc_b = jax.random.uniform(k2, (num_classes,), jnp.float32, -k, k)
    params["fc"] = (fc_w, fc_b)
    return params


def pack_params(params, hidden_size, num_classes):
    """PyTorch-layout params -> kernel layout:
      * GRU weights transposed + gate-concatenated: (in_f, 3H) and (H, 3H), bf16.
      * r/z hidden biases folded into one (1, 3H) input-projection bias (f32).
      * FC head transposed and zero-padded to a lane-dense 128-wide output."""
    H = hidden_size
    cpad = _round_up(max(num_classes, 1), 128)
    packed = {"gru": [], "fc": None, "num_classes": num_classes}
    for (w_ih, w_hh, b_ih, b_hh) in params["gru"]:
        wih = jnp.transpose(w_ih).astype(jnp.bfloat16)          # (in_f, 3H)  [r|z|n]
        whh = jnp.transpose(w_hh).astype(jnp.bfloat16)          # (H, 3H)     [r|z|n]
        b_i = jnp.concatenate([
            b_ih[:2 * H] + b_hh[:2 * H],                        # r,z: fold b_hr/b_hz
            b_ih[2 * H:3 * H],                                  # n: input bias only
        ]).reshape(1, 3 * H).astype(jnp.float32)                # (1, 3H)
        b_hn = b_hh[2 * H:3 * H].reshape(1, H).astype(jnp.float32)   # (1, H)
        packed["gru"].append((wih, whh, b_i, b_hn))
    fc_w, fc_b = params["fc"]
    fcw = jnp.zeros((H, cpad), jnp.bfloat16).at[:, :num_classes].set(
        fc_w.T.astype(jnp.bfloat16))                            # (H, 128*)
    fcb = jnp.zeros((1, cpad), jnp.float32).at[:, :num_classes].set(
        fc_b.reshape(1, -1).astype(jnp.float32))                # (1, 128*)
    packed["fc"] = (fcw, fcb)
    return packed


# -----------------------------------------------------------------------------
# Full forward pass (eval mode).
# -----------------------------------------------------------------------------
def sequence_predictor_forward(packed_params, x_nchw):
    gru_layers = packed_params["gru"]
    fc_w, fc_b = packed_params["fc"]
    num_classes = packed_params["num_classes"]
    num_layers = len(gru_layers)
    hidden = gru_layers[0][1].shape[0]        # whh is (H, 3H)
    cpad = fc_w.shape[1]

    # _prepare_features_: (B, 1, H, W) -> squeeze(1) -> permute(2, 0, 1) -> (T=W, B, F=H)
    B, C, Himg, Wimg = x_nchw.shape
    assert C == 1
    T, F = Wimg, Himg
    x = jnp.transpose(jnp.squeeze(x_nchw, axis=1), (2, 0, 1))    # (T, B, F)

    # Batch is padded to a multiple of 8 and split into 8-row chunks; the grid
    # iterates chunks ("parallel" -> both TensorCores on v7x for large batches).
    BPC = 8
    NC = -(-B // BPC)
    BP = NC * BPC
    x = jnp.pad(x, ((0, 0), (0, BP - B), (0, 0)))                # (T, BP, F)
    # Chunk-major row layout: row index = ((c*T) + t)*8 + j  -> (NC*T*8, F)
    x2d = (x.reshape(T, NC, BPC, F)
             .transpose(1, 0, 2, 3)
             .reshape(NC * T * BPC, F)
             .astype(jnp.bfloat16))

    inputs = [x2d]
    in_specs = [pl.BlockSpec((T * BPC, F), lambda c: (c, 0))]
    for (wih, whh, bi, bhn) in gru_layers:
        inputs += [wih, whh, bi, bhn]
        in_specs += [
            pl.BlockSpec(wih.shape, lambda c: (0, 0)),
            pl.BlockSpec(whh.shape, lambda c: (0, 0)),
            pl.BlockSpec(bi.shape, lambda c: (0, 0)),
            pl.BlockSpec(bhn.shape, lambda c: (0, 0)),
        ]
    inputs += [fc_w, fc_b]
    in_specs += [pl.BlockSpec(fc_w.shape, lambda c: (0, 0)),
                 pl.BlockSpec(fc_b.shape, lambda c: (0, 0))]

    kernel = functools.partial(_fused_kernel, num_layers=num_layers,
                               seq_len=T, bpc=BPC, hidden=hidden)

    out2d = pl.pallas_call(
        kernel,
        grid=(NC,),
        out_shape=jax.ShapeDtypeStruct((NC * T * BPC, cpad), jnp.float32),
        in_specs=in_specs,
        out_specs=pl.BlockSpec((T * BPC, cpad), lambda c: (c, 0)),
        scratch_shapes=[
            pltpu.VMEM((T * BPC, 3 * hidden), jnp.float32),   # fused gate projection
            pltpu.VMEM((T * BPC, hidden), jnp.float32),       # layer output sequence
        ],
        compiler_params=pltpu.CompilerParams(
            dimension_semantics=("parallel",),
            vmem_limit_bytes=64 * 1024 * 1024,
        ),
    )(*inputs)

    # (NC*T*8, 128) -> (T, BP, 128) -> drop batch / class padding -> (T, B, C)
    out = (out2d.reshape(NC, T, BPC, cpad)
                 .transpose(1, 0, 2, 3)
                 .reshape(T, BP, cpad))
    return out[:, :B, :num_classes]


if __name__ == "__main__":
    # Shapes implied by the module: x is (B, 1, H, W); input_size = H, seq_len = W.
    B, Himg, Wimg = 2, 16, 16
    input_size = Himg
    hidden_size = 32
    num_layers = 2
    num_classes = 8

    key = jax.random.PRNGKey(0)
    key, kx, kp = jax.random.split(key, 3)
    x = jax.random.normal(kx, (B, 1, Himg, Wimg), dtype=jnp.float32)

    params = init_params(kp, input_size, hidden_size, num_layers, num_classes)
    packed = pack_params(params, hidden_size, num_classes)

    out = sequence_predictor_forward(packed, x)
    jax.block_until_ready(out)
    assert out.shape == (Wimg, B, num_classes), out.shape
    print("KERNEL_OK")
</pallas_src>

<mosaic_0001>
module attributes {stable_mosaic.version = 11 : i64} {
  func.func @_fused_kernel(%arg0: i32, %arg1: memref<128x16xbf16, #tpu.memory_space<vmem>>, %arg2: memref<16x96xbf16, #tpu.memory_space<vmem>>, %arg3: memref<32x96xbf16, #tpu.memory_space<vmem>>, %arg4: memref<1x96xf32, #tpu.memory_space<vmem>>, %arg5: memref<1x32xf32, #tpu.memory_space<vmem>>, %arg6: memref<32x96xbf16, #tpu.memory_space<vmem>>, %arg7: memref<32x96xbf16, #tpu.memory_space<vmem>>, %arg8: memref<1x96xf32, #tpu.memory_space<vmem>>, %arg9: memref<1x32xf32, #tpu.memory_space<vmem>>, %arg10: memref<32x128xbf16, #tpu.memory_space<vmem>>, %arg11: memref<1x128xf32, #tpu.memory_space<vmem>>, %arg12: memref<128x128xf32, #tpu.memory_space<vmem>>, %arg13: memref<128x96xf32, #tpu.memory_space<vmem>>, %arg14: memref<128x32xf32, #tpu.memory_space<vmem>>) attributes {dimension_semantics = [#tpu.dimension_semantics<parallel>], iteration_bounds = array<i64: 1>, scalar_prefetch = 0 : i64, scratch_operands = 2 : i64, tpu.core_type = #tpu.core_type<tc>, window_params = [{transform_indices = @transform_0, window_bounds = array<i64: 128, 16>}, {pipeline_mode = #tpu.pipeline_mode<synchronous>, transform_indices = @transform_1, window_bounds = array<i64: 16, 96>}, {pipeline_mode = #tpu.pipeline_mode<synchronous>, transform_indices = @transform_2, window_bounds = array<i64: 32, 96>}, {pipeline_mode = #tpu.pipeline_mode<synchronous>, transform_indices = @transform_3, window_bounds = array<i64: 1, 96>}, {pipeline_mode = #tpu.pipeline_mode<synchronous>, transform_indices = @transform_4, window_bounds = array<i64: 1, 32>}, {pipeline_mode = #tpu.pipeline_mode<synchronous>, transform_indices = @transform_5, window_bounds = array<i64: 32, 96>}, {pipeline_mode = #tpu.pipeline_mode<synchronous>, transform_indices = @transform_6, window_bounds = array<i64: 32, 96>}, {pipeline_mode = #tpu.pipeline_mode<synchronous>, transform_indices = @transform_7, window_bounds = array<i64: 1, 96>}, {pipeline_mode = #tpu.pipeline_mode<synchronous>, transform_indices = @transform_8, window_bounds = array<i64: 1, 32>}, {pipeline_mode = #tpu.pipeline_mode<synchronous>, transform_indices = @transform_9, window_bounds = array<i64: 32, 128>}, {pipeline_mode = #tpu.pipeline_mode<synchronous>, transform_indices = @transform_10, window_bounds = array<i64: 1, 128>}, {transform_indices = @transform_11, window_bounds = array<i64: 128, 128>}]} {
    %c0 = arith.constant 0 : index
    %c0_0 = arith.constant 0 : index
    %0 = vector.load %arg1[%c0, %c0_0] : memref<128x16xbf16, #tpu.memory_space<vmem>>, vector<128x16xbf16>
    %c0_1 = arith.constant 0 : index
    %c0_2 = arith.constant 0 : index
    %1 = vector.load %arg2[%c0_1, %c0_2] : memref<16x96xbf16, #tpu.memory_space<vmem>>, vector<16x96xbf16>
    %cst = arith.constant dense<0.000000e+00> : vector<128x96xf32>
    %2 = tpu.matmul %0, %1, %cst {dimension_numbers = #tpu.dot_dimension_numbers<[1], [0], [0], [1], [0, 0, 1, 1], [], []>} : vector<128x16xbf16>, vector<16x96xbf16>, vector<128x96xf32> -> vector<128x96xf32>
    %c0_3 = arith.constant 0 : index
    %c0_4 = arith.constant 0 : index
    %3 = vector.load %arg4[%c0_3, %c0_4] : memref<1x96xf32, #tpu.memory_space<vmem>>, vector<1x96xf32>
    %4 = vector.broadcast %3 : vector<1x96xf32> to vector<128x96xf32>
    %5 = arith.addf %2, %4 : vector<128x96xf32>
    %c0_5 = arith.constant 0 : index
    %c0_6 = arith.constant 0 : index
    %6 = vector.load %arg13[%c0_5, %c0_6] : memref<128x96xf32, #tpu.memory_space<vmem>>, vector<128x96xf32>
    tpu.vector_store %arg13[%c0_5, %c0_6], %5 {strides = array<i32>} : memref<128x96xf32, #tpu.memory_space<vmem>>, vector<128x96xf32>,
    %c0_7 = arith.constant 0 : index
    %c0_8 = arith.constant 0 : index
    %7 = vector.load %arg3[%c0_7, %c0_8] : memref<32x96xbf16, #tpu.memory_space<vmem>>, vector<32x96xbf16>
    %c0_9 = arith.constant 0 : index
    %c0_10 = arith.constant 0 : index
    %8 = vector.load %arg5[%c0_9, %c0_10] : memref<1x32xf32, #tpu.memory_space<vmem>>, vector<1x32xf32>
    %9 = vector.shape_cast %8 : vector<1x32xf32> to vector<1x32xf32>
    %10 = vector.broadcast %9 : vector<1x32xf32> to vector<8x32xf32>
    %cst_11 = arith.constant 0.000000e+00 : f32
    %11 = vector.broadcast %cst_11 : f32 to vector<8x32xf32>
    %c0_i32 = arith.constant 0 : i32
    %c8_i32 = arith.constant 8 : i32
    %12 = arith.muli %c0_i32, %c8_i32 : i32
    %13 = tpu.assume_multiple %12, 8 : i32
    %14 = arith.index_cast %13 : i32 to index
    %c0_12 = arith.constant 0 : index
    %15 = vector.load %arg13[%14, %c0_12] : memref<128x96xf32, #tpu.memory_space<vmem>>, vector<8x96xf32>
    %16 = arith.truncf %11 : vector<8x32xf32> to vector<8x32xbf16>
    %cst_13 = arith.constant dense<0.000000e+00> : vector<8x96xf32>
    %17 = tpu.matmul %16, %7, %cst_13 {dimension_numbers = #tpu.dot_dimension_numbers<[1], [0], [0], [1], [0, 0, 1, 1], [], []>} : vector<8x32xbf16>, vector<32x96xbf16>, vector<8x96xf32> -> vector<8x96xf32>
    %18 = vector.extract_strided_slice %15 {offsets = [0, 0], sizes = [8, 64], strides = [1, 1]} : vector<8x96xf32> to vector<8x64xf32>
    %19 = vector.extract_strided_slice %17 {offsets = [0, 0], sizes = [8, 64], strides = [1, 1]} : vector<8x96xf32> to vector<8x64xf32>
    %20 = arith.addf %18, %19 : vector<8x64xf32>
    %21 = arith.negf %20 : vector<8x64xf32>
    %22 = math.exp %21 : vector<8x64xf32>
    %cst_14 = arith.constant 1.000000e+00 : f32
    %23 = vector.broadcast %cst_14 : f32 to vector<8x64xf32>
    %24 = arith.addf %23, %22 : vector<8x64xf32>
    %25 = arith.divf %23, %24 : vector<8x64xf32>
    %26 = vector.extract_strided_slice %25 {offsets = [0, 0], sizes = [8, 32], strides = [1, 1]} : vector<8x64xf32> to vector<8x32xf32>
    %27 = vector.extract_strided_slice %25 {offsets = [0, 32], sizes = [8, 32], strides = [1, 1]} : vector<8x64xf32> to vector<8x32xf32>
    %28 = vector.extract_strided_slice %15 {offsets = [0, 64], sizes = [8, 32], strides = [1, 1]} : vector<8x96xf32> to vector<8x32xf32>
    %29 = vector.extract_strided_slice %17 {offsets = [0, 64], sizes = [8, 32], strides = [1, 1]} : vector<8x96xf32> to vector<8x32xf32>
    %30 = arith.addf %29, %10 : vector<8x32xf32>
    %31 = arith.mulf %26, %30 : vector<8x32xf32>
    %32 = arith.addf %28, %31 : vector<8x32xf32>
    %33 = math.tanh %32 : vector<8x32xf32>
    %34 = arith.subf %11, %33 : vector<8x32xf32>
    %35 = arith.mulf %27, %34 : vector<8x32xf32>
    %36 = arith.addf %33, %35 : vector<8x32xf32>
    %37 = arith.index_cast %13 : i32 to index
    %c0_15 = arith.constant 0 : index
    %38 = vector.load %arg14[%37, %c0_15] : memref<128x32xf32, #tpu.memory_space<vmem>>, vector<8x32xf32>
    tpu.vector_store %arg14[%37, %c0_15], %36 {strides = array<i32>} : memref<128x32xf32, #tpu.memory_space<vmem>>, vector<8x32xf32>,
    %c1_i32 = arith.constant 1 : i32
    %c8_i32_16 = arith.constant 8 : i32
    %39 = arith.muli %c1_i32, %c8_i32_16 : i32
    %40 = tpu.assume_multiple %39, 8 : i32
    %41 = arith.index_cast %40 : i32 to index
    %c0_17 = arith.constant 0 : index
    %42 = vector.load %arg13[%41, %c0_17] : memref<128x96xf32, #tpu.memory_space<vmem>>, vector<8x96xf32>
    %43 = arith.truncf %36 : vector<8x32xf32> to vector<8x32xbf16>
    %cst_18 = arith.constant dense<0.000000e+00> : vector<8x96xf32>
    %44 = tpu.matmul %43, %7, %cst_18 {dimension_numbers = #tpu.dot_dimension_numbers<[1], [0], [0], [1], [0, 0, 1, 1], [], []>} : vector<8x32xbf16>, vector<32x96xbf16>, vector<8x96xf32> -> vector<8x96xf32>
    %45 = vector.extract_strided_slice %42 {offsets = [0, 0], sizes = [8, 64], strides = [1, 1]} : vector<8x96xf32> to vector<8x64xf32>
    %46 = vector.extract_strided_slice %44 {offsets = [0, 0], sizes = [8, 64], strides = [1, 1]} : vector<8x96xf32> to vector<8x64xf32>
    %47 = arith.addf %45, %46 : vector<8x64xf32>
    %48 = arith.negf %47 : vector<8x64xf32>
    %49 = math.exp %48 : vector<8x64xf32>
    %cst_19 = arith.constant 1.000000e+00 : f32
    %50 = vector.broadcast %cst_19 : f32 to vector<8x64xf32>
    %51 = arith.addf %50, %49 : vector<8x64xf32>
    %52 = arith.divf %50, %51 : vector<8x64xf32>
    %53 = vector.extract_strided_slice %52 {offsets = [0, 0], sizes = [8, 32], strides = [1, 1]} : vector<8x64xf32> to vector<8x32xf32>
    %54 = vector.extract_strided_slice %52 {offsets = [0, 32], sizes = [8, 32], strides = [1, 1]} : vector<8x64xf32> to vector<8x32xf32>
    %55 = vector.extract_strided_slice %42 {offsets = [0, 64], sizes = [8, 32], strides = [1, 1]} : vector<8x96xf32> to vector<8x32xf32>
    %56 = vector.extract_strided_slice %44 {offsets = [0, 64], sizes = [8, 32], strides = [1, 1]} : vector<8x96xf32> to vector<8x32xf32>
    %57 = arith.addf %56, %10 : vector<8x32xf32>
    %58 = arith.mulf %53, %57 : vector<8x32xf32>
    %59 = arith.addf %55, %58 : vector<8x32xf32>
    %60 = math.tanh %59 : vector<8x32xf32>
    %61 = arith.subf %36, %60 : vector<8x32xf32>
    %62 = arith.mulf %54, %61 : vector<8x32xf32>
    %63 = arith.addf %60, %62 : vector<8x32xf32>
    %64 = arith.index_cast %40 : i32 to index
    %c0_20 = arith.constant 0 : index
    %65 = vector.load %arg14[%64, %c0_20] : memref<128x32xf32, #tpu.memory_space<vmem>>, vector<8x32xf32>
    tpu.vector_store %arg14[%64, %c0_20], %63 {strides = array<i32>} : memref<128x32xf32, #tpu.memory_space<vmem>>, vector<8x32xf32>,
    %c2_i32 = arith.constant 2 : i32
    %c8_i32_21 = arith.constant 8 : i32
    %66 = arith.muli %c2_i32, %c8_i32_21 : i32
    %67 = tpu.assume_multiple %66, 8 : i32
    %68 = arith.index_cast %67 : i32 to index
    %c0_22 = arith.constant 0 : index
    %69 = vector.load %arg13[%68, %c0_22] : memref<128x96xf32, #tpu.memory_space<vmem>>, vector<8x96xf32>
    %70 = arith.truncf %63 : vector<8x32xf32> to vector<8x32xbf16>
    %cst_23 = arith.constant dense<0.000000e+00> : vector<8x96xf32>
    %71 = tpu.matmul %70, %7, %cst_23 {dimension_numbers = #tpu.dot_dimension_numbers<[1], [0], [0], [1], [0, 0, 1, 1], [], []>} : vector<8x32xbf16>, vector<32x96xbf16>, vector<8x96xf32> -> vector<8x96xf32>
    %72 = vector.extract_strided_slice %69 {offsets = [0, 0], sizes = [8, 64], strides = [1, 1]} : vector<8x96xf32> to vector<8x64xf32>
    %73 = vector.extract_strided_slice %71 {offsets = [0, 0], sizes = [8, 64], strides = [1, 1]} : vector<8x96xf32> to vector<8x64xf32>
    %74 = arith.addf %72, %73 : vector<8x64xf32>
    %75 = arith.negf %74 : vector<8x64xf32>
    %76 = math.exp %75 : vector<8x64xf32>
    %cst_24 = arith.constant 1.000000e+00 : f32
    %77 = vector.broadcast %cst_24 : f32 to vector<8x64xf32>
    %78 = arith.addf %77, %76 : vector<8x64xf32>
    %79 = arith.divf %77, %78 : vector<8x64xf32>
    %80 = vector.extract_strided_slice %79 {offsets = [0, 0], sizes = [8, 32], strides = [1, 1]} : vector<8x64xf32> to vector<8x32xf32>
    %81 = vector.extract_strided_slice %79 {offsets = [0, 32], sizes = [8, 32], strides = [1, 1]} : vector<8x64xf32> to vector<8x32xf32>
    %82 = vector.extract_strided_slice %69 {offsets = [0, 64], sizes = [8, 32], strides = [1, 1]} : vector<8x96xf32> to vector<8x32xf32>
    %83 = vector.extract_strided_slice %71 {offsets = [0, 64], sizes = [8, 32], strides = [1, 1]} : vector<8x96xf32> to vector<8x32xf32>
    %84 = arith.addf %83, %10 : vector<8x32xf32>
    %85 = arith.mulf %80, %84 : vector<8x32xf32>
    %86 = arith.addf %82, %85 : vector<8x32xf32>
    %87 = math.tanh %86 : vector<8x32xf32>
    %88 = arith.subf %63, %87 : vector<8x32xf32>
    %89 = arith.mulf %81, %88 : vector<8x32xf32>
    %90 = arith.addf %87, %89 : vector<8x32xf32>
    %91 = arith.index_cast %67 : i32 to index
    %c0_25 = arith.constant 0 : index
    %92 = vector.load %arg14[%91, %c0_25] : memref<128x32xf32, #tpu.memory_space<vmem>>, vector<8x32xf32>
    tpu.vector_store %arg14[%91, %c0_25], %90 {strides = array<i32>} : memref<128x32xf32, #tpu.memory_space<vmem>>, vector<8x32xf32>,
    %c3_i32 = arith.constant 3 : i32
    %c8_i32_26 = arith.constant 8 : i32
    %93 = arith.muli %c3_i32, %c8_i32_26 : i32
    %94 = tpu.assume_multiple %93, 8 : i32
    %95 = arith.index_cast %94 : i32 to index
    %c0_27 = arith.constant 0 : index
    %96 = vector.load %arg13[%95, %c0_27] : memref<128x96xf32, #tpu.memory_space<vmem>>, vector<8x96xf32>
    %97 = arith.truncf %90 : vector<8x32xf32> to vector<8x32xbf16>
    %cst_28 = arith.constant dense<0.000000e+00> : vector<8x96xf32>
    %98 = tpu.matmul %97, %7, %cst_28 {dimension_numbers = #tpu.dot_dimension_numbers<[1], [0], [0], [1], [0, 0, 1, 1], [], []>} : vector<8x32xbf16>, vector<32x96xbf16>, vector<8x96xf32> -> vector<8x96xf32>
    %99 = vector.extract_strided_slice %96 {offsets = [0, 0], sizes = [8, 64], strides = [1, 1]} : vector<8x96xf32> to vector<8x64xf32>
    %100 = vector.extract_strided_slice %98 {offsets = [0, 0], sizes = [8, 64], strides = [1, 1]} : vector<8x96xf32> to vector<8x64xf32>
    %101 = arith.addf %99, %100 : vector<8x64xf32>
    %102 = arith.negf %101 : vector<8x64xf32>
    %103 = math.exp %102 : vector<8x64xf32>
    %cst_29 = arith.constant 1.000000e+00 : f32
    %104 = vector.broadcast %cst_29 : f32 to vector<8x64xf32>
    %105 = arith.addf %104, %103 : vector<8x64xf32>
    %106 = arith.divf %104, %105 : vector<8x64xf32>
    %107 = vector.extract_strided_slice %106 {offsets = [0, 0], sizes = [8, 32], strides = [1, 1]} : vector<8x64xf32> to vector<8x32xf32>
    %108 = vector.extract_strided_slice %106 {offsets = [0, 32], sizes = [8, 32], strides = [1, 1]} : vector<8x64xf32> to vector<8x32xf32>
    %109 = vector.extract_strided_slice %96 {offsets = [0, 64], sizes = [8, 32], strides = [1, 1]} : vector<8x96xf32> to vector<8x32xf32>
    %110 = vector.extract_strided_slice %98 {offsets = [0, 64], sizes = [8, 32], strides = [1, 1]} : vector<8x96xf32> to vector<8x32xf32>
    %111 = arith.addf %110, %10 : vector<8x32xf32>
    %112 = arith.mulf %107, %111 : vector<8x32xf32>
    %113 = arith.addf %109, %112 : vector<8x32xf32>
    %114 = math.tanh %113 : vector<8x32xf32>
    %115 = arith.subf %90, %114 : vector<8x32xf32>
    %116 = arith.mulf %108, %115 : vector<8x32xf32>
    %117 = arith.addf %114, %116 : vector<8x32xf32>
    %118 = arith.index_cast %94 : i32 to index
    %c0_30 = arith.constant 0 : index
    %119 = vector.load %arg14[%118, %c0_30] : memref<128x32xf32, #tpu.memory_space<vmem>>, vector<8x32xf32>
    tpu.vector_store %arg14[%118, %c0_30], %117 {strides = array<i32>} : memref<128x32xf32, #tpu.memory_space<vmem>>, vector<8x32xf32>,
    %c4_i32 = arith.constant 4 : i32
    %c8_i32_31 = arith.constant 8 : i32
    %120 = arith.muli %c4_i32, %c8_i32_31 : i32
    %121 = tpu.assume_multiple %120, 8 : i32
    %122 = arith.index_cast %121 : i32 to index
    %c0_32 = arith.constant 0 : index
    %123 = vector.load %arg13[%122, %c0_32] : memref<128x96xf32, #tpu.memory_space<vmem>>, vector<8x96xf32>
    %124 = arith.truncf %117 : vector<8x32xf32> to vector<8x32xbf16>
    %cst_33 = arith.constant dense<0.000000e+00> : vector<8x96xf32>
    %125 = tpu.matmul %124, %7, %cst_33 {dimension_numbers = #tpu.dot_dimension_numbers<[1], [0], [0], [1], [0, 0, 1, 1], [], []>} : vector<8x32xbf16>, vector<32x96xbf16>, vector<8x96xf32> -> vector<8x96xf32>
    %126 = vector.extract_strided_slice %123 {offsets = [0, 0], sizes = [8, 64], strides = [1, 1]} : vector<8x96xf32> to vector<8x64xf32>
    %127 = vector.extract_strided_slice %125 {offsets = [0, 0], sizes = [8, 64], strides = [1, 1]} : vector<8x96xf32> to vector<8x64xf32>
    %128 = arith.addf %126, %127 : vector<8x64xf32>
    %129 = arith.negf %128 : vector<8x64xf32>
    %130 = math.exp %129 : vector<8x64xf32>
    %cst_34 = arith.constant 1.000000e+00 : f32
    %131 = vector.broadcast %cst_34 : f32 to vector<8x64xf32>
    %132 = arith.addf %131, %130 : vector<8x64xf32>
    %133 = arith.divf %131, %132 : vector<8x64xf32>
    %134 = vector.extract_strided_slice %133 {offsets = [0, 0], sizes = [8, 32], strides = [1, 1]} : vector<8x64xf32> to vector<8x32xf32>
    %135 = vector.extract_strided_slice %133 {offsets = [0, 32], sizes = [8, 32], strides = [1, 1]} : vector<8x64xf32> to vector<8x32xf32>
    %136 = vector.extract_strided_slice %123 {offsets = [0, 64], sizes = [8, 32], strides = [1, 1]} : vector<8x96xf32> to vector<8x32xf32>
    %137 = vector.extract_strided_slice %125 {offsets = [0, 64], sizes = [8, 32], strides = [1, 1]} : vector<8x96xf32> to vector<8x32xf32>
    %138 = arith.addf %137, %10 : vector<8x32xf32>
    %139 = arith.mulf %134, %138 : vector<8x32xf32>
    %140 = arith.addf %136, %139 : vector<8x32xf32>
    %141 = math.tanh %140 : vector<8x32xf32>
    %142 = arith.subf %117, %141 : vector<8x32xf32>
    %143 = arith.mulf %135, %142 : vector<8x32xf32>
    %144 = arith.addf %141, %143 : vector<8x32xf32>
    %145 = arith.index_cast %121 : i32 to index
    %c0_35 = arith.constant 0 : index
    %146 = vector.load %arg14[%145, %c0_35] : memref<128x32xf32, #tpu.memory_space<vmem>>, vector<8x32xf32>
    tpu.vector_store %arg14[%145, %c0_35], %144 {strides = array<i32>} : memref<128x32xf32, #tpu.memory_space<vmem>>, vector<8x32xf32>,
    %c5_i32 = arith.constant 5 : i32
    %c8_i32_36 = arith.constant 8 : i32
    %147 = arith.muli %c5_i32, %c8_i32_36 : i32
    %148 = tpu.assume_multiple %147, 8 : i32
    %149 = arith.index_cast %148 : i32 to index
    %c0_37 = arith.constant 0 : index
    %150 = vector.load %arg13[%149, %c0_37] : memref<128x96xf32, #tpu.memory_space<vmem>>, vector<8x96xf32>
    %151 = arith.truncf %144 : vector<8x32xf32> to vector<8x32xbf16>
    %cst_38 = arith.constant dense<0.000000e+00> : vector<8x96xf32>
    %152 = tpu.matmul %151, %7, %cst_38 {dimension_numbers = #tpu.dot_dimension_numbers<[1], [0], [0], [1], [0, 0, 1, 1], [], []>} : vector<8x32xbf16>, vector<32x96xbf16>, vector<8x96xf32> -> vector<8x96xf32>
    %153 = vector.extract_strided_slice %150 {offsets = [0, 0], sizes = [8, 64], strides = [1, 1]} : vector<8x96xf32> to vector<8x64xf32>
    %154 = vector.extract_strided_slice %152 {offsets = [0, 0], sizes = [8, 64], strides = [1, 1]} : vector<8x96xf32> to vector<8x64xf32>
    %155 = arith.addf %153, %154 : vector<8x64xf32>
    %156 = arith.negf %155 : vector<8x64xf32>
    %157 = math.exp %156 : vector<8x64xf32>
    %cst_39 = arith.constant 1.000000e+00 : f32
    %158 = vector.broadcast %cst_39 : f32 to vector<8x64xf32>
    %159 = arith.addf %158, %157 : vector<8x64xf32>
    %160 = arith.divf %158, %159 : vector<8x64xf32>
    %161 = vector.extract_strided_slice %160 {offsets = [0, 0], sizes = [8, 32], strides = [1, 1]} : vector<8x64xf32> to vector<8x32xf32>
    %162 = vector.extract_strided_slice %160 {offsets = [0, 32], sizes = [8, 32], strides = [1, 1]} : vector<8x64xf32> to vector<8x32xf32>
    %163 = vector.extract_strided_slice %150 {offsets = [0, 64], sizes = [8, 32], strides = [1, 1]} : vector<8x96xf32> to vector<8x32xf32>
    %164 = vector.extract_strided_slice %152 {offsets = [0, 64], sizes = [8, 32], strides = [1, 1]} : vector<8x96xf32> to vector<8x32xf32>
    %165 = arith.addf %164, %10 : vector<8x32xf32>
    %166 = arith.mulf %161, %165 : vector<8x32xf32>
    %167 = arith.addf %163, %166 : vector<8x32xf32>
    %168 = math.tanh %167 : vector<8x32xf32>
    %169 = arith.subf %144, %168 : vector<8x32xf32>
    %170 = arith.mulf %162, %169 : vector<8x32xf32>
    %171 = arith.addf %168, %170 : vector<8x32xf32>
    %172 = arith.index_cast %148 : i32 to index
    %c0_40 = arith.constant 0 : index
    %173 = vector.load %arg14[%172, %c0_40] : memref<128x32xf32, #tpu.memory_space<vmem>>, vector<8x32xf32>
    tpu.vector_store %arg14[%172, %c0_40], %171 {strides = array<i32>} : memref<128x32xf32, #tpu.memory_space<vmem>>, vector<8x32xf32>,
    %c6_i32 = arith.constant 6 : i32
    %c8_i32_41 = arith.constant 8 : i32
    %174 = arith.muli %c6_i32, %c8_i32_41 : i32
    %175 = tpu.assume_multiple %174, 8 : i32
    %176 = arith.index_cast %175 : i32 to index
    %c0_42 = arith.constant 0 : index
    %177 = vector.load %arg13[%176, %c0_42] : memref<128x96xf32, #tpu.memory_space<vmem>>, vector<8x96xf32>
    %178 = arith.truncf %171 : vector<8x32xf32> to vector<8x32xbf16>
    %cst_43 = arith.constant dense<0.000000e+00> : vector<8x96xf32>
    %179 = tpu.matmul %178, %7, %cst_43 {dimension_numbers = #tpu.dot_dimension_numbers<[1], [0], [0], [1], [0, 0, 1, 1], [], []>} : vector<8x32xbf16>, vector<32x96xbf16>, vector<8x96xf32> -> vector<8x96xf32>
    %180 = vector.extract_strided_slice %177 {offsets = [0, 0], sizes = [8, 64], strides = [1, 1]} : vector<8x96xf32> to vector<8x64xf32>
    %181 = vector.extract_strided_slice %179 {offsets = [0, 0], sizes = [8, 64], strides = [1, 1]} : vector<8x96xf32> to vector<8x64xf32>
    %182 = arith.addf %180, %181 : vector<8x64xf32>
    %183 = arith.negf %182 : vector<8x64xf32>
    %184 = math.exp %183 : vector<8x64xf32>
    %cst_44 = arith.constant 1.000000e+00 : f32
    %185 = vector.broadcast %cst_44 : f32 to vector<8x64xf32>
    %186 = arith.addf %185, %184 : vector<8x64xf32>
    %187 = arith.divf %185, %186 : vector<8x64xf32>
    %188 = vector.extract_strided_slice %187 {offsets = [0, 0], sizes = [8, 32], strides = [1, 1]} : vector<8x64xf32> to vector<8x32xf32>
    %189 = vector.extract_strided_slice %187 {offsets = [0, 32], sizes = [8, 32], strides = [1, 1]} : vector<8x64xf32> to vector<8x32xf32>
    %190 = vector.extract_strided_slice %177 {offsets = [0, 64], sizes = [8, 32], strides = [1, 1]} : vector<8x96xf32> to vector<8x32xf32>
    %191 = vector.extract_strided_slice %179 {offsets = [0, 64], sizes = [8, 32], strides = [1, 1]} : vector<8x96xf32> to vector<8x32xf32>
    %192 = arith.addf %191, %10 : vector<8x32xf32>
    %193 = arith.mulf %188, %192 : vector<8x32xf32>
    %194 = arith.addf %190, %193 : vector<8x32xf32>
    %195 = math.tanh %194 : vector<8x32xf32>
    %196 = arith.subf %171, %195 : vector<8x32xf32>
    %197 = arith.mulf %189, %196 : vector<8x32xf32>
    %198 = arith.addf %195, %197 : vector<8x32xf32>
    %199 = arith.index_cast %175 : i32 to index
    %c0_45 = arith.constant 0 : index
    %200 = vector.load %arg14[%199, %c0_45] : memref<128x32xf32, #tpu.memory_space<vmem>>, vector<8x32xf32>
    tpu.vector_store %arg14[%199, %c0_45], %198 {strides = array<i32>} : memref<128x32xf32, #tpu.memory_space<vmem>>, vector<8x32xf32>,
    %c7_i32 = arith.constant 7 : i32
    %c8_i32_46 = arith.constant 8 : i32
    %201 = arith.muli %c7_i32, %c8_i32_46 : i32
    %202 = tpu.assume_multiple %201, 8 : i32
    %203 = arith.index_cast %202 : i32 to index
    %c0_47 = arith.constant 0 : index
    %204 = vector.load %arg13[%203, %c0_47] : memref<128x96xf32, #tpu.memory_space<vmem>>, vector<8x96xf32>
    %205 = arith.truncf %198 : vector<8x32xf32> to vector<8x32xbf16>
    %cst_48 = arith.constant dense<0.000000e+00> : vector<8x96xf32>
    %206 = tpu.matmul %205, %7, %cst_48 {dimension_numbers = #tpu.dot_dimension_numbers<[1], [0], [0], [1], [0, 0, 1, 1], [], []>} : vector<8x32xbf16>, vector<32x96xbf16>, vector<8x96xf32> -> vector<8x96xf32>
    %207 = vector.extract_strided_slice %204 {offsets = [0, 0], sizes = [8, 64], strides = [1, 1]} : vector<8x96xf32> to vector<8x64xf32>
    %208 = vector.extract_strided_slice %206 {offsets = [0, 0], sizes = [8, 64], strides = [1, 1]} : vector<8x96xf32> to vector<8x64xf32>
    %209 = arith.addf %207, %208 : vector<8x64xf32>
    %210 = arith.negf %209 : vector<8x64xf32>
    %211 = math.exp %210 : vector<8x64xf32>
    %cst_49 = arith.constant 1.000000e+00 : f32
    %212 = vector.broadcast %cst_49 : f32 to vector<8x64xf32>
    %213 = arith.addf %212, %211 : vector<8x64xf32>
    %214 = arith.divf %212, %213 : vector<8x64xf32>
    %215 = vector.extract_strided_slice %214 {offsets = [0, 0], sizes = [8, 32], strides = [1, 1]} : vector<8x64xf32> to vector<8x32xf32>
    %216 = vector.extract_strided_slice %214 {offsets = [0, 32], sizes = [8, 32], strides = [1, 1]} : vector<8x64xf32> to vector<8x32xf32>
    %217 = vector.extract_strided_slice %204 {offsets = [0, 64], sizes = [8, 32], strides = [1, 1]} : vector<8x96xf32> to vector<8x32xf32>
    %218 = vector.extract_strided_slice %206 {offsets = [0, 64], sizes = [8, 32], strides = [1, 1]} : vector<8x96xf32> to vector<8x32xf32>
    %219 = arith.addf %218, %10 : vector<8x32xf32>
    %220 = arith.mulf %215, %219 : vector<8x32xf32>
    %221 = arith.addf %217, %220 : vector<8x32xf32>
    %222 = math.tanh %221 : vector<8x32xf32>
    %223 = arith.subf %198, %222 : vector<8x32xf32>
    %224 = arith.mulf %216, %223 : vector<8x32xf32>
    %225 = arith.addf %222, %224 : vector<8x32xf32>
    %226 = arith.index_cast %202 : i32 to index
    %c0_50 = arith.constant 0 : index
    %227 = vector.load %arg14[%226, %c0_50] : memref<128x32xf32, #tpu.memory_space<vmem>>, vector<8x32xf32>
    tpu.vector_store %arg14[%226, %c0_50], %225 {strides = array<i32>} : memref<128x32xf32, #tpu.memory_space<vmem>>, vector<8x32xf32>,
    %c8_i32_51 = arith.constant 8 : i32
    %c8_i32_52 = arith.constant 8 : i32
    %228 = arith.muli %c8_i32_51, %c8_i32_52 : i32
    %229 = tpu.assume_multiple %228, 8 : i32
    %230 = arith.index_cast %229 : i32 to index
    %c0_53 = arith.constant 0 : index
    %231 = vector.load %arg13[%230, %c0_53] : memref<128x96xf32, #tpu.memory_space<vmem>>, vector<8x96xf32>
    %232 = arith.truncf %225 : vector<8x32xf32> to vector<8x32xbf16>
    %cst_54 = arith.constant dense<0.000000e+00> : vector<8x96xf32>
    %233 = tpu.matmul %232, %7, %cst_54 {dimension_numbers = #tpu.dot_dimension_numbers<[1], [0], [0], [1], [0, 0, 1, 1], [], []>} : vector<8x32xbf16>, vector<32x96xbf16>, vector<8x96xf32> -> vector<8x96xf32>
    %234 = vector.extract_strided_slice %231 {offsets = [0, 0], sizes = [8, 64], strides = [1, 1]} : vector<8x96xf32> to vector<8x64xf32>
    %235 = vector.extract_strided_slice %233 {offsets = [0, 0], sizes = [8, 64], strides = [1, 1]} : vector<8x96xf32> to vector<8x64xf32>
    %236 = arith.addf %234, %235 : vector<8x64xf32>
    %237 = arith.negf %236 : vector<8x64xf32>
    %238 = math.exp %237 : vector<8x64xf32>
    %cst_55 = arith.constant 1.000000e+00 : f32
    %239 = vector.broadcast %cst_55 : f32 to vector<8x64xf32>
    %240 = arith.addf %239, %238 : vector<8x64xf32>
    %241 = arith.divf %239, %240 : vector<8x64xf32>
    %242 = vector.extract_strided_slice %241 {offsets = [0, 0], sizes = [8, 32], strides = [1, 1]} : vector<8x64xf32> to vector<8x32xf32>
    %243 = vector.extract_strided_slice %241 {offsets = [0, 32], sizes = [8, 32], strides = [1, 1]} : vector<8x64xf32> to vector<8x32xf32>
    %244 = vector.extract_strided_slice %231 {offsets = [0, 64], sizes = [8, 32], strides = [1, 1]} : vector<8x96xf32> to vector<8x32xf32>
    %245 = vector.extract_strided_slice %233 {offsets = [0, 64], sizes = [8, 32], strides = [1, 1]} : vector<8x96xf32> to vector<8x32xf32>
    %246 = arith.addf %245, %10 : vector<8x32xf32>
    %247 = arith.mulf %242, %246 : vector<8x32xf32>
    %248 = arith.addf %244, %247 : vector<8x32xf32>
    %249 = math.tanh %248 : vector<8x32xf32>
    %250 = arith.subf %225, %249 : vector<8x32xf32>
    %251 = arith.mulf %243, %250 : vector<8x32xf32>
    %252 = arith.addf %249, %251 : vector<8x32xf32>
    %253 = arith.index_cast %229 : i32 to index
    %c0_56 = arith.constant 0 : index
    %254 = vector.load %arg14[%253, %c0_56] : memref<128x32xf32, #tpu.memory_space<vmem>>, vector<8x32xf32>
    tpu.vector_store %arg14[%253, %c0_56], %252 {strides = array<i32>} : memref<128x32xf32, #tpu.memory_space<vmem>>, vector<8x32xf32>,
    %c9_i32 = arith.constant 9 : i32
    %c8_i32_57 = arith.constant 8 : i32
    %255 = arith.muli %c9_i32, %c8_i32_57 : i32
    %256 = tpu.assume_multiple %255, 8 : i32
    %257 = arith.index_cast %256 : i32 to index
    %c0_58 = arith.constant 0 : index
    %258 = vector.load %arg13[%257, %c0_58] : memref<128x96xf32, #tpu.memory_space<vmem>>, vector<8x96xf32>
    %259 = arith.truncf %252 : vector<8x32xf32> to vector<8x32xbf16>
    %cst_59 = arith.constant dense<0.000000e+00> : vector<8x96xf32>
    %260 = tpu.matmul %259, %7, %cst_59 {dimension_numbers = #tpu.dot_dimension_numbers<[1], [0], [0], [1], [0, 0, 1, 1], [], []>} : vector<8x32xbf16>, vector<32x96xbf16>, vector<8x96xf32> -> vector<8x96xf32>
    %261 = vector.extract_strided_slice %258 {offsets = [0, 0], sizes = [8, 64], strides = [1, 1]} : vector<8x96xf32> to vector<8x64xf32>
    %262 = vector.extract_strided_slice %260 {offsets = [0, 0], sizes = [8, 64], strides = [1, 1]} : vector<8x96xf32> to vector<8x64xf32>
    %263 = arith.addf %261, %262 : vector<8x64xf32>
    %264 = arith.negf %263 : vector<8x64xf32>
    %265 = math.exp %264 : vector<8x64xf32>
    %cst_60 = arith.constant 1.000000e+00 : f32
    %266 = vector.broadcast %cst_60 : f32 to vector<8x64xf32>
    %267 = arith.addf %266, %265 : vector<8x64xf32>
    %268 = arith.divf %266, %267 : vector<8x64xf32>
    %269 = vector.extract_strided_slice %268 {offsets = [0, 0], sizes = [8, 32], strides = [1, 1]} : vector<8x64xf32> to vector<8x32xf32>
    %270 = vector.extract_strided_slice %268 {offsets = [0, 32], sizes = [8, 32], strides = [1, 1]} : vector<8x64xf32> to vector<8x32xf32>
    %271 = vector.extract_strided_slice %258 {offsets = [0, 64], sizes = [8, 32], strides = [1, 1]} : vector<8x96xf32> to vector<8x32xf32>
    %272 = vector.extract_strided_slice %260 {offsets = [0, 64], sizes = [8, 32], strides = [1, 1]} : vector<8x96xf32> to vector<8x32xf32>
    %273 = arith.addf %272, %10 : vector<8x32xf32>
    %274 = arith.mulf %269, %273 : vector<8x32xf32>
    %275 = arith.addf %271, %274 : vector<8x32xf32>
    %276 = math.tanh %275 : vector<8x32xf32>
    %277 = arith.subf %252, %276 : vector<8x32xf32>
    %278 = arith.mulf %270, %277 : vector<8x32xf32>
    %279 = arith.addf %276, %278 : vector<8x32xf32>
    %280 = arith.index_cast %256 : i32 to index
    %c0_61 = arith.constant 0 : index
    %281 = vector.load %arg14[%280, %c0_61] : memref<128x32xf32, #tpu.memory_space<vmem>>, vector<8x32xf32>
    tpu.vector_store %arg14[%280, %c0_61], %279 {strides = array<i32>} : memref<128x32xf32, #tpu.memory_space<vmem>>, vector<8x32xf32>,
    %c10_i32 = arith.constant 10 : i32
    %c8_i32_62 = arith.constant 8 : i32
    %282 = arith.muli %c10_i32, %c8_i32_62 : i32
    %283 = tpu.assume_multiple %282, 8 : i32
    %284 = arith.index_cast %283 : i32 to index
    %c0_63 = arith.constant 0 : index
    %285 = vector.load %arg13[%284, %c0_63] : memref<128x96xf32, #tpu.memory_space<vmem>>, vector<8x96xf32>
    %286 = arith.truncf %279 : vector<8x32xf32> to vector<8x32xbf16>
    %cst_64 = arith.constant dense<0.000000e+00> : vector<8x96xf32>
    %287 = tpu.matmul %286, %7, %cst_64 {dimension_numbers = #tpu.dot_dimension_numbers<[1], [0], [0], [1], [0, 0, 1, 1], [], []>} : vector<8x32xbf16>, vector<32x96xbf16>, vector<8x96xf32> -> vector<8x96xf32>
    %288 = vector.extract_strided_slice %285 {offsets = [0, 0], sizes = [8, 64], strides = [1, 1]} : vector<8x96xf32> to vector<8x64xf32>
    %289 = vector.extract_strided_slice %287 {offsets = [0, 0], sizes = [8, 64], strides = [1, 1]} : vector<8x96xf32> to vector<8x64xf32>
    %290 = arith.addf %288, %289 : vector<8x64xf32>
    %291 = arith.negf %290 : vector<8x64xf32>
    %292 = math.exp %291 : vector<8x64xf32>
    %cst_65 = arith.constant 1.000000e+00 : f32
    %293 = vector.broadcast %cst_65 : f32 to vector<8x64xf32>
    %294 = arith.addf %293, %292 : vector<8x64xf32>
    %295 = arith.divf %293, %294 : vector<8x64xf32>
    %296 = vector.extract_strided_slice %295 {offsets = [0, 0], sizes = [8, 32], strides = [1, 1]} : vector<8x64xf32> to vector<8x32xf32>
    %297 = vector.extract_strided_slice %295 {offsets = [0, 32], sizes = [8, 32], strides = [1, 1]} : vector<8x64xf32> to vector<8x32xf32>
    %298 = vector.extract_strided_slice %285 {offsets = [0, 64], sizes = [8, 32], strides = [1, 1]} : vector<8x96xf32> to vector<8x32xf32>
    %299 = vector.extract_strided_slice %287 {offsets = [0, 64], sizes = [8, 32], strides = [1, 1]} : vector<8x96xf32> to vector<8x32xf32>
    %300 = arith.addf %299, %10 : vector<8x32xf32>
    %301 = arith.mulf %296, %300 : vector<8x32xf32>
    %302 = arith.addf %298, %301 : vector<8x32xf32>
    %303 = math.tanh %302 : vector<8x32xf32>
    %304 = arith.subf %279, %303 : vector<8x32xf32>
    %305 = arith.mulf %297, %304 : vector<8x32xf32>
    %306 = arith.addf %303, %305 : vector<8x32xf32>
    %307 = arith.index_cast %283 : i32 to index
    %c0_66 = arith.constant 0 : index
    %308 = vector.load %arg14[%307, %c0_66] : memref<128x32xf32, #tpu.memory_space<vmem>>, vector<8x32xf32>
    tpu.vector_store %arg14[%307, %c0_66], %306 {strides = array<i32>} : memref<128x32xf32, #tpu.memory_space<vmem>>, vector<8x32xf32>,
    %c11_i32 = arith.constant 11 : i32
    %c8_i32_67 = arith.constant 8 : i32
    %309 = arith.muli %c11_i32, %c8_i32_67 : i32
    %310 = tpu.assume_multiple %309, 8 : i32
    %311 = arith.index_cast %310 : i32 to index
    %c0_68 = arith.constant 0 : index
    %312 = vector.load %arg13[%311, %c0_68] : memref<128x96xf32, #tpu.memory_space<vmem>>, vector<8x96xf32>
    %313 = arith.truncf %306 : vector<8x32xf32> to vector<8x32xbf16>
    %cst_69 = arith.constant dense<0.000000e+00> : vector<8x96xf32>
    %314 = tpu.matmul %313, %7, %cst_69 {dimension_numbers = #tpu.dot_dimension_numbers<[1], [0], [0], [1], [0, 0, 1, 1], [], []>} : vector<8x32xbf16>, vector<32x96xbf16>, vector<8x96xf32> -> vector<8x96xf32>
    %315 = vector.extract_strided_slice %312 {offsets = [0, 0], sizes = [8, 64], strides = [1, 1]} : vector<8x96xf32> to vector<8x64xf32>
    %316 = vector.extract_strided_slice %314 {offsets = [0, 0], sizes = [8, 64], strides = [1, 1]} : vector<8x96xf32> to vector<8x64xf32>
    %317 = arith.addf %315, %316 : vector<8x64xf32>
    %318 = arith.negf %317 : vector<8x64xf32>
    %319 = math.exp %318 : vector<8x64xf32>
    %cst_70 = arith.constant 1.000000e+00 : f32
    %320 = vector.broadcast %cst_70 : f32 to vector<8x64xf32>
    %321 = arith.addf %320, %319 : vector<8x64xf32>
    %322 = arith.divf %320, %321 : vector<8x64xf32>
    %323 = vector.extract_strided_slice %322 {offsets = [0, 0], sizes = [8, 32], strides = [1, 1]} : vector<8x64xf32> to vector<8x32xf32>
    %324 = vector.extract_strided_slice %322 {offsets = [0, 32], sizes = [8, 32], strides = [1, 1]} : vector<8x64xf32> to vector<8x32xf32>
    %325 = vector.extract_strided_slice %312 {offsets = [0, 64], sizes = [8, 32], strides = [1, 1]} : vector<8x96xf32> to vector<8x32xf32>
    %326 = vector.extract_strided_slice %314 {offsets = [0, 64], sizes = [8, 32], strides = [1, 1]} : vector<8x96xf32> to vector<8x32xf32>
    %327 = arith.addf %326, %10 : vector<8x32xf32>
    %328 = arith.mulf %323, %327 : vector<8x32xf32>
    %329 = arith.addf %325, %328 : vector<8x32xf32>
    %330 = math.tanh %329 : vector<8x32xf32>
    %331 = arith.subf %306, %330 : vector<8x32xf32>
    %332 = arith.mulf %324, %331 : vector<8x32xf32>
    %333 = arith.addf %330, %332 : vector<8x32xf32>
    %334 = arith.index_cast %310 : i32 to index
    %c0_71 = arith.constant 0 : index
    %335 = vector.load %arg14[%334, %c0_71] : memref<128x32xf32, #tpu.memory_space<vmem>>, vector<8x32xf32>
    tpu.vector_store %arg14[%334, %c0_71], %333 {strides = array<i32>} : memref<128x32xf32, #tpu.memory_space<vmem>>, vector<8x32xf32>,
    %c12_i32 = arith.constant 12 : i32
    %c8_i32_72 = arith.constant 8 : i32
    %336 = arith.muli %c12_i32, %c8_i32_72 : i32
    %337 = tpu.assume_multiple %336, 8 : i32
    %338 = arith.index_cast %337 : i32 to index
    %c0_73 = arith.constant 0 : index
    %339 = vector.load %arg13[%338, %c0_73] : memref<128x96xf32, #tpu.memory_space<vmem>>, vector<8x96xf32>
    %340 = arith.truncf %333 : vector<8x32xf32> to vector<8x32xbf16>
    %cst_74 = arith.constant dense<0.000000e+00> : vector<8x96xf32>
    %341 = tpu.matmul %340, %7, %cst_74 {dimension_numbers = #tpu.dot_dimension_numbers<[1], [0], [0], [1], [0, 0, 1, 1], [], []>} : vector<8x32xbf16>, vector<32x96xbf16>, vector<8x96xf32> -> vector<8x96xf32>
    %342 = vector.extract_strided_slice %339 {offsets = [0, 0], sizes = [8, 64], strides = [1, 1]} : vector<8x96xf32> to vector<8x64xf32>
    %343 = vector.extract_strided_slice %341 {offsets = [0, 0], sizes = [8, 64], strides = [1, 1]} : vector<8x96xf32> to vector<8x64xf32>
    %344 = arith.addf %342, %343 : vector<8x64xf32>
    %345 = arith.negf %344 : vector<8x64xf32>
    %346 = math.exp %345 : vector<8x64xf32>
    %cst_75 = arith.constant 1.000000e+00 : f32
    %347 = vector.broadcast %cst_75 : f32 to vector<8x64xf32>
    %348 = arith.addf %347, %346 : vector<8x64xf32>
    %349 = arith.divf %347, %348 : vector<8x64xf32>
    %350 = vector.extract_strided_slice %349 {offsets = [0, 0], sizes = [8, 32], strides = [1, 1]} : vector<8x64xf32> to vector<8x32xf32>
    %351 = vector.extract_strided_slice %349 {offsets = [0, 32], sizes = [8, 32], strides = [1, 1]} : vector<8x64xf32> to vector<8x32xf32>
    %352 = vector.extract_strided_slice %339 {offsets = [0, 64], sizes = [8, 32], strides = [1, 1]} : vector<8x96xf32> to vector<8x32xf32>
    %353 = vector.extract_strided_slice %341 {offsets = [0, 64], sizes = [8, 32], strides = [1, 1]} : vector<8x96xf32> to vector<8x32xf32>
    %354 = arith.addf %353, %10 : vector<8x32xf32>
    %355 = arith.mulf %350, %354 : vector<8x32xf32>
    %356 = arith.addf %352, %355 : vector<8x32xf32>
    %357 = math.tanh %356 : vector<8x32xf32>
    %358 = arith.subf %333, %357 : vector<8x32xf32>
    %359 = arith.mulf %351, %358 : vector<8x32xf32>
    %360 = arith.addf %357, %359 : vector<8x32xf32>
    %361 = arith.index_cast %337 : i32 to index
    %c0_76 = arith.constant 0 : index
    %362 = vector.load %arg14[%361, %c0_76] : memref<128x32xf32, #tpu.memory_space<vmem>>, vector<8x32xf32>
    tpu.vector_store %arg14[%361, %c0_76], %360 {strides = array<i32>} : memref<128x32xf32, #tpu.memory_space<vmem>>, vector<8x32xf32>,
    %c13_i32 = arith.constant 13 : i32
    %c8_i32_77 = arith.constant 8 : i32
    %363 = arith.muli %c13_i32, %c8_i32_77 : i32
    %364 = tpu.assume_multiple %363, 8 : i32
    %365 = arith.index_cast %364 : i32 to index
    %c0_78 = arith.constant 0 : index
    %366 = vector.load %arg13[%365, %c0_78] : memref<128x96xf32, #tpu.memory_space<vmem>>, vector<8x96xf32>
    %367 = arith.truncf %360 : vector<8x32xf32> to vector<8x32xbf16>
    %cst_79 = arith.constant dense<0.000000e+00> : vector<8x96xf32>
    %368 = tpu.matmul %367, %7, %cst_79 {dimension_numbers = #tpu.dot_dimension_numbers<[1], [0], [0], [1], [0, 0, 1, 1], [], []>} : vector<8x32xbf16>, vector<32x96xbf16>, vector<8x96xf32> -> vector<8x96xf32>
    %369 = vector.extract_strided_slice %366 {offsets = [0, 0], sizes = [8, 64], strides = [1, 1]} : vector<8x96xf32> to vector<8x64xf32>
    %370 = vector.extract_strided_slice %368 {offsets = [0, 0], sizes = [8, 64], strides = [1, 1]} : vector<8x96xf32> to vector<8x64xf32>
    %371 = arith.addf %369, %370 : vector<8x64xf32>
    %372 = arith.negf %371 : vector<8x64xf32>
    %373 = math.exp %372 : vector<8x64xf32>
    %cst_80 = arith.constant 1.000000e+00 : f32
    %374 = vector.broadcast %cst_80 : f32 to vector<8x64xf32>
    %375 = arith.addf %374, %373 : vector<8x64xf32>
    %376 = arith.divf %374, %375 : vector<8x64xf32>
    %377 = vector.extract_strided_slice %376 {offsets = [0, 0], sizes = [8, 32], strides = [1, 1]} : vector<8x64xf32> to vector<8x32xf32>
    %378 = vector.extract_strided_slice %376 {offsets = [0, 32], sizes = [8, 32], strides = [1, 1]} : vector<8x64xf32> to vector<8x32xf32>
    %379 = vector.extract_strided_slice %366 {offsets = [0, 64], sizes = [8, 32], strides = [1, 1]} : vector<8x96xf32> to vector<8x32xf32>
    %380 = vector.extract_strided_slice %368 {offsets = [0, 64], sizes = [8, 32], strides = [1, 1]} : vector<8x96xf32> to vector<8x32xf32>
    %381 = arith.addf %380, %10 : vector<8x32xf32>
    %382 = arith.mulf %377, %381 : vector<8x32xf32>
    %383 = arith.addf %379, %382 : vector<8x32xf32>
    %384 = math.tanh %383 : vector<8x32xf32>
    %385 = arith.subf %360, %384 : vector<8x32xf32>
    %386 = arith.mulf %378, %385 : vector<8x32xf32>
    %387 = arith.addf %384, %386 : vector<8x32xf32>
    %388 = arith.index_cast %364 : i32 to index
    %c0_81 = arith.constant 0 : index
    %389 = vector.load %arg14[%388, %c0_81] : memref<128x32xf32, #tpu.memory_space<vmem>>, vector<8x32xf32>
    tpu.vector_store %arg14[%388, %c0_81], %387 {strides = array<i32>} : memref<128x32xf32, #tpu.memory_space<vmem>>, vector<8x32xf32>,
    %c14_i32 = arith.constant 14 : i32
    %c8_i32_82 = arith.constant 8 : i32
    %390 = arith.muli %c14_i32, %c8_i32_82 : i32
    %391 = tpu.assume_multiple %390, 8 : i32
    %392 = arith.index_cast %391 : i32 to index
    %c0_83 = arith.constant 0 : index
    %393 = vector.load %arg13[%392, %c0_83] : memref<128x96xf32, #tpu.memory_space<vmem>>, vector<8x96xf32>
    %394 = arith.truncf %387 : vector<8x32xf32> to vector<8x32xbf16>
    %cst_84 = arith.constant dense<0.000000e+00> : vector<8x96xf32>
    %395 = tpu.matmul %394, %7, %cst_84 {dimension_numbers = #tpu.dot_dimension_numbers<[1], [0], [0], [1], [0, 0, 1, 1], [], []>} : vector<8x32xbf16>, vector<32x96xbf16>, vector<8x96xf32> -> vector<8x96xf32>
    %396 = vector.extract_strided_slice %393 {offsets = [0, 0], sizes = [8, 64], strides = [1, 1]} : vector<8x96xf32> to vector<8x64xf32>
    %397 = vector.extract_strided_slice %395 {offsets = [0, 0], sizes = [8, 64], strides = [1, 1]} : vector<8x96xf32> to vector<8x64xf32>
    %398 = arith.addf %396, %397 : vector<8x64xf32>
    %399 = arith.negf %398 : vector<8x64xf32>
    %400 = math.exp %399 : vector<8x64xf32>
    %cst_85 = arith.constant 1.000000e+00 : f32
    %401 = vector.broadcast %cst_85 : f32 to vector<8x64xf32>
    %402 = arith.addf %401, %400 : vector<8x64xf32>
    %403 = arith.divf %401, %402 : vector<8x64xf32>
    %404 = vector.extract_strided_slice %403 {offsets = [0, 0], sizes = [8, 32], strides = [1, 1]} : vector<8x64xf32> to vector<8x32xf32>
    %405 = vector.extract_strided_slice %403 {offsets = [0, 32], sizes = [8, 32], strides = [1, 1]} : vector<8x64xf32> to vector<8x32xf32>
    %406 = vector.extract_strided_slice %393 {offsets = [0, 64], sizes = [8, 32], strides = [1, 1]} : vector<8x96xf32> to vector<8x32xf32>
    %407 = vector.extract_strided_slice %395 {offsets = [0, 64], sizes = [8, 32], strides = [1, 1]} : vector<8x96xf32> to vector<8x32xf32>
    %408 = arith.addf %407, %10 : vector<8x32xf32>
    %409 = arith.mulf %404, %408 : vector<8x32xf32>
    %410 = arith.addf %406, %409 : vector<8x32xf32>
    %411 = math.tanh %410 : vector<8x32xf32>
    %412 = arith.subf %387, %411 : vector<8x32xf32>
    %413 = arith.mulf %405, %412 : vector<8x32xf32>
    %414 = arith.addf %411, %413 : vector<8x32xf32>
    %415 = arith.index_cast %391 : i32 to index
    %c0_86 = arith.constant 0 : index
    %416 = vector.load %arg14[%415, %c0_86] : memref<128x32xf32, #tpu.memory_space<vmem>>, vector<8x32xf32>
    tpu.vector_store %arg14[%415, %c0_86], %414 {strides = array<i32>} : memref<128x32xf32, #tpu.memory_space<vmem>>, vector<8x32xf32>,
    %c15_i32 = arith.constant 15 : i32
    %c8_i32_87 = arith.constant 8 : i32
    %417 = arith.muli %c15_i32, %c8_i32_87 : i32
    %418 = tpu.assume_multiple %417, 8 : i32
    %419 = arith.index_cast %418 : i32 to index
    %c0_88 = arith.constant 0 : index
    %420 = vector.load %arg13[%419, %c0_88] : memref<128x96xf32, #tpu.memory_space<vmem>>, vector<8x96xf32>
    %421 = arith.truncf %414 : vector<8x32xf32> to vector<8x32xbf16>
    %cst_89 = arith.constant dense<0.000000e+00> : vector<8x96xf32>
    %422 = tpu.matmul %421, %7, %cst_89 {dimension_numbers = #tpu.dot_dimension_numbers<[1], [0], [0], [1], [0, 0, 1, 1], [], []>} : vector<8x32xbf16>, vector<32x96xbf16>, vector<8x96xf32> -> vector<8x96xf32>
    %423 = vector.extract_strided_slice %420 {offsets = [0, 0], sizes = [8, 64], strides = [1, 1]} : vector<8x96xf32> to vector<8x64xf32>
    %424 = vector.extract_strided_slice %422 {offsets = [0, 0], sizes = [8, 64], strides = [1, 1]} : vector<8x96xf32> to vector<8x64xf32>
    %425 = arith.addf %423, %424 : vector<8x64xf32>
    %426 = arith.negf %425 : vector<8x64xf32>
    %427 = math.exp %426 : vector<8x64xf32>
    %cst_90 = arith.constant 1.000000e+00 : f32
    %428 = vector.broadcast %cst_90 : f32 to vector<8x64xf32>
    %429 = arith.addf %428, %427 : vector<8x64xf32>
    %430 = arith.divf %428, %429 : vector<8x64xf32>
    %431 = vector.extract_strided_slice %430 {offsets = [0, 0], sizes = [8, 32], strides = [1, 1]} : vector<8x64xf32> to vector<8x32xf32>
    %432 = vector.extract_strided_slice %430 {offsets = [0, 32], sizes = [8, 32], strides = [1, 1]} : vector<8x64xf32> to vector<8x32xf32>
    %433 = vector.extract_strided_slice %420 {offsets = [0, 64], sizes = [8, 32], strides = [1, 1]} : vector<8x96xf32> to vector<8x32xf32>
    %434 = vector.extract_strided_slice %422 {offsets = [0, 64], sizes = [8, 32], strides = [1, 1]} : vector<8x96xf32> to vector<8x32xf32>
    %435 = arith.addf %434, %10 : vector<8x32xf32>
    %436 = arith.mulf %431, %435 : vector<8x32xf32>
    %437 = arith.addf %433, %436 : vector<8x32xf32>
    %438 = math.tanh %437 : vector<8x32xf32>
    %439 = arith.subf %414, %438 : vector<8x32xf32>
    %440 = arith.mulf %432, %439 : vector<8x32xf32>
    %441 = arith.addf %438, %440 : vector<8x32xf32>
    %442 = arith.index_cast %418 : i32 to index
    %c0_91 = arith.constant 0 : index
    %443 = vector.load %arg14[%442, %c0_91] : memref<128x32xf32, #tpu.memory_space<vmem>>, vector<8x32xf32>
    tpu.vector_store %arg14[%442, %c0_91], %441 {strides = array<i32>} : memref<128x32xf32, #tpu.memory_space<vmem>>, vector<8x32xf32>,
    %c16_i32 = arith.constant 16 : i32
    %c0_92 = arith.constant 0 : index
    %c0_93 = arith.constant 0 : index
    %444 = vector.load %arg14[%c0_92, %c0_93] : memref<128x32xf32, #tpu.memory_space<vmem>>, vector<128x32xf32>
    %445 = arith.truncf %444 : vector<128x32xf32> to vector<128x32xbf16>
    %c0_94 = arith.constant 0 : index
    %c0_95 = arith.constant 0 : index
    %446 = vector.load %arg6[%c0_94, %c0_95] : memref<32x96xbf16, #tpu.memory_space<vmem>>, vector<32x96xbf16>
    %cst_96 = arith.constant dense<0.000000e+00> : vector<128x96xf32>
    %447 = tpu.matmul %445, %446, %cst_96 {dimension_numbers = #tpu.dot_dimension_numbers<[1], [0], [0], [1], [0, 0, 1, 1], [], []>} : vector<128x32xbf16>, vector<32x96xbf16>, vector<128x96xf32> -> vector<128x96xf32>
    %c0_97 = arith.constant 0 : index
    %c0_98 = arith.constant 0 : index
    %448 = vector.load %arg8[%c0_97, %c0_98] : memref<1x96xf32, #tpu.memory_space<vmem>>, vector<1x96xf32>
    %449 = vector.broadcast %448 : vector<1x96xf32> to vector<128x96xf32>
    %450 = arith.addf %447, %449 : vector<128x96xf32>
    %c0_99 = arith.constant 0 : index
    %c0_100 = arith.constant 0 : index
    %451 = vector.load %arg13[%c0_99, %c0_100] : memref<128x96xf32, #tpu.memory_space<vmem>>, vector<128x96xf32>
    tpu.vector_store %arg13[%c0_99, %c0_100], %450 {strides = array<i32>} : memref<128x96xf32, #tpu.memory_space<vmem>>, vector<128x96xf32>,
    %c0_101 = arith.constant 0 : index
    %c0_102 = arith.constant 0 : index
    %452 = vector.load %arg7[%c0_101, %c0_102] : memref<32x96xbf16, #tpu.memory_space<vmem>>, vector<32x96xbf16>
    %c0_103 = arith.constant 0 : index
    %c0_104 = arith.constant 0 : index
    %453 = vector.load %arg9[%c0_103, %c0_104] : memref<1x32xf32, #tpu.memory_space<vmem>>, vector<1x32xf32>
    %454 = vector.shape_cast %453 : vector<1x32xf32> to vector<1x32xf32>
    %455 = vector.broadcast %454 : vector<1x32xf32> to vector<8x32xf32>
    %cst_105 = arith.constant 0.000000e+00 : f32
    %456 = vector.broadcast %cst_105 : f32 to vector<8x32xf32>
    %c0_i32_106 = arith.constant 0 : i32
    %c8_i32_107 = arith.constant 8 : i32
    %457 = arith.muli %c0_i32_106, %c8_i32_107 : i32
    %458 = tpu.assume_multiple %457, 8 : i32
    %459 = arith.index_cast %458 : i32 to index
    %c0_108 = arith.constant 0 : index
    %460 = vector.load %arg13[%459, %c0_108] : memref<128x96xf32, #tpu.memory_space<vmem>>, vector<8x96xf32>
    %461 = arith.truncf %456 : vector<8x32xf32> to vector<8x32xbf16>
    %cst_109 = arith.constant dense<0.000000e+00> : vector<8x96xf32>
    %462 = tpu.matmul %461, %452, %cst_109 {dimension_numbers = #tpu.dot_dimension_numbers<[1], [0], [0], [1], [0, 0, 1, 1], [], []>} : vector<8x32xbf16>, vector<32x96xbf16>, vector<8x96xf32> -> vector<8x96xf32>
    %463 = vector.extract_strided_slice %460 {offsets = [0, 0], sizes = [8, 64], strides = [1, 1]} : vector<8x96xf32> to vector<8x64xf32>
    %464 = vector.extract_strided_slice %462 {offsets = [0, 0], sizes = [8, 64], strides = [1, 1]} : vector<8x96xf32> to vector<8x64xf32>
    %465 = arith.addf %463, %464 : vector<8x64xf32>
    %466 = arith.negf %465 : vector<8x64xf32>
    %467 = math.exp %466 : vector<8x64xf32>
    %cst_110 = arith.constant 1.000000e+00 : f32
    %468 = vector.broadcast %cst_110 : f32 to vector<8x64xf32>
    %469 = arith.addf %468, %467 : vector<8x64xf32>
    %470 = arith.divf %468, %469 : vector<8x64xf32>
    %471 = vector.extract_strided_slice %470 {offsets = [0, 0], sizes = [8, 32], strides = [1, 1]} : vector<8x64xf32> to vector<8x32xf32>
    %472 = vector.extract_strided_slice %470 {offsets = [0, 32], sizes = [8, 32], strides = [1, 1]} : vector<8x64xf32> to vector<8x32xf32>
    %473 = vector.extract_strided_slice %460 {offsets = [0, 64], sizes = [8, 32], strides = [1, 1]} : vector<8x96xf32> to vector<8x32xf32>
    %474 = vector.extract_strided_slice %462 {offsets = [0, 64], sizes = [8, 32], strides = [1, 1]} : vector<8x96xf32> to vector<8x32xf32>
    %475 = arith.addf %474, %455 : vector<8x32xf32>
    %476 = arith.mulf %471, %475 : vector<8x32xf32>
    %477 = arith.addf %473, %476 : vector<8x32xf32>
    %478 = math.tanh %477 : vector<8x32xf32>
    %479 = arith.subf %456, %478 : vector<8x32xf32>
    %480 = arith.mulf %472, %479 : vector<8x32xf32>
    %481 = arith.addf %478, %480 : vector<8x32xf32>
    %482 = arith.index_cast %458 : i32 to index
    %c0_111 = arith.constant 0 : index
    %483 = vector.load %arg14[%482, %c0_111] : memref<128x32xf32, #tpu.memory_space<vmem>>, vector<8x32xf32>
    tpu.vector_store %arg14[%482, %c0_111], %481 {strides = array<i32>} : memref<128x32xf32, #tpu.memory_space<vmem>>, vector<8x32xf32>,
    %c1_i32_112 = arith.constant 1 : i32
    %c8_i32_113 = arith.constant 8 : i32
    %484 = arith.muli %c1_i32_112, %c8_i32_113 : i32
    %485 = tpu.assume_multiple %484, 8 : i32
    %486 = arith.index_cast %485 : i32 to index
    %c0_114 = arith.constant 0 : index
    %487 = vector.load %arg13[%486, %c0_114] : memref<128x96xf32, #tpu.memory_space<vmem>>, vector<8x96xf32>
    %488 = arith.truncf %481 : vector<8x32xf32> to vector<8x32xbf16>
    %cst_115 = arith.constant dense<0.000000e+00> : vector<8x96xf32>
    %489 = tpu.matmul %488, %452, %cst_115 {dimension_numbers = #tpu.dot_dimension_numbers<[1], [0], [0], [1], [0, 0, 1, 1], [], []>} : vector<8x32xbf16>, vector<32x96xbf16>, vector<8x96xf32> -> vector<8x96xf32>
    %490 = vector.extract_strided_slice %487 {offsets = [0, 0], sizes = [8, 64], strides = [1, 1]} : vector<8x96xf32> to vector<8x64xf32>
    %491 = vector.extract_strided_slice %489 {offsets = [0, 0], sizes = [8, 64], strides = [1, 1]} : vector<8x96xf32> to vector<8x64xf32>
    %492 = arith.addf %490, %491 : vector<8x64xf32>
    %493 = arith.negf %492 : vector<8x64xf32>
    %494 = math.exp %493 : vector<8x64xf32>
    %cst_116 = arith.constant 1.000000e+00 : f32
    %495 = vector.broadcast %cst_116 : f32 to vector<8x64xf32>
    %496 = arith.addf %495, %494 : vector<8x64xf32>
    %497 = arith.divf %495, %496 : vector<8x64xf32>
    %498 = vector.extract_strided_slice %497 {offsets = [0, 0], sizes = [8, 32], strides = [1, 1]} : vector<8x64xf32> to vector<8x32xf32>
    %499 = vector.extract_strided_slice %497 {offsets = [0, 32], sizes = [8, 32], strides = [1, 1]} : vector<8x64xf32> to vector<8x32xf32>
    %500 = vector.extract_strided_slice %487 {offsets = [0, 64], sizes = [8, 32], strides = [1, 1]} : vector<8x96xf32> to vector<8x32xf32>
    %501 = vector.extract_strided_slice %489 {offsets = [0, 64], sizes = [8, 32], strides = [1, 1]} : vector<8x96xf32> to vector<8x32xf32>
    %502 = arith.addf %501, %455 : vector<8x32xf32>
    %503 = arith.mulf %498, %502 : vector<8x32xf32>
    %504 = arith.addf %500, %503 : vector<8x32xf32>
    %505 = math.tanh %504 : vector<8x32xf32>
    %506 = arith.subf %481, %505 : vector<8x32xf32>
    %507 = arith.mulf %499, %506 : vector<8x32xf32>
    %508 = arith.addf %505, %507 : vector<8x32xf32>
    %509 = arith.index_cast %485 : i32 to index
    %c0_117 = arith.constant 0 : index
    %510 = vector.load %arg14[%509, %c0_117] : memref<128x32xf32, #tpu.memory_space<vmem>>, vector<8x32xf32>
    tpu.vector_store %arg14[%509, %c0_117], %508 {strides = array<i32>} : memref<128x32xf32, #tpu.memory_space<vmem>>, vector<8x32xf32>,
    %c2_i32_118 = arith.constant 2 : i32
    %c8_i32_119 = arith.constant 8 : i32
    %511 = arith.muli %c2_i32_118, %c8_i32_119 : i32
    %512 = tpu.assume_multiple %511, 8 : i32
    %513 = arith.index_cast %512 : i32 to index
    %c0_120 = arith.constant 0 : index
    %514 = vector.load %arg13[%513, %c0_120] : memref<128x96xf32, #tpu.memory_space<vmem>>, vector<8x96xf32>
    %515 = arith.truncf %508 : vector<8x32xf32> to vector<8x32xbf16>
    %cst_121 = arith.constant dense<0.000000e+00> : vector<8x96xf32>
    %516 = tpu.matmul %515, %452, %cst_121 {dimension_numbers = #tpu.dot_dimension_numbers<[1], [0], [0], [1], [0, 0, 1, 1], [], []>} : vector<8x32xbf16>, vector<32x96xbf16>, vector<8x96xf32> -> vector<8x96xf32>
    %517 = vector.extract_strided_slice %514 {offsets = [0, 0], sizes = [8, 64], strides = [1, 1]} : vector<8x96xf32> to vector<8x64xf32>
    %518 = vector.extract_strided_slice %516 {offsets = [0, 0], sizes = [8, 64], strides = [1, 1]} : vector<8x96xf32> to vector<8x64xf32>
    %519 = arith.addf %517, %518 : vector<8x64xf32>
    %520 = arith.negf %519 : vector<8x64xf32>
    %521 = math.exp %520 : vector<8x64xf32>
    %cst_122 = arith.constant 1.000000e+00 : f32
    %522 = vector.broadcast %cst_122 : f32 to vector<8x64xf32>
    %523 = arith.addf %522, %521 : vector<8x64xf32>
    %524 = arith.divf %522, %523 : vector<8x64xf32>
    %525 = vector.extract_strided_slice %524 {offsets = [0, 0], sizes = [8, 32], strides = [1, 1]} : vector<8x64xf32> to vector<8x32xf32>
    %526 = vector.extract_strided_slice %524 {offsets = [0, 32], sizes = [8, 32], strides = [1, 1]} : vector<8x64xf32> to vector<8x32xf32>
    %527 = vector.extract_strided_slice %514 {offsets = [0, 64], sizes = [8, 32], strides = [1, 1]} : vector<8x96xf32> to vector<8x32xf32>
    %528 = vector.extract_strided_slice %516 {offsets = [0, 64], sizes = [8, 32], strides = [1, 1]} : vector<8x96xf32> to vector<8x32xf32>
    %529 = arith.addf %528, %455 : vector<8x32xf32>
    %530 = arith.mulf %525, %529 : vector<8x32xf32>
    %531 = arith.addf %527, %530 : vector<8x32xf32>
    %532 = math.tanh %531 : vector<8x32xf32>
    %533 = arith.subf %508, %532 : vector<8x32xf32>
    %534 = arith.mulf %526, %533 : vector<8x32xf32>
    %535 = arith.addf %532, %534 : vector<8x32xf32>
    %536 = arith.index_cast %512 : i32 to index
    %c0_123 = arith.constant 0 : index
    %537 = vector.load %arg14[%536, %c0_123] : memref<128x32xf32, #tpu.memory_space<vmem>>, vector<8x32xf32>
    tpu.vector_store %arg14[%536, %c0_123], %535 {strides = array<i32>} : memref<128x32xf32, #tpu.memory_space<vmem>>, vector<8x32xf32>,
    %c3_i32_124 = arith.constant 3 : i32
    %c8_i32_125 = arith.constant 8 : i32
    %538 = arith.muli %c3_i32_124, %c8_i32_125 : i32
    %539 = tpu.assume_multiple %538, 8 : i32
    %540 = arith.index_cast %539 : i32 to index
    %c0_126 = arith.constant 0 : index
    %541 = vector.load %arg13[%540, %c0_126] : memref<128x96xf32, #tpu.memory_space<vmem>>, vector<8x96xf32>
    %542 = arith.truncf %535 : vector<8x32xf32> to vector<8x32xbf16>
    %cst_127 = arith.constant dense<0.000000e+00> : vector<8x96xf32>
    %543 = tpu.matmul %542, %452, %cst_127 {dimension_numbers = #tpu.dot_dimension_numbers<[1], [0], [0], [1], [0, 0, 1, 1], [], []>} : vector<8x32xbf16>, vector<32x96xbf16>, vector<8x96xf32> -> vector<8x96xf32>
    %544 = vector.extract_strided_slice %541 {offsets = [0, 0], sizes = [8, 64], strides = [1, 1]} : vector<8x96xf32> to vector<8x64xf32>
    %545 = vector.extract_strided_slice %543 {offsets = [0, 0], sizes = [8, 64], strides = [1, 1]} : vector<8x96xf32> to vector<8x64xf32>
    %546 = arith.addf %544, %545 : vector<8x64xf32>
    %547 = arith.negf %546 : vector<8x64xf32>
    %548 = math.exp %547 : vector<8x64xf32>
    %cst_128 = arith.constant 1.000000e+00 : f32
    %549 = vector.broadcast %cst_128 : f32 to vector<8x64xf32>
    %550 = arith.addf %549, %548 : vector<8x64xf32>
    %551 = arith.divf %549, %550 : vector<8x64xf32>
    %552 = vector.extract_strided_slice %551 {offsets = [0, 0], sizes = [8, 32], strides = [1, 1]} : vector<8x64xf32> to vector<8x32xf32>
    %553 = vector.extract_strided_slice %551 {offsets = [0, 32], sizes = [8, 32], strides = [1, 1]} : vector<8x64xf32> to vector<8x32xf32>
    %554 = vector.extract_strided_slice %541 {offsets = [0, 64], sizes = [8, 32], strides = [1, 1]} : vector<8x96xf32> to vector<8x32xf32>
    %555 = vector.extract_strided_slice %543 {offsets = [0, 64], sizes = [8, 32], strides = [1, 1]} : vector<8x96xf32> to vector<8x32xf32>
    %556 = arith.addf %555, %455 : vector<8x32xf32>
    %557 = arith.mulf %552, %556 : vector<8x32xf32>
    %558 = arith.addf %554, %557 : vector<8x32xf32>
    %559 = math.tanh %558 : vector<8x32xf32>
    %560 = arith.subf %535, %559 : vector<8x32xf32>
    %561 = arith.mulf %553, %560 : vector<8x32xf32>
    %562 = arith.addf %559, %561 : vector<8x32xf32>
    %563 = arith.index_cast %539 : i32 to index
    %c0_129 = arith.constant 0 : index
    %564 = vector.load %arg14[%563, %c0_129] : memref<128x32xf32, #tpu.memory_space<vmem>>, vector<8x32xf32>
    tpu.vector_store %arg14[%563, %c0_129], %562 {strides = array<i32>} : memref<128x32xf32, #tpu.memory_space<vmem>>, vector<8x32xf32>,
    %c4_i32_130 = arith.constant 4 : i32
    %c8_i32_131 = arith.constant 8 : i32
    %565 = arith.muli %c4_i32_130, %c8_i32_131 : i32
    %566 = tpu.assume_multiple %565, 8 : i32
    %567 = arith.index_cast %566 : i32 to index
    %c0_132 = arith.constant 0 : index
    %568 = vector.load %arg13[%567, %c0_132] : memref<128x96xf32, #tpu.memory_space<vmem>>, vector<8x96xf32>
    %569 = arith.truncf %562 : vector<8x32xf32> to vector<8x32xbf16>
    %cst_133 = arith.constant dense<0.000000e+00> : vector<8x96xf32>
    %570 = tpu.matmul %569, %452, %cst_133 {dimension_numbers = #tpu.dot_dimension_numbers<[1], [0], [0], [1], [0, 0, 1, 1], [], []>} : vector<8x32xbf16>, vector<32x96xbf16>, vector<8x96xf32> -> vector<8x96xf32>
    %571 = vector.extract_strided_slice %568 {offsets = [0, 0], sizes = [8, 64], strides = [1, 1]} : vector<8x96xf32> to vector<8x64xf32>
    %572 = vector.extract_strided_slice %570 {offsets = [0, 0], sizes = [8, 64], strides = [1, 1]} : vector<8x96xf32> to vector<8x64xf32>
    %573 = arith.addf %571, %572 : vector<8x64xf32>
    %574 = arith.negf %573 : vector<8x64xf32>
    %575 = math.exp %574 : vector<8x64xf32>
    %cst_134 = arith.constant 1.000000e+00 : f32
    %576 = vector.broadcast %cst_134 : f32 to vector<8x64xf32>
    %577 = arith.addf %576, %575 : vector<8x64xf32>
    %578 = arith.divf %576, %577 : vector<8x64xf32>
    %579 = vector.extract_strided_slice %578 {offsets = [0, 0], sizes = [8, 32], strides = [1, 1]} : vector<8x64xf32> to vector<8x32xf32>
    %580 = vector.extract_strided_slice %578 {offsets = [0, 32], sizes = [8, 32], strides = [1, 1]} : vector<8x64xf32> to vector<8x32xf32>
    %581 = vector.extract_strided_slice %568 {offsets = [0, 64], sizes = [8, 32], strides = [1, 1]} : vector<8x96xf32> to vector<8x32xf32>
    %582 = vector.extract_strided_slice %570 {offsets = [0, 64], sizes = [8, 32], strides = [1, 1]} : vector<8x96xf32> to vector<8x32xf32>
    %583 = arith.addf %582, %455 : vector<8x32xf32>
    %584 = arith.mulf %579, %583 : vector<8x32xf32>
    %585 = arith.addf %581, %584 : vector<8x32xf32>
    %586 = math.tanh %585 : vector<8x32xf32>
    %587 = arith.subf %562, %586 : vector<8x32xf32>
    %588 = arith.mulf %580, %587 : vector<8x32xf32>
    %589 = arith.addf %586, %588 : vector<8x32xf32>
    %590 = arith.index_cast %566 : i32 to index
    %c0_135 = arith.constant 0 : index
    %591 = vector.load %arg14[%590, %c0_135] : memref<128x32xf32, #tpu.memory_space<vmem>>, vector<8x32xf32>
    tpu.vector_store %arg14[%590, %c0_135], %589 {strides = array<i32>} : memref<128x32xf32, #tpu.memory_space<vmem>>, vector<8x32xf32>,
    %c5_i32_136 = arith.constant 5 : i32
    %c8_i32_137 = arith.constant 8 : i32
    %592 = arith.muli %c5_i32_136, %c8_i32_137 : i32
    %593 = tpu.assume_multiple %592, 8 : i32
    %594 = arith.index_cast %593 : i32 to index
    %c0_138 = arith.constant 0 : index
    %595 = vector.load %arg13[%594, %c0_138] : memref<128x96xf32, #tpu.memory_space<vmem>>, vector<8x96xf32>
    %596 = arith.truncf %589 : vector<8x32xf32> to vector<8x32xbf16>
    %cst_139 = arith.constant dense<0.000000e+00> : vector<8x96xf32>
    %597 = tpu.matmul %596, %452, %cst_139 {dimension_numbers = #tpu.dot_dimension_numbers<[1], [0], [0], [1], [0, 0, 1, 1], [], []>} : vector<8x32xbf16>, vector<32x96xbf16>, vector<8x96xf32> -> vector<8x96xf32>
    %598 = vector.extract_strided_slice %595 {offsets = [0, 0], sizes = [8, 64], strides = [1, 1]} : vector<8x96xf32> to vector<8x64xf32>
    %599 = vector.extract_strided_slice %597 {offsets = [0, 0], sizes = [8, 64], strides = [1, 1]} : vector<8x96xf32> to vector<8x64xf32>
    %600 = arith.addf %598, %599 : vector<8x64xf32>
    %601 = arith.negf %600 : vector<8x64xf32>
    %602 = math.exp %601 : vector<8x64xf32>
    %cst_140 = arith.constant 1.000000e+00 : f32
    %603 = vector.broadcast %cst_140 : f32 to vector<8x64xf32>
    %604 = arith.addf %603, %602 : vector<8x64xf32>
    %605 = arith.divf %603, %604 : vector<8x64xf32>
    %606 = vector.extract_strided_slice %605 {offsets = [0, 0], sizes = [8, 32], strides = [1, 1]} : vector<8x64xf32> to vector<8x32xf32>
    %607 = vector.extract_strided_slice %605 {offsets = [0, 32], sizes = [8, 32], strides = [1, 1]} : vector<8x64xf32> to vector<8x32xf32>
    %608 = vector.extract_strided_slice %595 {offsets = [0, 64], sizes = [8, 32], strides = [1, 1]} : vector<8x96xf32> to vector<8x32xf32>
    %609 = vector.extract_strided_slice %597 {offsets = [0, 64], sizes = [8, 32], strides = [1, 1]} : vector<8x96xf32> to vector<8x32xf32>
    %610 = arith.addf %609, %455 : vector<8x32xf32>
    %611 = arith.mulf %606, %610 : vector<8x32xf32>
    %612 = arith.addf %608, %611 : vector<8x32xf32>
    %613 = math.tanh %612 : vector<8x32xf32>
    %614 = arith.subf %589, %613 : vector<8x32xf32>
    %615 = arith.mulf %607, %614 : vector<8x32xf32>
    %616 = arith.addf %613, %615 : vector<8x32xf32>
    %617 = arith.index_cast %593 : i32 to index
    %c0_141 = arith.constant 0 : index
    %618 = vector.load %arg14[%617, %c0_141] : memref<128x32xf32, #tpu.memory_space<vmem>>, vector<8x32xf32>
    tpu.vector_store %arg14[%617, %c0_141], %616 {strides = array<i32>} : memref<128x32xf32, #tpu.memory_space<vmem>>, vector<8x32xf32>,
    %c6_i32_142 = arith.constant 6 : i32
    %c8_i32_143 = arith.constant 8 : i32
    %619 = arith.muli %c6_i32_142, %c8_i32_143 : i32
    %620 = tpu.assume_multiple %619, 8 : i32
    %621 = arith.index_cast %620 : i32 to index
    %c0_144 = arith.constant 0 : index
    %622 = vector.load %arg13[%621, %c0_144] : memref<128x96xf32, #tpu.memory_space<vmem>>, vector<8x96xf32>
    %623 = arith.truncf %616 : vector<8x32xf32> to vector<8x32xbf16>
    %cst_145 = arith.constant dense<0.000000e+00> : vector<8x96xf32>
    %624 = tpu.matmul %623, %452, %cst_145 {dimension_numbers = #tpu.dot_dimension_numbers<[1], [0], [0], [1], [0, 0, 1, 1], [], []>} : vector<8x32xbf16>, vector<32x96xbf16>, vector<8x96xf32> -> vector<8x96xf32>
    %625 = vector.extract_strided_slice %622 {offsets = [0, 0], sizes = [8, 64], strides = [1, 1]} : vector<8x96xf32> to vector<8x64xf32>
    %626 = vector.extract_strided_slice %624 {offsets = [0, 0], sizes = [8, 64], strides = [1, 1]} : vector<8x96xf32> to vector<8x64xf32>
    %627 = arith.addf %625, %626 : vector<8x64xf32>
    %628 = arith.negf %627 : vector<8x64xf32>
    %629 = math.exp %628 : vector<8x64xf32>
    %cst_146 = arith.constant 1.000000e+00 : f32
    %630 = vector.broadcast %cst_146 : f32 to vector<8x64xf32>
    %631 = arith.addf %630, %629 : vector<8x64xf32>
    %632 = arith.divf %630, %631 : vector<8x64xf32>
    %633 = vector.extract_strided_slice %632 {offsets = [0, 0], sizes = [8, 32], strides = [1, 1]} : vector<8x64xf32> to vector<8x32xf32>
    %634 = vector.extract_strided_slice %632 {offsets = [0, 32], sizes = [8, 32], strides = [1, 1]} : vector<8x64xf32> to vector<8x32xf32>
    %635 = vector.extract_strided_slice %622 {offsets = [0, 64], sizes = [8, 32], strides = [1, 1]} : vector<8x96xf32> to vector<8x32xf32>
    %636 = vector.extract_strided_slice %624 {offsets = [0, 64], sizes = [8, 32], strides = [1, 1]} : vector<8x96xf32> to vector<8x32xf32>
    %637 = arith.addf %636, %455 : vector<8x32xf32>
    %638 = arith.mulf %633, %637 : vector<8x32xf32>
    %639 = arith.addf %635, %638 : vector<8x32xf32>
    %640 = math.tanh %639 : vector<8x32xf32>
    %641 = arith.subf %616, %640 : vector<8x32xf32>
    %642 = arith.mulf %634, %641 : vector<8x32xf32>
    %643 = arith.addf %640, %642 : vector<8x32xf32>
    %644 = arith.index_cast %620 : i32 to index
    %c0_147 = arith.constant 0 : index
    %645 = vector.load %arg14[%644, %c0_147] : memref<128x32xf32, #tpu.memory_space<vmem>>, vector<8x32xf32>
    tpu.vector_store %arg14[%644, %c0_147], %643 {strides = array<i32>} : memref<128x32xf32, #tpu.memory_space<vmem>>, vector<8x32xf32>,
    %c7_i32_148 = arith.constant 7 : i32
    %c8_i32_149 = arith.constant 8 : i32
    %646 = arith.muli %c7_i32_148, %c8_i32_149 : i32
    %647 = tpu.assume_multiple %646, 8 : i32
    %648 = arith.index_cast %647 : i32 to index
    %c0_150 = arith.constant 0 : index
    %649 = vector.load %arg13[%648, %c0_150] : memref<128x96xf32, #tpu.memory_space<vmem>>, vector<8x96xf32>
    %650 = arith.truncf %643 : vector<8x32xf32> to vector<8x32xbf16>
    %cst_151 = arith.constant dense<0.000000e+00> : vector<8x96xf32>
    %651 = tpu.matmul %650, %452, %cst_151 {dimension_numbers = #tpu.dot_dimension_numbers<[1], [0], [0], [1], [0, 0, 1, 1], [], []>} : vector<8x32xbf16>, vector<32x96xbf16>, vector<8x96xf32> -> vector<8x96xf32>
    %652 = vector.extract_strided_slice %649 {offsets = [0, 0], sizes = [8, 64], strides = [1, 1]} : vector<8x96xf32> to vector<8x64xf32>
    %653 = vector.extract_strided_slice %651 {offsets = [0, 0], sizes = [8, 64], strides = [1, 1]} : vector<8x96xf32> to vector<8x64xf32>
    %654 = arith.addf %652, %653 : vector<8x64xf32>
    %655 = arith.negf %654 : vector<8x64xf32>
    %656 = math.exp %655 : vector<8x64xf32>
    %cst_152 = arith.constant 1.000000e+00 : f32
    %657 = vector.broadcast %cst_152 : f32 to vector<8x64xf32>
    %658 = arith.addf %657, %656 : vector<8x64xf32>
    %659 = arith.divf %657, %658 : vector<8x64xf32>
    %660 = vector.extract_strided_slice %659 {offsets = [0, 0], sizes = [8, 32], strides = [1, 1]} : vector<8x64xf32> to vector<8x32xf32>
    %661 = vector.extract_strided_slice %659 {offsets = [0, 32], sizes = [8, 32], strides = [1, 1]} : vector<8x64xf32> to vector<8x32xf32>
    %662 = vector.extract_strided_slice %649 {offsets = [0, 64], sizes = [8, 32], strides = [1, 1]} : vector<8x96xf32> to vector<8x32xf32>
    %663 = vector.extract_strided_slice %651 {offsets = [0, 64], sizes = [8, 32], strides = [1, 1]} : vector<8x96xf32> to vector<8x32xf32>
    %664 = arith.addf %663, %455 : vector<8x32xf32>
    %665 = arith.mulf %660, %664 : vector<8x32xf32>
    %666 = arith.addf %662, %665 : vector<8x32xf32>
    %667 = math.tanh %666 : vector<8x32xf32>
    %668 = arith.subf %643, %667 : vector<8x32xf32>
    %669 = arith.mulf %661, %668 : vector<8x32xf32>
    %670 = arith.addf %667, %669 : vector<8x32xf32>
    %671 = arith.index_cast %647 : i32 to index
    %c0_153 = arith.constant 0 : index
    %672 = vector.load %arg14[%671, %c0_153] : memref<128x32xf32, #tpu.memory_space<vmem>>, vector<8x32xf32>
    tpu.vector_store %arg14[%671, %c0_153], %670 {strides = array<i32>} : memref<128x32xf32, #tpu.memory_space<vmem>>, vector<8x32xf32>,
    %c8_i32_154 = arith.constant 8 : i32
    %c8_i32_155 = arith.constant 8 : i32
    %673 = arith.muli %c8_i32_154, %c8_i32_155 : i32
    %674 = tpu.assume_multiple %673, 8 : i32
    %675 = arith.index_cast %674 : i32 to index
    %c0_156 = arith.constant 0 : index
    %676 = vector.load %arg13[%675, %c0_156] : memref<128x96xf32, #tpu.memory_space<vmem>>, vector<8x96xf32>
    %677 = arith.truncf %670 : vector<8x32xf32> to vector<8x32xbf16>
    %cst_157 = arith.constant dense<0.000000e+00> : vector<8x96xf32>
    %678 = tpu.matmul %677, %452, %cst_157 {dimension_numbers = #tpu.dot_dimension_numbers<[1], [0], [0], [1], [0, 0, 1, 1], [], []>} : vector<8x32xbf16>, vector<32x96xbf16>, vector<8x96xf32> -> vector<8x96xf32>
    %679 = vector.extract_strided_slice %676 {offsets = [0, 0], sizes = [8, 64], strides = [1, 1]} : vector<8x96xf32> to vector<8x64xf32>
    %680 = vector.extract_strided_slice %678 {offsets = [0, 0], sizes = [8, 64], strides = [1, 1]} : vector<8x96xf32> to vector<8x64xf32>
    %681 = arith.addf %679, %680 : vector<8x64xf32>
    %682 = arith.negf %681 : vector<8x64xf32>
    %683 = math.exp %682 : vector<8x64xf32>
    %cst_158 = arith.constant 1.000000e+00 : f32
    %684 = vector.broadcast %cst_158 : f32 to vector<8x64xf32>
    %685 = arith.addf %684, %683 : vector<8x64xf32>
    %686 = arith.divf %684, %685 : vector<8x64xf32>
    %687 = vector.extract_strided_slice %686 {offsets = [0, 0], sizes = [8, 32], strides = [1, 1]} : vector<8x64xf32> to vector<8x32xf32>
    %688 = vector.extract_strided_slice %686 {offsets = [0, 32], sizes = [8, 32], strides = [1, 1]} : vector<8x64xf32> to vector<8x32xf32>
    %689 = vector.extract_strided_slice %676 {offsets = [0, 64], sizes = [8, 32], strides = [1, 1]} : vector<8x96xf32> to vector<8x32xf32>
    %690 = vector.extract_strided_slice %678 {offsets = [0, 64], sizes = [8, 32], strides = [1, 1]} : vector<8x96xf32> to vector<8x32xf32>
    %691 = arith.addf %690, %455 : vector<8x32xf32>
    %692 = arith.mulf %687, %691 : vector<8x32xf32>
    %693 = arith.addf %689, %692 : vector<8x32xf32>
    %694 = math.tanh %693 : vector<8x32xf32>
    %695 = arith.subf %670, %694 : vector<8x32xf32>
    %696 = arith.mulf %688, %695 : vector<8x32xf32>
    %697 = arith.addf %694, %696 : vector<8x32xf32>
    %698 = arith.index_cast %674 : i32 to index
    %c0_159 = arith.constant 0 : index
    %699 = vector.load %arg14[%698, %c0_159] : memref<128x32xf32, #tpu.memory_space<vmem>>, vector<8x32xf32>
    tpu.vector_store %arg14[%698, %c0_159], %697 {strides = array<i32>} : memref<128x32xf32, #tpu.memory_space<vmem>>, vector<8x32xf32>,
    %c9_i32_160 = arith.constant 9 : i32
    %c8_i32_161 = arith.constant 8 : i32
    %700 = arith.muli %c9_i32_160, %c8_i32_161 : i32
    %701 = tpu.assume_multiple %700, 8 : i32
    %702 = arith.index_cast %701 : i32 to index
    %c0_162 = arith.constant 0 : index
    %703 = vector.load %arg13[%702, %c0_162] : memref<128x96xf32, #tpu.memory_space<vmem>>, vector<8x96xf32>
    %704 = arith.truncf %697 : vector<8x32xf32> to vector<8x32xbf16>
    %cst_163 = arith.constant dense<0.000000e+00> : vector<8x96xf32>
    %705 = tpu.matmul %704, %452, %cst_163 {dimension_numbers = #tpu.dot_dimension_numbers<[1], [0], [0], [1], [0, 0, 1, 1], [], []>} : vector<8x32xbf16>, vector<32x96xbf16>, vector<8x96xf32> -> vector<8x96xf32>
    %706 = vector.extract_strided_slice %703 {offsets = [0, 0], sizes = [8, 64], strides = [1, 1]} : vector<8x96xf32> to vector<8x64xf32>
    %707 = vector.extract_strided_slice %705 {offsets = [0, 0], sizes = [8, 64], strides = [1, 1]} : vector<8x96xf32> to vector<8x64xf32>
    %708 = arith.addf %706, %707 : vector<8x64xf32>
    %709 = arith.negf %708 : vector<8x64xf32>
    %710 = math.exp %709 : vector<8x64xf32>
    %cst_164 = arith.constant 1.000000e+00 : f32
    %711 = vector.broadcast %cst_164 : f32 to vector<8x64xf32>
    %712 = arith.addf %711, %710 : vector<8x64xf32>
    %713 = arith.divf %711, %712 : vector<8x64xf32>
    %714 = vector.extract_strided_slice %713 {offsets = [0, 0], sizes = [8, 32], strides = [1, 1]} : vector<8x64xf32> to vector<8x32xf32>
    %715 = vector.extract_strided_slice %713 {offsets = [0, 32], sizes = [8, 32], strides = [1, 1]} : vector<8x64xf32> to vector<8x32xf32>
    %716 = vector.extract_strided_slice %703 {offsets = [0, 64], sizes = [8, 32], strides = [1, 1]} : vector<8x96xf32> to vector<8x32xf32>
    %717 = vector.extract_strided_slice %705 {offsets = [0, 64], sizes = [8, 32], strides = [1, 1]} : vector<8x96xf32> to vector<8x32xf32>
    %718 = arith.addf %717, %455 : vector<8x32xf32>
    %719 = arith.mulf %714, %718 : vector<8x32xf32>
    %720 = arith.addf %716, %719 : vector<8x32xf32>
    %721 = math.tanh %720 : vector<8x32xf32>
    %722 = arith.subf %697, %721 : vector<8x32xf32>
    %723 = arith.mulf %715, %722 : vector<8x32xf32>
    %724 = arith.addf %721, %723 : vector<8x32xf32>
    %725 = arith.index_cast %701 : i32 to index
    %c0_165 = arith.constant 0 : index
    %726 = vector.load %arg14[%725, %c0_165] : memref<128x32xf32, #tpu.memory_space<vmem>>, vector<8x32xf32>
    tpu.vector_store %arg14[%725, %c0_165], %724 {strides = array<i32>} : memref<128x32xf32, #tpu.memory_space<vmem>>, vector<8x32xf32>,
    %c10_i32_166 = arith.constant 10 : i32
    %c8_i32_167 = arith.constant 8 : i32
    %727 = arith.muli %c10_i32_166, %c8_i32_167 : i32
    %728 = tpu.assume_multiple %727, 8 : i32
    %729 = arith.index_cast %728 : i32 to index
    %c0_168 = arith.constant 0 : index
    %730 = vector.load %arg13[%729, %c0_168] : memref<128x96xf32, #tpu.memory_space<vmem>>, vector<8x96xf32>
    %731 = arith.truncf %724 : vector<8x32xf32> to vector<8x32xbf16>
    %cst_169 = arith.constant dense<0.000000e+00> : vector<8x96xf32>
    %732 = tpu.matmul %731, %452, %cst_169 {dimension_numbers = #tpu.dot_dimension_numbers<[1], [0], [0], [1], [0, 0, 1, 1], [], []>} : vector<8x32xbf16>, vector<32x96xbf16>, vector<8x96xf32> -> vector<8x96xf32>
    %733 = vector.extract_strided_slice %730 {offsets = [0, 0], sizes = [8, 64], strides = [1, 1]} : vector<8x96xf32> to vector<8x64xf32>
    %734 = vector.extract_strided_slice %732 {offsets = [0, 0], sizes = [8, 64], strides = [1, 1]} : vector<8x96xf32> to vector<8x64xf32>
    %735 = arith.addf %733, %734 : vector<8x64xf32>
    %736 = arith.negf %735 : vector<8x64xf32>
    %737 = math.exp %736 : vector<8x64xf32>
    %cst_170 = arith.constant 1.000000e+00 : f32
    %738 = vector.broadcast %cst_170 : f32 to vector<8x64xf32>
    %739 = arith.addf %738, %737 : vector<8x64xf32>
    %740 = arith.divf %738, %739 : vector<8x64xf32>
    %741 = vector.extract_strided_slice %740 {offsets = [0, 0], sizes = [8, 32], strides = [1, 1]} : vector<8x64xf32> to vector<8x32xf32>
    %742 = vector.extract_strided_slice %740 {offsets = [0, 32], sizes = [8, 32], strides = [1, 1]} : vector<8x64xf32> to vector<8x32xf32>
    %743 = vector.extract_strided_slice %730 {offsets = [0, 64], sizes = [8, 32], strides = [1, 1]} : vector<8x96xf32> to vector<8x32xf32>
    %744 = vector.extract_strided_slice %732 {offsets = [0, 64], sizes = [8, 32], strides = [1, 1]} : vector<8x96xf32> to vector<8x32xf32>
    %745 = arith.addf %744, %455 : vector<8x32xf32>
    %746 = arith.mulf %741, %745 : vector<8x32xf32>
    %747 = arith.addf %743, %746 : vector<8x32xf32>
    %748 = math.tanh %747 : vector<8x32xf32>
    %749 = arith.subf %724, %748 : vector<8x32xf32>
    %750 = arith.mulf %742, %749 : vector<8x32xf32>
    %751 = arith.addf %748, %750 : vector<8x32xf32>
    %752 = arith.index_cast %728 : i32 to index
    %c0_171 = arith.constant 0 : index
    %753 = vector.load %arg14[%752, %c0_171] : memref<128x32xf32, #tpu.memory_space<vmem>>, vector<8x32xf32>
    tpu.vector_store %arg14[%752, %c0_171], %751 {strides = array<i32>} : memref<128x32xf32, #tpu.memory_space<vmem>>, vector<8x32xf32>,
    %c11_i32_172 = arith.constant 11 : i32
    %c8_i32_173 = arith.constant 8 : i32
    %754 = arith.muli %c11_i32_172, %c8_i32_173 : i32
    %755 = tpu.assume_multiple %754, 8 : i32
    %756 = arith.index_cast %755 : i32 to index
    %c0_174 = arith.constant 0 : index
    %757 = vector.load %arg13[%756, %c0_174] : memref<128x96xf32, #tpu.memory_space<vmem>>, vector<8x96xf32>
    %758 = arith.truncf %751 : vector<8x32xf32> to vector<8x32xbf16>
    %cst_175 = arith.constant dense<0.000000e+00> : vector<8x96xf32>
    %759 = tpu.matmul %758, %452, %cst_175 {dimension_numbers = #tpu.dot_dimension_numbers<[1], [0], [0], [1], [0, 0, 1, 1], [], []>} : vector<8x32xbf16>, vector<32x96xbf16>, vector<8x96xf32> -> vector<8x96xf32>
    %760 = vector.extract_strided_slice %757 {offsets = [0, 0], sizes = [8, 64], strides = [1, 1]} : vector<8x96xf32> to vector<8x64xf32>
    %761 = vector.extract_strided_slice %759 {offsets = [0, 0], sizes = [8, 64], strides = [1, 1]} : vector<8x96xf32> to vector<8x64xf32>
    %762 = arith.addf %760, %761 : vector<8x64xf32>
    %763 = arith.negf %762 : vector<8x64xf32>
    %764 = math.exp %763 : vector<8x64xf32>
    %cst_176 = arith.constant 1.000000e+00 : f32
    %765 = vector.broadcast %cst_176 : f32 to vector<8x64xf32>
    %766 = arith.addf %765, %764 : vector<8x64xf32>
    %767 = arith.divf %765, %766 : vector<8x64xf32>
    %768 = vector.extract_strided_slice %767 {offsets = [0, 0], sizes = [8, 32], strides = [1, 1]} : vector<8x64xf32> to vector<8x32xf32>
    %769 = vector.extract_strided_slice %767 {offsets = [0, 32], sizes = [8, 32], strides = [1, 1]} : vector<8x64xf32> to vector<8x32xf32>
    %770 = vector.extract_strided_slice %757 {offsets = [0, 64], sizes = [8, 32], strides = [1, 1]} : vector<8x96xf32> to vector<8x32xf32>
    %771 = vector.extract_strided_slice %759 {offsets = [0, 64], sizes = [8, 32], strides = [1, 1]} : vector<8x96xf32> to vector<8x32xf32>
    %772 = arith.addf %771, %455 : vector<8x32xf32>
    %773 = arith.mulf %768, %772 : vector<8x32xf32>
    %774 = arith.addf %770, %773 : vector<8x32xf32>
    %775 = math.tanh %774 : vector<8x32xf32>
    %776 = arith.subf %751, %775 : vector<8x32xf32>
    %777 = arith.mulf %769, %776 : vector<8x32xf32>
    %778 = arith.addf %775, %777 : vector<8x32xf32>
    %779 = arith.index_cast %755 : i32 to index
    %c0_177 = arith.constant 0 : index
    %780 = vector.load %arg14[%779, %c0_177] : memref<128x32xf32, #tpu.memory_space<vmem>>, vector<8x32xf32>
    tpu.vector_store %arg14[%779, %c0_177], %778 {strides = array<i32>} : memref<128x32xf32, #tpu.memory_space<vmem>>, vector<8x32xf32>,
    %c12_i32_178 = arith.constant 12 : i32
    %c8_i32_179 = arith.constant 8 : i32
    %781 = arith.muli %c12_i32_178, %c8_i32_179 : i32
    %782 = tpu.assume_multiple %781, 8 : i32
    %783 = arith.index_cast %782 : i32 to index
    %c0_180 = arith.constant 0 : index
    %784 = vector.load %arg13[%783, %c0_180] : memref<128x96xf32, #tpu.memory_space<vmem>>, vector<8x96xf32>
    %785 = arith.truncf %778 : vector<8x32xf32> to vector<8x32xbf16>
    %cst_181 = arith.constant dense<0.000000e+00> : vector<8x96xf32>
    %786 = tpu.matmul %785, %452, %cst_181 {dimension_numbers = #tpu.dot_dimension_numbers<[1], [0], [0], [1], [0, 0, 1, 1], [], []>} : vector<8x32xbf16>, vector<32x96xbf16>, vector<8x96xf32> -> vector<8x96xf32>
    %787 = vector.extract_strided_slice %784 {offsets = [0, 0], sizes = [8, 64], strides = [1, 1]} : vector<8x96xf32> to vector<8x64xf32>
    %788 = vector.extract_strided_slice %786 {offsets = [0, 0], sizes = [8, 64], strides = [1, 1]} : vector<8x96xf32> to vector<8x64xf32>
    %789 = arith.addf %787, %788 : vector<8x64xf32>
    %790 = arith.negf %789 : vector<8x64xf32>
    %791 = math.exp %790 : vector<8x64xf32>
    %cst_182 = arith.constant 1.000000e+00 : f32
    %792 = vector.broadcast %cst_182 : f32 to vector<8x64xf32>
    %793 = arith.addf %792, %791 : vector<8x64xf32>
    %794 = arith.divf %792, %793 : vector<8x64xf32>
    %795 = vector.extract_strided_slice %794 {offsets = [0, 0], sizes = [8, 32], strides = [1, 1]} : vector<8x64xf32> to vector<8x32xf32>
    %796 = vector.extract_strided_slice %794 {offsets = [0, 32], sizes = [8, 32], strides = [1, 1]} : vector<8x64xf32> to vector<8x32xf32>
    %797 = vector.extract_strided_slice %784 {offsets = [0, 64], sizes = [8, 32], strides = [1, 1]} : vector<8x96xf32> to vector<8x32xf32>
    %798 = vector.extract_strided_slice %786 {offsets = [0, 64], sizes = [8, 32], strides = [1, 1]} : vector<8x96xf32> to vector<8x32xf32>
    %799 = arith.addf %798, %455 : vector<8x32xf32>
    %800 = arith.mulf %795, %799 : vector<8x32xf32>
    %801 = arith.addf %797, %800 : vector<8x32xf32>
    %802 = math.tanh %801 : vector<8x32xf32>
    %803 = arith.subf %778, %802 : vector<8x32xf32>
    %804 = arith.mulf %796, %803 : vector<8x32xf32>
    %805 = arith.addf %802, %804 : vector<8x32xf32>
    %806 = arith.index_cast %782 : i32 to index
    %c0_183 = arith.constant 0 : index
    %807 = vector.load %arg14[%806, %c0_183] : memref<128x32xf32, #tpu.memory_space<vmem>>, vector<8x32xf32>
    tpu.vector_store %arg14[%806, %c0_183], %805 {strides = array<i32>} : memref<128x32xf32, #tpu.memory_space<vmem>>, vector<8x32xf32>,
    %c13_i32_184 = arith.constant 13 : i32
    %c8_i32_185 = arith.constant 8 : i32
    %808 = arith.muli %c13_i32_184, %c8_i32_185 : i32
    %809 = tpu.assume_multiple %808, 8 : i32
    %810 = arith.index_cast %809 : i32 to index
    %c0_186 = arith.constant 0 : index
    %811 = vector.load %arg13[%810, %c0_186] : memref<128x96xf32, #tpu.memory_space<vmem>>, vector<8x96xf32>
    %812 = arith.truncf %805 : vector<8x32xf32> to vector<8x32xbf16>
    %cst_187 = arith.constant dense<0.000000e+00> : vector<8x96xf32>
    %813 = tpu.matmul %812, %452, %cst_187 {dimension_numbers = #tpu.dot_dimension_numbers<[1], [0], [0], [1], [0, 0, 1, 1], [], []>} : vector<8x32xbf16>, vector<32x96xbf16>, vector<8x96xf32> -> vector<8x96xf32>
    %814 = vector.extract_strided_slice %811 {offsets = [0, 0], sizes = [8, 64], strides = [1, 1]} : vector<8x96xf32> to vector<8x64xf32>
    %815 = vector.extract_strided_slice %813 {offsets = [0, 0], sizes = [8, 64], strides = [1, 1]} : vector<8x96xf32> to vector<8x64xf32>
    %816 = arith.addf %814, %815 : vector<8x64xf32>
    %817 = arith.negf %816 : vector<8x64xf32>
    %818 = math.exp %817 : vector<8x64xf32>
    %cst_188 = arith.constant 1.000000e+00 : f32
    %819 = vector.broadcast %cst_188 : f32 to vector<8x64xf32>
    %820 = arith.addf %819, %818 : vector<8x64xf32>
    %821 = arith.divf %819, %820 : vector<8x64xf32>
    %822 = vector.extract_strided_slice %821 {offsets = [0, 0], sizes = [8, 32], strides = [1, 1]} : vector<8x64xf32> to vector<8x32xf32>
    %823 = vector.extract_strided_slice %821 {offsets = [0, 32], sizes = [8, 32], strides = [1, 1]} : vector<8x64xf32> to vector<8x32xf32>
    %824 = vector.extract_strided_slice %811 {offsets = [0, 64], sizes = [8, 32], strides = [1, 1]} : vector<8x96xf32> to vector<8x32xf32>
    %825 = vector.extract_strided_slice %813 {offsets = [0, 64], sizes = [8, 32], strides = [1, 1]} : vector<8x96xf32> to vector<8x32xf32>
    %826 = arith.addf %825, %455 : vector<8x32xf32>
    %827 = arith.mulf %822, %826 : vector<8x32xf32>
    %828 = arith.addf %824, %827 : vector<8x32xf32>
    %829 = math.tanh %828 : vector<8x32xf32>
    %830 = arith.subf %805, %829 : vector<8x32xf32>
    %831 = arith.mulf %823, %830 : vector<8x32xf32>
    %832 = arith.addf %829, %831 : vector<8x32xf32>
    %833 = arith.index_cast %809 : i32 to index
    %c0_189 = arith.constant 0 : index
    %834 = vector.load %arg14[%833, %c0_189] : memref<128x32xf32, #tpu.memory_space<vmem>>, vector<8x32xf32>
    tpu.vector_store %arg14[%833, %c0_189], %832 {strides = array<i32>} : memref<128x32xf32, #tpu.memory_space<vmem>>, vector<8x32xf32>,
    %c14_i32_190 = arith.constant 14 : i32
    %c8_i32_191 = arith.constant 8 : i32
    %835 = arith.muli %c14_i32_190, %c8_i32_191 : i32
    %836 = tpu.assume_multiple %835, 8 : i32
    %837 = arith.index_cast %836 : i32 to index
    %c0_192 = arith.constant 0 : index
    %838 = vector.load %arg13[%837, %c0_192] : memref<128x96xf32, #tpu.memory_space<vmem>>, vector<8x96xf32>
    %839 = arith.truncf %832 : vector<8x32xf32> to vector<8x32xbf16>
    %cst_193 = arith.constant dense<0.000000e+00> : vector<8x96xf32>
    %840 = tpu.matmul %839, %452, %cst_193 {dimension_numbers = #tpu.dot_dimension_numbers<[1], [0], [0], [1], [0, 0, 1, 1], [], []>} : vector<8x32xbf16>, vector<32x96xbf16>, vector<8x96xf32> -> vector<8x96xf32>
    %841 = vector.extract_strided_slice %838 {offsets = [0, 0], sizes = [8, 64], strides = [1, 1]} : vector<8x96xf32> to vector<8x64xf32>
    %842 = vector.extract_strided_slice %840 {offsets = [0, 0], sizes = [8, 64], strides = [1, 1]} : vector<8x96xf32> to vector<8x64xf32>
    %843 = arith.addf %841, %842 : vector<8x64xf32>
    %844 = arith.negf %843 : vector<8x64xf32>
    %845 = math.exp %844 : vector<8x64xf32>
    %cst_194 = arith.constant 1.000000e+00 : f32
    %846 = vector.broadcast %cst_194 : f32 to vector<8x64xf32>
    %847 = arith.addf %846, %845 : vector<8x64xf32>
    %848 = arith.divf %846, %847 : vector<8x64xf32>
    %849 = vector.extract_strided_slice %848 {offsets = [0, 0], sizes = [8, 32], strides = [1, 1]} : vector<8x64xf32> to vector<8x32xf32>
    %850 = vector.extract_strided_slice %848 {offsets = [0, 32], sizes = [8, 32], strides = [1, 1]} : vector<8x64xf32> to vector<8x32xf32>
    %851 = vector.extract_strided_slice %838 {offsets = [0, 64], sizes = [8, 32], strides = [1, 1]} : vector<8x96xf32> to vector<8x32xf32>
    %852 = vector.extract_strided_slice %840 {offsets = [0, 64], sizes = [8, 32], strides = [1, 1]} : vector<8x96xf32> to vector<8x32xf32>
    %853 = arith.addf %852, %455 : vector<8x32xf32>
    %854 = arith.mulf %849, %853 : vector<8x32xf32>
    %855 = arith.addf %851, %854 : vector<8x32xf32>
    %856 = math.tanh %855 : vector<8x32xf32>
    %857 = arith.subf %832, %856 : vector<8x32xf32>
    %858 = arith.mulf %850, %857 : vector<8x32xf32>
    %859 = arith.addf %856, %858 : vector<8x32xf32>
    %860 = arith.index_cast %836 : i32 to index
    %c0_195 = arith.constant 0 : index
    %861 = vector.load %arg14[%860, %c0_195] : memref<128x32xf32, #tpu.memory_space<vmem>>, vector<8x32xf32>
    tpu.vector_store %arg14[%860, %c0_195], %859 {strides = array<i32>} : memref<128x32xf32, #tpu.memory_space<vmem>>, vector<8x32xf32>,
    %c15_i32_196 = arith.constant 15 : i32
    %c8_i32_197 = arith.constant 8 : i32
    %862 = arith.muli %c15_i32_196, %c8_i32_197 : i32
    %863 = tpu.assume_multiple %862, 8 : i32
    %864 = arith.index_cast %863 : i32 to index
    %c0_198 = arith.constant 0 : index
    %865 = vector.load %arg13[%864, %c0_198] : memref<128x96xf32, #tpu.memory_space<vmem>>, vector<8x96xf32>
    %866 = arith.truncf %859 : vector<8x32xf32> to vector<8x32xbf16>
    %cst_199 = arith.constant dense<0.000000e+00> : vector<8x96xf32>
    %867 = tpu.matmul %866, %452, %cst_199 {dimension_numbers = #tpu.dot_dimension_numbers<[1], [0], [0], [1], [0, 0, 1, 1], [], []>} : vector<8x32xbf16>, vector<32x96xbf16>, vector<8x96xf32> -> vector<8x96xf32>
    %868 = vector.extract_strided_slice %865 {offsets = [0, 0], sizes = [8, 64], strides = [1, 1]} : vector<8x96xf32> to vector<8x64xf32>
    %869 = vector.extract_strided_slice %867 {offsets = [0, 0], sizes = [8, 64], strides = [1, 1]} : vector<8x96xf32> to vector<8x64xf32>
    %870 = arith.addf %868, %869 : vector<8x64xf32>
    %871 = arith.negf %870 : vector<8x64xf32>
    %872 = math.exp %871 : vector<8x64xf32>
    %cst_200 = arith.constant 1.000000e+00 : f32
    %873 = vector.broadcast %cst_200 : f32 to vector<8x64xf32>
    %874 = arith.addf %873, %872 : vector<8x64xf32>
    %875 = arith.divf %873, %874 : vector<8x64xf32>
    %876 = vector.extract_strided_slice %875 {offsets = [0, 0], sizes = [8, 32], strides = [1, 1]} : vector<8x64xf32> to vector<8x32xf32>
    %877 = vector.extract_strided_slice %875 {offsets = [0, 32], sizes = [8, 32], strides = [1, 1]} : vector<8x64xf32> to vector<8x32xf32>
    %878 = vector.extract_strided_slice %865 {offsets = [0, 64], sizes = [8, 32], strides = [1, 1]} : vector<8x96xf32> to vector<8x32xf32>
    %879 = vector.extract_strided_slice %867 {offsets = [0, 64], sizes = [8, 32], strides = [1, 1]} : vector<8x96xf32> to vector<8x32xf32>
    %880 = arith.addf %879, %455 : vector<8x32xf32>
    %881 = arith.mulf %876, %880 : vector<8x32xf32>
    %882 = arith.addf %878, %881 : vector<8x32xf32>
    %883 = math.tanh %882 : vector<8x32xf32>
    %884 = arith.subf %859, %883 : vector<8x32xf32>
    %885 = arith.mulf %877, %884 : vector<8x32xf32>
    %886 = arith.addf %883, %885 : vector<8x32xf32>
    %887 = arith.index_cast %863 : i32 to index
    %c0_201 = arith.constant 0 : index
    %888 = vector.load %arg14[%887, %c0_201] : memref<128x32xf32, #tpu.memory_space<vmem>>, vector<8x32xf32>
    tpu.vector_store %arg14[%887, %c0_201], %886 {strides = array<i32>} : memref<128x32xf32, #tpu.memory_space<vmem>>, vector<8x32xf32>,
    %c16_i32_202 = arith.constant 16 : i32
    %c0_203 = arith.constant 0 : index
    %c0_204 = arith.constant 0 : index
    %889 = vector.load %arg14[%c0_203, %c0_204] : memref<128x32xf32, #tpu.memory_space<vmem>>, vector<128x32xf32>
    %890 = arith.truncf %889 : vector<128x32xf32> to vector<128x32xbf16>
    %c0_205 = arith.constant 0 : index
    %c0_206 = arith.constant 0 : index
    %891 = vector.load %arg10[%c0_205, %c0_206] : memref<32x128xbf16, #tpu.memory_space<vmem>>, vector<32x128xbf16>
    %cst_207 = arith.constant dense<0.000000e+00> : vector<128x128xf32>
    %892 = tpu.matmul %890, %891, %cst_207 {dimension_numbers = #tpu.dot_dimension_numbers<[1], [0], [0], [1], [0, 0, 1, 1], [], []>} : vector<128x32xbf16>, vector<32x128xbf16>, vector<128x128xf32> -> vector<128x128xf32>
    %c0_208 = arith.constant 0 : index
    %c0_209 = arith.constant 0 : index
    %893 = vector.load %arg11[%c0_208, %c0_209] : memref<1x128xf32, #tpu.memory_space<vmem>>, vector<1x128xf32>
    %894 = vector.broadcast %893 : vector<1x128xf32> to vector<128x128xf32>
    %895 = arith.addf %892, %894 : vector<128x128xf32>
    %c0_210 = arith.constant 0 : index
    %c0_211 = arith.constant 0 : index
    %896 = vector.load %arg12[%c0_210, %c0_211] : memref<128x128xf32, #tpu.memory_space<vmem>>, vector<128x128xf32>
    tpu.vector_store %arg12[%c0_210, %c0_211], %895 {strides = array<i32>} : memref<128x128xf32, #tpu.memory_space<vmem>>, vector<128x128xf32>,
    return
  }
  func.func @transform_0(%arg0: i32) -> (i32, i32) {
    %c0_i32 = arith.constant 0 : i32
    %c0_i32_0 = arith.constant 0 : i32
    return %arg0, %c0_i32 : i32, i32
  }
  func.func @transform_1(%arg0: i32) -> (i32, i32) {
    %c0_i32 = arith.constant 0 : i32
    %c0_i32_0 = arith.constant 0 : i32
    %c0_i32_1 = arith.constant 0 : i32
    return %c0_i32, %c0_i32_0 : i32, i32
  }
  func.func @transform_2(%arg0: i32) -> (i32, i32) {
    %c0_i32 = arith.constant 0 : i32
    %c0_i32_0 = arith.constant 0 : i32
    %c0_i32_1 = arith.constant 0 : i32
    return %c0_i32, %c0_i32_0 : i32, i32
  }
  func.func @transform_3(%arg0: i32) -> (i32, i32) {
    %c0_i32 = arith.constant 0 : i32
    %c0_i32_0 = arith.constant 0 : i32
    %c0_i32_1 = arith.constant 0 : i32
    return %c0_i32, %c0_i32_0 : i32, i32
  }
  func.func @transform_4(%arg0: i32) -> (i32, i32) {
    %c0_i32 = arith.constant 0 : i32
    %c0_i32_0 = arith.constant 0 : i32
    %c0_i32_1 = arith.constant 0 : i32
    return %c0_i32, %c0_i32_0 : i32, i32
  }
  func.func @transform_5(%arg0: i32) -> (i32, i32) {
    %c0_i32 = arith.constant 0 : i32
    %c0_i32_0 = arith.constant 0 : i32
    %c0_i32_1 = arith.constant 0 : i32
    return %c0_i32, %c0_i32_0 : i32, i32
  }
  func.func @transform_6(%arg0: i32) -> (i32, i32) {
    %c0_i32 = arith.constant 0 : i32
    %c0_i32_0 = arith.constant 0 : i32
    %c0_i32_1 = arith.constant 0 : i32
    return %c0_i32, %c0_i32_0 : i32, i32
  }
  func.func @transform_7(%arg0: i32) -> (i32, i32) {
    %c0_i32 = arith.constant 0 : i32
    %c0_i32_0 = arith.constant 0 : i32
    %c0_i32_1 = arith.constant 0 : i32
    return %c0_i32, %c0_i32_0 : i32, i32
  }
  func.func @transform_8(%arg0: i32) -> (i32, i32) {
    %c0_i32 = arith.constant 0 : i32
    %c0_i32_0 = arith.constant 0 : i32
    %c0_i32_1 = arith.constant 0 : i32
    return %c0_i32, %c0_i32_0 : i32, i32
  }
  func.func @transform_9(%arg0: i32) -> (i32, i32) {
    %c0_i32 = arith.constant 0 : i32
    %c0_i32_0 = arith.constant 0 : i32
    %c0_i32_1 = arith.constant 0 : i32
    return %c0_i32, %c0_i32_0 : i32, i32
  }
  func.func @transform_10(%arg0: i32) -> (i32, i32) {
    %c0_i32 = arith.constant 0 : i32
    %c0_i32_0 = arith.constant 0 : i32
    %c0_i32_1 = arith.constant 0 : i32
    return %c0_i32, %c0_i32_0 : i32, i32
  }
  func.func @transform_11(%arg0: i32) -> (i32, i32) {
    %c0_i32 = arith.constant 0 : i32
    %c0_i32_0 = arith.constant 0 : i32
    return %arg0, %c0_i32 : i32, i32
  }
}

</mosaic_0001>

<llo_original>
// kernel: tpu_custom_call.1
$region0: #{tpu_custom_call.1}
  #allocation0 [shape = 'u32[]', space=smem, size = 0x4, offset = 0x4, fixed_abs, tag = 'smem constant byte address 0x4 - core index']
  #allocation1 [shape = 'u32[144,128]{1,0:T(1,128)}', space=vmem, size = 0x12000, scoped, tag = 'internal scratch']
  #allocation2 [shape = 'f32[128,96]{1,0:T(8,128)}', space=vmem, size = 0x10000, scoped, tag = 'scratch operand']
  #allocation3 [shape = 'f32[128,32]{1,0:T(8,128)}', space=vmem, size = 0x10000, scoped, tag = 'scratch operand']
  %s0 = inlined_call_operand.hbm [shape: bf16[128,16], index: 0, kind: input, shape index: {}]
  %s1 = inlined_call_operand.hbm [shape: bf16[16,96], index: 1, kind: input, shape index: {}]
  %s2 = inlined_call_operand.hbm [shape: bf16[32,96], index: 2, kind: input, shape index: {}]
  %s3 = inlined_call_operand.hbm [shape: f32[1,96], index: 3, kind: input, shape index: {}]
  %s4 = inlined_call_operand.hbm [shape: f32[1,32], index: 4, kind: input, shape index: {}]
  %s5 = inlined_call_operand.hbm [shape: bf16[32,96], index: 5, kind: input, shape index: {}]
  %s6 = inlined_call_operand.hbm [shape: bf16[32,96], index: 6, kind: input, shape index: {}]
  %s7 = inlined_call_operand.hbm [shape: f32[1,96], index: 7, kind: input, shape index: {}]
  %s8 = inlined_call_operand.hbm [shape: f32[1,32], index: 8, kind: input, shape index: {}]
  %s9 = inlined_call_operand.hbm [shape: bf16[32,128], index: 9, kind: input, shape index: {}]
  %s10 = inlined_call_operand.hbm [shape: f32[1,128], index: 10, kind: input, shape index: {}]
  %s11 = inlined_call_operand.hbm [shape: f32[128,128], index: 11, kind: output, shape index: {}]
  %s12 = sld [smem:[#allocation0]]
  $region98: #{tpu_custom_call.1} parent=0
    _
  %s14 = ssub.s32 1, %s12
  %s15 = scalar_select 0, %s14, %s12
  $region1: #{tpu_custom_call.1} parent=0
    #allocation4 [shape = 'u8[32768]{0}', space=vmem, size = 0x8000, scoped, tag = 'input window, operand 0, single buffered']
    #allocation5 [shape = 's32[1]{0}', space=sflag, size = 0x4, scoped, tag = 'scoped memory for tpu_custom_call.1']
    #allocation6 [shape = 's32[1]{0}', space=sflag, size = 0x4, scoped, tag = 'scoped memory for tpu_custom_call.1']
    #allocation7 [shape = 'u8[4096]{0}', space=vmem, size = 0x1000, scoped, tag = 'input window, operand 1, single buffered']
    #allocation8 [shape = 's32[1]{0}', space=sflag, size = 0x4, scoped, tag = 'scoped memory for tpu_custom_call.1']
    #allocation9 [shape = 'u8[8192]{0}', space=vmem, size = 0x2000, scoped, tag = 'input window, operand 2, single buffered']
    #allocation10 [shape = 'u8[512]{0}', space=vmem, size = 0x400, scoped, tag = 'input window, operand 3, single buffered']
    #allocation11 [shape = 's32[1]{0}', space=sflag, size = 0x4, scoped, tag = 'scoped memory for tpu_custom_call.1']
    #allocation12 [shape = 'u8[512]{0}', space=vmem, size = 0x400, scoped, tag = 'input window, operand 4, single buffered']
    #allocation13 [shape = 'u8[8192]{0}', space=vmem, size = 0x2000, scoped, tag = 'input window, operand 5, single buffered']
    #allocation14 [shape = 's32[1]{0}', space=sflag, size = 0x4, scoped, tag = 'scoped memory for tpu_custom_call.1']
    #allocation15 [shape = 'u8[8192]{0}', space=vmem, size = 0x2000, scoped, tag = 'input window, operand 6, single buffered']
    #allocation16 [shape = 'u8[512]{0}', space=vmem, size = 0x400, scoped, tag = 'input window, operand 7, single buffered']
    #allocation17 [shape = 's32[1]{0}', space=sflag, size = 0x4, scoped, tag = 'scoped memory for tpu_custom_call.1']
    #allocation18 [shape = 'u8[512]{0}', space=vmem, size = 0x400, scoped, tag = 'input window, operand 8, single buffered']
    #allocation19 [shape = 'u8[8192]{0}', space=vmem, size = 0x2000, scoped, tag = 'input window, operand 9, single buffered']
    #allocation20 [shape = 's32[1]{0}', space=sflag, size = 0x4, scoped, tag = 'scoped memory for tpu_custom_call.1']
    #allocation21 [shape = 'u8[512]{0}', space=vmem, size = 0x400, scoped, tag = 'input window, operand 10, single buffered']
    #allocation22 [shape = 'u8[65536]{0}', space=vmem, size = 0x10000, scoped, tag = 'output window, operand 0, single buffered']
    %16 = vsyncpa [#allocation5], 0
    %17 = vsyncpa [#allocation8], 0
    %18 = vsyncpa [#allocation11], 0
    %19 = vsyncpa [#allocation14], 0
    %20 = vsyncpa [#allocation17], 0
    %21 = vsyncpa [#allocation20], 0
    %22 = vsyncpa [#allocation6], 0
    // Predicated region
    $region2: #{tpu_custom_call.1} parent=1 // pred_check
      _
    $region3: #{tpu_custom_call.1} parent=1 // pred_check_branch
      %24 = sbr.rel (0) target = $region5
    $region4: #{tpu_custom_call.1} parent=1 // pred_region
      %s26 = ssub.s32 1024, 1024
      %27 = vsyncadd [#allocation5], %s26
      %s28 = sshll.u32 [#allocation4], 4
      %s29 = int_to_ptr.vmem [resolvable:$true] %s28
      %34 = dma.hbm_to_vmem [thread:$0]  %s0, 1024, %s29, [#allocation5], 64, 64, 4
    $region5: #{tpu_custom_call.1} parent=1 // pred_fallthru
      _
    // Predicated region
    $region6: #{tpu_custom_call.1} parent=1 // pred_check
      _
    $region7: #{tpu_custom_call.1} parent=1 // pred_check_branch
      %36 = sbr.rel (0) target = $region9
    $region8: #{tpu_custom_call.1} parent=1 // pred_region
      %s38 = ssub.s32 128, 128
      %39 = vsyncadd [#allocation8], %s38
      %s40 = sshll.u32 [#allocation7], 4
      %s41 = int_to_ptr.vmem [resolvable:$true] %s40
      %46 = dma.hbm_to_vmem [thread:$0]  %s1, 128, %s41, [#allocation8], 64, 64, 4
    $region9: #{tpu_custom_call.1} parent=1 // pred_fallthru
      _
    // Predicated region
    $region10: #{tpu_custom_call.1} parent=1 // pred_check
      _
    $region11: #{tpu_custom_call.1} parent=1 // pred_check_branch
      %48 = sbr.rel (0) target = $region13
    $region12: #{tpu_custom_call.1} parent=1 // pred_region
      %s50 = ssub.s32 256, 256
      %51 = vsyncadd [#allocation8], %s50
      %s52 = sshll.u32 [#allocation9], 4
      %s53 = int_to_ptr.vmem [resolvable:$true] %s52
      %58 = dma.hbm_to_vmem [thread:$0]  %s2, 256, %s53, [#allocation8], 64, 64, 4
    $region13: #{tpu_custom_call.1} parent=1 // pred_fallthru
      _
    // Predicated region
    $region14: #{tpu_custom_call.1} parent=1 // pred_check
      _
    $region15: #{tpu_custom_call.1} parent=1 // pred_check_branch
      %60 = sbr.rel (0) target = $region17
    $region16: #{tpu_custom_call.1} parent=1 // pred_region
      %s62 = ssub.s32 16, 16
      %63 = vsyncadd [#allocation11], %s62
      %s65 = sshll.u32 [#allocation10], 4
      %s66 = int_to_ptr.vmem [resolvable:$true] %s65
      %68 = dma.hbm_to_vmem [thread:$0]  %s3, 16, %s66, [#allocation11]
    $region17: #{tpu_custom_call.1} parent=1 // pred_fallthru
      _
    // Predicated region
    $region18: #{tpu_custom_call.1} parent=1 // pred_check
      _
    $region19: #{tpu_custom_call.1} parent=1 // pred_check_branch
      %70 = sbr.rel (0) target = $region21
    $region20: #{tpu_custom_call.1} parent=1 // pred_region
      %s72 = ssub.s32 16, 16
      %73 = vsyncadd [#allocation11], %s72
      %s75 = sshll.u32 [#allocation12], 4
      %s76 = int_to_ptr.vmem [resolvable:$true] %s75
      %78 = dma.hbm_to_vmem [thread:$0]  %s4, 16, %s76, [#allocation11]
    $region21: #{tpu_custom_call.1} parent=1 // pred_fallthru
      _
    // Predicated region
    $region22: #{tpu_custom_call.1} parent=1 // pred_check
      _
    $region23: #{tpu_custom_call.1} parent=1 // pred_check_branch
      %80 = sbr.rel (0) target = $region25
    $region24: #{tpu_custom_call.1} parent=1 // pred_region
      %s82 = ssub.s32 256, 256
      %83 = vsyncadd [#allocation14], %s82
      %s84 = sshll.u32 [#allocation13], 4
      %s85 = int_to_ptr.vmem [resolvable:$true] %s84
      %90 = dma.hbm_to_vmem [thread:$0]  %s5, 256, %s85, [#allocation14], 64, 64, 4
    $region25: #{tpu_custom_call.1} parent=1 // pred_fallthru
      _
    // Predicated region
    $region26: #{tpu_custom_call.1} parent=1 // pred_check
      _
    $region27: #{tpu_custom_call.1} parent=1 // pred_check_branch
      %92 = sbr.rel (0) target = $region29
    $region28: #{tpu_custom_call.1} parent=1 // pred_region
      %s94 = ssub.s32 256, 256
      %95 = vsyncadd [#allocation14], %s94
      %s96 = sshll.u32 [#allocation15], 4
      %s97 = int_to_ptr.vmem [resolvable:$true] %s96
      %102 = dma.hbm_to_vmem [thread:$0]  %s6, 256, %s97, [#allocation14], 64, 64, 4
    $region29: #{tpu_custom_call.1} parent=1 // pred_fallthru
      _
    // Predicated region
    $region30: #{tpu_custom_call.1} parent=1 // pred_check
      _
    $region31: #{tpu_custom_call.1} parent=1 // pred_check_branch
      %104 = sbr.rel (0) target = $region33
    $region32: #{tpu_custom_call.1} parent=1 // pred_region
      %s106 = ssub.s32 16, 16
      %107 = vsyncadd [#allocation17], %s106
      %s109 = sshll.u32 [#allocation16], 4
      %s110 = int_to_ptr.vmem [resolvable:$true] %s109
      %112 = dma.hbm_to_vmem [thread:$0]  %s7, 16, %s110, [#allocation17]
    $region33: #{tpu_custom_call.1} parent=1 // pred_fallthru
      _
    // Predicated region
    $region34: #{tpu_custom_call.1} parent=1 // pred_check
      _
    $region35: #{tpu_custom_call.1} parent=1 // pred_check_branch
      %114 = sbr.rel (0) target = $region37
    $region36: #{tpu_custom_call.1} parent=1 // pred_region
      %s116 = ssub.s32 16, 16
      %117 = vsyncadd [#allocation17], %s116
      %s119 = sshll.u32 [#allocation18], 4
      %s120 = int_to_ptr.vmem [resolvable:$true] %s119
      %122 = dma.hbm_to_vmem [thread:$0]  %s8, 16, %s120, [#allocation17]
    $region37: #{tpu_custom_call.1} parent=1 // pred_fallthru
      _
    // Predicated region
    $region38: #{tpu_custom_call.1} parent=1 // pred_check
      _
    $region39: #{tpu_custom_call.1} parent=1 // pred_check_branch
      %124 = sbr.rel (0) target = $region41
    $region40: #{tpu_custom_call.1} parent=1 // pred_region
      %s126 = ssub.s32 256, 256
      %127 = vsyncadd [#allocation20], %s126
      %s128 = sshll.u32 [#allocation19], 4
      %s129 = int_to_ptr.vmem [resolvable:$true] %s128
      %134 = dma.hbm_to_vmem [thread:$0]  %s9, 256, %s129, [#allocation20], 64, 64, 4
    $region41: #{tpu_custom_call.1} parent=1 // pred_fallthru
      _
    // Predicated region
    $region42: #{tpu_custom_call.1} parent=1 // pred_check
      _
    $region43: #{tpu_custom_call.1} parent=1 // pred_check_branch
      %136 = sbr.rel (0) target = $region45
    $region44: #{tpu_custom_call.1} parent=1 // pred_region
      %s138 = ssub.s32 16, 16
      %139 = vsyncadd [#allocation20], %s138
      %s141 = sshll.u32 [#allocation21], 4
      %s142 = int_to_ptr.vmem [resolvable:$true] %s141
      %144 = dma.hbm_to_vmem [thread:$0]  %s10, 16, %s142, [#allocation20]
    $region45: #{tpu_custom_call.1} parent=1 // pred_fallthru
      _
    // Predicated region
    $region46: #{tpu_custom_call.1} parent=1 // pred_check
      _
    $region47: #{tpu_custom_call.1} parent=1 // pred_check_branch
      %146 = sbr.rel (0) target = $region49
    $region48: #{tpu_custom_call.1} parent=1 // pred_region
      %147 = dma.done [#allocation5], 1024
    $region49: #{tpu_custom_call.1} parent=1 // pred_fallthru
      _
    // Predicated region
    $region50: #{tpu_custom_call.1} parent=1 // pred_check
      _
    $region51: #{tpu_custom_call.1} parent=1 // pred_check_branch
      %149 = sbr.rel (0) target = $region53
    $region52: #{tpu_custom_call.1} parent=1 // pred_region
      %150 = dma.done [#allocation8], 128
    $region53: #{tpu_custom_call.1} parent=1 // pred_fallthru
      _
    // Predicated region
    $region54: #{tpu_custom_call.1} parent=1 // pred_check
      _
    $region55: #{tpu_custom_call.1} parent=1 // pred_check_branch
      %152 = sbr.rel (0) target = $region57
    $region56: #{tpu_custom_call.1} parent=1 // pred_region
      %153 = dma.done [#allocation8], 256
    $region57: #{tpu_custom_call.1} parent=1 // pred_fallthru
      _
    // Predicated region
    $region58: #{tpu_custom_call.1} parent=1 // pred_check
      _
    $region59: #{tpu_custom_call.1} parent=1 // pred_check_branch
      %155 = sbr.rel (0) target = $region61
    $region60: #{tpu_custom_call.1} parent=1 // pred_region
      %156 = dma.done [#allocation11], 16
    $region61: #{tpu_custom_call.1} parent=1 // pred_fallthru
      _
    // Predicated region
    $region62: #{tpu_custom_call.1} parent=1 // pred_check
      _
    $region63: #{tpu_custom_call.1} parent=1 // pred_check_branch
      %158 = sbr.rel (0) target = $region65
    $region64: #{tpu_custom_call.1} parent=1 // pred_region
      %159 = dma.done [#allocation11], 16
    $region65: #{tpu_custom_call.1} parent=1 // pred_fallthru
      _
    // Predicated region
    $region66: #{tpu_custom_call.1} parent=1 // pred_check
      _
    $region67: #{tpu_custom_call.1} parent=1 // pred_check_branch
      %161 = sbr.rel (0) target = $region69
    $region68: #{tpu_custom_call.1} parent=1 // pred_region
      %162 = dma.done [#allocation14], 256
    $region69: #{tpu_custom_call.1} parent=1 // pred_fallthru
      _
    // Predicated region
    $region70: #{tpu_custom_call.1} parent=1 // pred_check
      _
    $region71: #{tpu_custom_call.1} parent=1 // pred_check_branch
      %164 = sbr.rel (0) target = $region73
    $region72: #{tpu_custom_call.1} parent=1 // pred_region
      %165 = dma.done [#allocation14], 256
    $region73: #{tpu_custom_call.1} parent=1 // pred_fallthru
      _
    // Predicated region
    $region74: #{tpu_custom_call.1} parent=1 // pred_check
      _
    $region75: #{tpu_custom_call.1} parent=1 // pred_check_branch
      %167 = sbr.rel (0) target = $region77
    $region76: #{tpu_custom_call.1} parent=1 // pred_region
      %168 = dma.done [#allocation17], 16
    $region77: #{tpu_custom_call.1} parent=1 // pred_fallthru
      _
    // Predicated region
    $region78: #{tpu_custom_call.1} parent=1 // pred_check
      _
    $region79: #{tpu_custom_call.1} parent=1 // pred_check_branch
      %170 = sbr.rel (0) target = $region81
    $region80: #{tpu_custom_call.1} parent=1 // pred_region
      %171 = dma.done [#allocation17], 16
    $region81: #{tpu_custom_call.1} parent=1 // pred_fallthru
      _
    // Predicated region
    $region82: #{tpu_custom_call.1} parent=1 // pred_check
      _
    $region83: #{tpu_custom_call.1} parent=1 // pred_check_branch
      %173 = sbr.rel (0) target = $region85
    $region84: #{tpu_custom_call.1} parent=1 // pred_region
      %174 = dma.done [#allocation20], 256
    $region85: #{tpu_custom_call.1} parent=1 // pred_fallthru
      _
    // Predicated region
    $region86: #{tpu_custom_call.1} parent=1 // pred_check
      _
    $region87: #{tpu_custom_call.1} parent=1 // pred_check_branch
      %176 = sbr.rel (0) target = $region89
    $region88: #{tpu_custom_call.1} parent=1 // pred_region
      %177 = dma.done [#allocation20], 16
    $region89: #{tpu_custom_call.1} parent=1 // pred_fallthru
      _
    %v179 = vld [vmem:[#allocation4] sm:$0xf]
    %v180 = vld [vmem:[#allocation4 + $0x4] sm:$0xf]
    %v181 = vld [vmem:[#allocation4 + $0x8] sm:$0xf]
    %v182 = vld [vmem:[#allocation4 + $0xc] sm:$0xf]
    %v183 = vld [vmem:[#allocation4 + $0x10] sm:$0xf]
    %v184 = vld [vmem:[#allocation4 + $0x14] sm:$0xf]
    %v185 = vld [vmem:[#allocation4 + $0x18] sm:$0xf]
    %v186 = vld [vmem:[#allocation4 + $0x1c] sm:$0xf]
    %v187 = vld [vmem:[#allocation4 + $0x20] sm:$0xf]
    %v188 = vld [vmem:[#allocation4 + $0x24] sm:$0xf]
    %v189 = vld [vmem:[#allocation4 + $0x28] sm:$0xf]
    %v190 = vld [vmem:[#allocation4 + $0x2c] sm:$0xf]
    %v191 = vld [vmem:[#allocation4 + $0x30] sm:$0xf]
    %v192 = vld [vmem:[#allocation4 + $0x34] sm:$0xf]
    %v193 = vld [vmem:[#allocation4 + $0x38] sm:$0xf]
    %v194 = vld [vmem:[#allocation4 + $0x3c] sm:$0xf]
    %v195 = vld [vmem:[#allocation7] sm:$0xf]
    %v196 = vld [vmem:[#allocation7 + $0x4] sm:$0xf]
    %v197 = vld [vmem:[#allocation10] sm:$0x1]
    %v199 = vlaneseq
    %v200 = vshrl.u32 %v199, 7
    %v201 = vsub.s32 0, %v200
    %v202 = vrot.slane %v197, %v201
    %v220 = vunpack.c.l.b16 %v179
    %v221 = vunpack.c.l.b16 %v180
    %v222 = vunpack.c.l.b16 %v181
    %v223 = vunpack.c.l.b16 %v182
    %v224 = vunpack.c.l.b16 %v183
    %v225 = vunpack.c.l.b16 %v184
    %v226 = vunpack.c.l.b16 %v185
    %v227 = vunpack.c.l.b16 %v186
    %v228 = vunpack.c.l.b16 %v187
    %v229 = vunpack.c.l.b16 %v188
    %v230 = vunpack.c.l.b16 %v189
    %v231 = vunpack.c.l.b16 %v190
    %v232 = vunpack.c.l.b16 %v191
    %v233 = vunpack.c.l.b16 %v192
    %v234 = vunpack.c.l.b16 %v193
    %v235 = vunpack.c.l.b16 %v194
    %v236 = vpack.c.b16 %v221, %v220
    %v237 = vpack.c.b16 %v223, %v222
    %v238 = vpack.c.b16 %v225, %v224
    %v239 = vpack.c.b16 %v227, %v226
    %v240 = vpack.c.b16 %v229, %v228
    %v241 = vpack.c.b16 %v231, %v230
    %v242 = vpack.c.b16 %v233, %v232
    %v243 = vpack.c.b16 %v235, %v234
    %v246 = vunpack.c.l.b16 %v195
    %v247 = vunpack.c.l.b16 %v196
    %v248 = vpack.c.b16 %v247, %v246
    %vm250 = vcmask 130048
    %v252 = vsel %vm250, %v236, 0
    %v255 = vsel %vm250, %v237, 0
    %v258 = vsel %vm250, %v238, 0
    %v261 = vsel %vm250, %v239, 0
    %v264 = vsel %vm250, %v240, 0
    %v267 = vsel %vm250, %v241, 0
    %v270 = vsel %vm250, %v242, 0
    %v273 = vsel %vm250, %v243, 0
    %275 = vmatprep.subr.bf16.mxu0 0
    %276 = vmatpush1.bf16.msra.mxu0 %v248
    %277 = vmatprep.subr.bf16.mxu0 0
    %278 = vmatpush1.bf16.msra.mxu0 0
    %279 = vmatprep.subr.bf16.mxu0 0
    %280 = vmatpush1.bf16.msra.mxu0 0
    %281 = vmatprep.subr.bf16.mxu0 0
    %282 = vmatpush1.bf16.msra.mxu0 0
    %283 = vmatprep.subr.bf16.mxu0 0
    %284 = vmatpush1.bf16.msra.mxu0 0
    %285 = vmatprep.subr.bf16.mxu0 0
    %286 = vmatpush1.bf16.msra.mxu0 0
    %287 = vmatprep.subr.bf16.mxu0 0
    %288 = vmatpush1.bf16.msra.mxu0 0
    %289 = vmatprep.subr.bf16.mxu0 0
    %290 = vmatpush1.bf16.msra.mxu0 0
    %291 = vmatprep.subr.bf16.mxu0 0
    %292 = vmatpush1.bf16.msra.mxu0 0
    %293 = vmatprep.subr.bf16.mxu0 0
    %294 = vmatpush1.bf16.msra.mxu0 0
    %295 = vmatprep.subr.bf16.mxu0 0
    %296 = vmatpush1.bf16.msra.mxu0 0
    %297 = vmatprep.subr.bf16.mxu0 0
    %298 = vmatpush1.bf16.msra.mxu0 0
    %299 = vmatprep.subr.bf16.mxu0 0
    %300 = vmatpush1.bf16.msra.mxu0 0
    %301 = vmatprep.subr.bf16.mxu0 0
    %302 = vmatpush1.bf16.msra.mxu0 0
    %303 = vmatprep.subr.bf16.mxu0 0
    %304 = vmatpush1.bf16.msra.mxu0 0
    %305 = vmatprep.subr.bf16.mxu0 0
    %306 = vmatpush1.bf16.msra.mxu0 0
    %307 = vmatprep.mubr.bf16.mxu0 0
    %308 = vmatmul.mubr.bf16.gmra.mrb[0].mxu0 %v252
    %v309 = vpop.f32.mrb[0].mxu0
    %v310 = vadd.f32 %v202, %v309
    %v311 = vpop.f32.mrb[0].mxu0
    %v312 = vpop.f32.mrb[0].mxu0
    %v313 = vadd.f32 %v202, %v312
    %v314 = vpop.f32.mrb[0].mxu0
    %315 = vmatprep.mubr.bf16.mxu0 0
    %316 = vmatmul.mubr.bf16.gmra.mrb[0].mxu0 %v255
    %v317 = vpop.f32.mrb[0].mxu0
    %v318 = vadd.f32 %v202, %v317
    %v319 = vpop.f32.mrb[0].mxu0
    %v320 = vpop.f32.mrb[0].mxu0
    %v321 = vadd.f32 %v202, %v320
    %v322 = vpop.f32.mrb[0].mxu0
    %323 = vmatprep.mubr.bf16.mxu0 0
    %324 = vmatmul.mubr.bf16.gmra.mrb[0].mxu0 %v258
    %v325 = vpop.f32.mrb[0].mxu0
    %v326 = vadd.f32 %v202, %v325
    %v327 = vpop.f32.mrb[0].mxu0
    %v328 = vpop.f32.mrb[0].mxu0
    %v329 = vadd.f32 %v202, %v328
    %v330 = vpop.f32.mrb[0].mxu0
    %331 = vmatprep.mubr.bf16.mxu0 0
    %332 = vmatmul.mubr.bf16.gmra.mrb[0].mxu0 %v261
    %v333 = vpop.f32.mrb[0].mxu0
    %v334 = vadd.f32 %v202, %v333
    %v335 = vpop.f32.mrb[0].mxu0
    %v336 = vpop.f32.mrb[0].mxu0
    %v337 = vadd.f32 %v202, %v336
    %v338 = vpop.f32.mrb[0].mxu0
    %339 = vmatprep.mubr.bf16.mxu0 0
    %340 = vmatmul.mubr.bf16.gmra.mrb[0].mxu0 %v264
    %v341 = vpop.f32.mrb[0].mxu0
    %v342 = vadd.f32 %v202, %v341
    %v343 = vpop.f32.mrb[0].mxu0
    %v344 = vpop.f32.mrb[0].mxu0
    %v345 = vadd.f32 %v202, %v344
    %v346 = vpop.f32.mrb[0].mxu0
    %347 = vmatprep.mubr.bf16.mxu0 0
    %348 = vmatmul.mubr.bf16.gmra.mrb[0].mxu0 %v267
    %v349 = vpop.f32.mrb[0].mxu0
    %v350 = vadd.f32 %v202, %v349
    %v351 = vpop.f32.mrb[0].mxu0
    %v352 = vpop.f32.mrb[0].mxu0
    %v353 = vadd.f32 %v202, %v352
    %v354 = vpop.f32.mrb[0].mxu0
    %355 = vmatprep.mubr.bf16.mxu0 0
    %356 = vmatmul.mubr.bf16.gmra.mrb[0].mxu0 %v270
    %v357 = vpop.f32.mrb[0].mxu0
    %v358 = vadd.f32 %v202, %v357
    %v359 = vpop.f32.mrb[0].mxu0
    %v360 = vpop.f32.mrb[0].mxu0
    %v361 = vadd.f32 %v202, %v360
    %v362 = vpop.f32.mrb[0].mxu0
    %363 = vmatprep.mubr.bf16.mxu0 0
    %364 = vmatmul.mubr.bf16.gmra.mrb[0].mxu0 %v273
    %v365 = vpop.f32.mrb[0].mxu0
    %v366 = vadd.f32 %v202, %v365
    %v367 = vpop.f32.mrb[0].mxu0
    %v368 = vpop.f32.mrb[0].mxu0
    %v369 = vadd.f32 %v202, %v368
    %v370 = vpop.f32.mrb[0].mxu0
    %371 = vdwg.mxu0
    %vm372 = vcmask 785408
    %373 = vst.msk [vmem:[#allocation2] sm:$0xff] %vm372, %v310
    %374 = vst.msk [vmem:[#allocation2 + $0x8] sm:$0xff] %vm372, %v313
    %375 = vst.msk [vmem:[#allocation2 + $0x10] sm:$0xff] %vm372, %v318
    %376 = vst.msk [vmem:[#allocation2 + $0x18] sm:$0xff] %vm372, %v321
    %377 = vst.msk [vmem:[#allocation2 + $0x20] sm:$0xff] %vm372, %v326
    %378 = vst.msk [vmem:[#allocation2 + $0x28] sm:$0xff] %vm372, %v329
    %379 = vst.msk [vmem:[#allocation2 + $0x30] sm:$0xff] %vm372, %v334
    %380 = vst.msk [vmem:[#allocation2 + $0x38] sm:$0xff] %vm372, %v337
    %381 = vst.msk [vmem:[#allocation2 + $0x40] sm:$0xff] %vm372, %v342
    %382 = vst.msk [vmem:[#allocation2 + $0x48] sm:$0xff] %vm372, %v345
    %383 = vst.msk [vmem:[#allocation2 + $0x50] sm:$0xff] %vm372, %v350
    %384 = vst.msk [vmem:[#allocation2 + $0x58] sm:$0xff] %vm372, %v353
    %385 = vst.msk [vmem:[#allocation2 + $0x60] sm:$0xff] %vm372, %v358
    %386 = vst.msk [vmem:[#allocation2 + $0x68] sm:$0xff] %vm372, %v361
    %387 = vst.msk [vmem:[#allocation2 + $0x70] sm:$0xff] %vm372, %v366
    %388 = vst.msk [vmem:[#allocation2 + $0x78] sm:$0xff] %vm372, %v369
    %v389 = vld [vmem:[#allocation9] sm:$0xf]
    %v390 = vld [vmem:[#allocation9 + $0x4] sm:$0xf]
    %v391 = vld [vmem:[#allocation9 + $0x8] sm:$0xf]
    %v392 = vld [vmem:[#allocation9 + $0xc] sm:$0xf]
    %v393 = vld [vmem:[#allocation12] sm:$0x1]
    %v395 = vlaneseq
    %v396 = vshrl.u32 %v395, 7
    %v397 = vsub.s32 0, %v396
    %v398 = vrot.slane %v393, %v397
    %v399 = vld [vmem:[#allocation2] sm:$0xff]
    %v404 = vunpack.c.l.b16 %v389
    %v405 = vunpack.c.l.b16 %v390
    %v406 = vunpack.c.l.b16 %v391
    %v407 = vunpack.c.l.b16 %v392
    %v408 = vpack.c.b16 %v405, %v404
    %v409 = vpack.c.b16 %v407, %v406
    %vm412 = vcmask 261120
    %v414 = vsel %vm412, 0, 0
    %416 = vmatprep.subr.bf16.mxu0 0
    %417 = vmatpush1.bf16.msra.mxu0 %v408
    %418 = vmatprep.subr.bf16.mxu0 0
    %419 = vmatpush1.bf16.msra.mxu0 %v409
    %420 = vmatprep.subr.bf16.mxu0 0
    %421 = vmatpush1.bf16.msra.mxu0 0
    %422 = vmatprep.subr.bf16.mxu0 0
    %423 = vmatpush1.bf16.msra.mxu0 0
    %424 = vmatprep.subr.bf16.mxu0 0
    %425 = vmatpush1.bf16.msra.mxu0 0
    %426 = vmatprep.subr.bf16.mxu0 0
    %427 = vmatpush1.bf16.msra.mxu0 0
    %428 = vmatprep.subr.bf16.mxu0 0
    %429 = vmatpush1.bf16.msra.mxu0 0
    %430 = vmatprep.subr.bf16.mxu0 0
    %431 = vmatpush1.bf16.msra.mxu0 0
    %432 = vmatprep.subr.bf16.mxu0 0
    %433 = vmatpush1.bf16.msra.mxu0 0
    %434 = vmatprep.subr.bf16.mxu0 0
    %435 = vmatpush1.bf16.msra.mxu0 0
    %436 = vmatprep.subr.bf16.mxu0 0
    %437 = vmatpush1.bf16.msra.mxu0 0
    %438 = vmatprep.subr.bf16.mxu0 0
    %439 = vmatpush1.bf16.msra.mxu0 0
    %440 = vmatprep.subr.bf16.mxu0 0
    %441 = vmatpush1.bf16.msra.mxu0 0
    %442 = vmatprep.subr.bf16.mxu0 0
    %443 = vmatpush1.bf16.msra.mxu0 0
    %444 = vmatprep.subr.bf16.mxu0 0
    %445 = vmatpush1.bf16.msra.mxu0 0
    %446 = vmatprep.subr.bf16.mxu0 0
    %447 = vmatpush1.bf16.msra.mxu0 0
    %448 = vmatprep.mubr.bf16.mxu0 0
    %449 = vmatmul.mubr.bf16.gmra.mrb[0].mxu0 %v414
    %v450 = vpop.f32.mrb[0].mxu0
    %v451 = vadd.f32 0.0, %v450
    %v452 = vpop.f32.mrb[0].mxu0
    %v453 = vpop.f32.mrb[0].mxu0
    %v454 = vpop.f32.mrb[0].mxu0
    %455 = vdwg.mxu0
    %v456 = vadd.f32 %v399, %v451
    %v457 = vxor.u32 %v456, 2147483648
    %v458 = vmul.f32 %v457, 1.442695
    %v459 = vpow.pop %v458
    %v460 = vadd.f32 %v459, 1.0
    %v461 = vrcp.pop %v460
    %v462 = vmul.f32 1.0, %v461
    %463 = vrot.lane.b32.xlu0 %v398, 64
    %v464 = vpop.permute.xlu0 %463
    %v466 = vadd.f32 %v451, %v464
    %468 = vrot.lane.b32.xlu0 %v466, 64
    %v469 = vpop.permute.xlu0 %468
    %v471 = vmul.f32 %v462, %v469
    %473 = vrot.lane.b32.xlu0 %v471, 64
    %v474 = vpop.permute.xlu0 %473
    %v476 = vadd.f32 %v399, %v474
    %v477 = vtanh.pop %v476
    %v478 = vsub.f32 0.0, %v477
    %480 = vrot.lane.b32.xlu0 %v478, 96
    %v481 = vpop.permute.xlu0 %480
    %v483 = vmul.f32 %v462, %v481
    %485 = vrot.lane.b32.xlu0 %v483, 32
    %v486 = vpop.permute.xlu0 %485
    %v488 = vadd.f32 %v477, %v486
    %490 = vrot.lane.b32.xlu0 %v488, 64
    %v491 = vpop.permute.xlu0 %490
    %493 = vst.msk [vmem:[#allocation3] sm:$0xff] %vm412, %v491
    %s494 = scalar_lea.vmem [#allocation2], 8
    %v495 = vld [vmem:[%s494] sm:$0xff]
    %v496 = vpack.c.bf16 %v488, %v488
    %498 = vrot.lane.b32.xlu0 %v496, 64
    %v499 = vpop.permute.xlu0 %498
    %v501 = vsel %vm412, %v499, 0
    %503 = vmatprep.subr.bf16.mxu0 0
    %504 = vmatpush1.bf16.msra.mxu0 %v408
    %505 = vmatprep.subr.bf16.mxu0 0
    %506 = vmatpush1.bf16.msra.mxu0 %v409
    %507 = vmatprep.subr.bf16.mxu0 0
    %508 = vmatpush1.bf16.msra.mxu0 0
    %509 = vmatprep.subr.bf16.mxu0 0
    %510 = vmatpush1.bf16.msra.mxu0 0
    %511 = vmatprep.subr.bf16.mxu0 0
    %512 = vmatpush1.bf16.msra.mxu0 0
    %513 = vmatprep.subr.bf16.mxu0 0
    %514 = vmatpush1.bf16.msra.mxu0 0
    %515 = vmatprep.subr.bf16.mxu0 0
    %516 = vmatpush1.bf16.msra.mxu0 0
    %517 = vmatprep.subr.bf16.mxu0 0
    %518 = vmatpush1.bf16.msra.mxu0 0
    %519 = vmatprep.subr.bf16.mxu0 0
    %520 = vmatpush1.bf16.msra.mxu0 0
    %521 = vmatprep.subr.bf16.mxu0 0
    %522 = vmatpush1.bf16.msra.mxu0 0
    %523 = vmatprep.subr.bf16.mxu0 0
    %524 = vmatpush1.bf16.msra.mxu0 0
    %525 = vmatprep.subr.bf16.mxu0 0
    %526 = vmatpush1.bf16.msra.mxu0 0
    %527 = vmatprep.subr.bf16.mxu0 0
    %528 = vmatpush1.bf16.msra.mxu0 0
    %529 = vmatprep.subr.bf16.mxu0 0
    %530 = vmatpush1.bf16.msra.mxu0 0
    %531 = vmatprep.subr.bf16.mxu0 0
    %532 = vmatpush1.bf16.msra.mxu0 0
    %533 = vmatprep.subr.bf16.mxu0 0
    %534 = vmatpush1.bf16.msra.mxu0 0
    %535 = vmatprep.mubr.bf16.mxu0 0
    %536 = vmatmul.mubr.bf16.gmra.mrb[0].mxu0 %v501
    %v537 = vpop.f32.mrb[0].mxu0
    %v538 = vadd.f32 0.0, %v537
    %v539 = vpop.f32.mrb[0].mxu0
    %v540 = vpop.f32.mrb[0].mxu0
    %v541 = vpop.f32.mrb[0].mxu0
    %542 = vdwg.mxu0
    %v543 = vadd.f32 %v495, %v538
    %v544 = vxor.u32 %v543, 2147483648
    %v545 = vmul.f32 %v544, 1.442695
    %v546 = vpow.pop %v545
    %v547 = vadd.f32 %v546, 1.0
    %v548 = vrcp.pop %v547
    %v549 = vmul.f32 1.0, %v548
    %v550 = vadd.f32 %v538, %v464
    %552 = vrot.lane.b32.xlu0 %v550, 64
    %v553 = vpop.permute.xlu0 %552
    %v555 = vmul.f32 %v549, %v553
    %557 = vrot.lane.b32.xlu0 %v555, 64
    %v558 = vpop.permute.xlu0 %557
    %v560 = vadd.f32 %v495, %v558
    %v561 = vtanh.pop %v560
    %v562 = vsub.f32 %v488, %v561
    %564 = vrot.lane.b32.xlu0 %v562, 96
    %v565 = vpop.permute.xlu0 %564
    %v567 = vmul.f32 %v549, %v565
    %569 = vrot.lane.b32.xlu0 %v567, 32
    %v570 = vpop.permute.xlu0 %569
    %v572 = vadd.f32 %v561, %v570
    %574 = vrot.lane.b32.xlu0 %v572, 64
    %v575 = vpop.permute.xlu0 %574
    %s577 = scalar_lea.vmem [#allocation3], 8
    %578 = vst.msk [vmem:[%s577] sm:$0xff] %vm412, %v575
    %s579 = scalar_lea.vmem [#allocation2], 16
    %v580 = vld [vmem:[%s579] sm:$0xff]
    %v581 = vpack.c.bf16 %v572, %v572
    %583 = vrot.lane.b32.xlu0 %v581, 64
    %v584 = vpop.permute.xlu0 %583
    %v586 = vsel %vm412, %v584, 0
    %588 = vmatprep.subr.bf16.mxu0 0
    %589 = vmatpush1.bf16.msra.mxu0 %v408
    %590 = vmatprep.subr.bf16.mxu0 0
    %591 = vmatpush1.bf16.msra.mxu0 %v409
    %592 = vmatprep.subr.bf16.mxu0 0
    %593 = vmatpush1.bf16.msra.mxu0 0
    %594 = vmatprep.subr.bf16.mxu0 0
    %595 = vmatpush1.bf16.msra.mxu0 0
    %596 = vmatprep.subr.bf16.mxu0 0
    %597 = vmatpush1.bf16.msra.mxu0 0
    %598 = vmatprep.subr.bf16.mxu0 0
    %599 = vmatpush1.bf16.msra.mxu0 0
    %600 = vmatprep.subr.bf16.mxu0 0
    %601 = vmatpush1.bf16.msra.mxu0 0
    %602 = vmatprep.subr.bf16.mxu0 0
    %603 = vmatpush1.bf16.msra.mxu0 0
    %604 = vmatprep.subr.bf16.mxu0 0
    %605 = vmatpush1.bf16.msra.mxu0 0
    %606 = vmatprep.subr.bf16.mxu0 0
    %607 = vmatpush1.bf16.msra.mxu0 0
    %608 = vmatprep.subr.bf16.mxu0 0
    %609 = vmatpush1.bf16.msra.mxu0 0
    %610 = vmatprep.subr.bf16.mxu0 0
    %611 = vmatpush1.bf16.msra.mxu0 0
    %612 = vmatprep.subr.bf16.mxu0 0
    %613 = vmatpush1.bf16.msra.mxu0 0
    %614 = vmatprep.subr.bf16.mxu0 0
    %615 = vmatpush1.bf16.msra.mxu0 0
    %616 = vmatprep.subr.bf16.mxu0 0
    %617 = vmatpush1.bf16.msra.mxu0 0
    %618 = vmatprep.subr.bf16.mxu0 0
    %619 = vmatpush1.bf16.msra.mxu0 0
    %620 = vmatprep.mubr.bf16.mxu0 0
    %621 = vmatmul.mubr.bf16.gmra.mrb[0].mxu0 %v586
    %v622 = vpop.f32.mrb[0].mxu0
    %v623 = vadd.f32 0.0, %v622
    %v624 = vpop.f32.mrb[0].mxu0
    %v625 = vpop.f32.mrb[0].mxu0
    %v626 = vpop.f32.mrb[0].mxu0
    %627 = vdwg.mxu0
    %v628 = vadd.f32 %v580, %v623
    %v629 = vxor.u32 %v628, 2147483648
    %v630 = vmul.f32 %v629, 1.442695
    %v631 = vpow.pop %v630
    %v632 = vadd.f32 %v631, 1.0
    %v633 = vrcp.pop %v632
    %v634 = vmul.f32 1.0, %v633
    %v635 = vadd.f32 %v623, %v464
    %637 = vrot.lane.b32.xlu0 %v635, 64
    %v638 = vpop.permute.xlu0 %637
    %v640 = vmul.f32 %v634, %v638
    %642 = vrot.lane.b32.xlu0 %v640, 64
    %v643 = vpop.permute.xlu0 %642
    %v645 = vadd.f32 %v580, %v643
    %v646 = vtanh.pop %v645
    %v647 = vsub.f32 %v572, %v646
    %649 = vrot.lane.b32.xlu0 %v647, 96
    %v650 = vpop.permute.xlu0 %649
    %v652 = vmul.f32 %v634, %v650
    %654 = vrot.lane.b32.xlu0 %v652, 32
    %v655 = vpop.permute.xlu0 %654
    %v657 = vadd.f32 %v646, %v655
    %659 = vrot.lane.b32.xlu0 %v657, 64
    %v660 = vpop.permute.xlu0 %659
    %s662 = scalar_lea.vmem [#allocation3], 16
    %663 = vst.msk [vmem:[%s662] sm:$0xff] %vm412, %v660
    %s664 = scalar_lea.vmem [#allocation2], 24
    %v665 = vld [vmem:[%s664] sm:$0xff]
    %v666 = vpack.c.bf16 %v657, %v657
    %668 = vrot.lane.b32.xlu0 %v666, 64
    %v669 = vpop.permute.xlu0 %668
    %v671 = vsel %vm412, %v669, 0
    %673 = vmatprep.subr.bf16.mxu0 0
    %674 = vmatpush1.bf16.msra.mxu0 %v408
    %675 = vmatprep.subr.bf16.mxu0 0
    %676 = vmatpush1.bf16.msra.mxu0 %v409
    %677 = vmatprep.subr.bf16.mxu0 0
    %678 = vmatpush1.bf16.msra.mxu0 0
    %679 = vmatprep.subr.bf16.mxu0 0
    %680 = vmatpush1.bf16.msra.mxu0 0
    %681 = vmatprep.subr.bf16.mxu0 0
    %682 = vmatpush1.bf16.msra.mxu0 0
    %683 = vmatprep.subr.bf16.mxu0 0
    %684 = vmatpush1.bf16.msra.mxu0 0
    %685 = vmatprep.subr.bf16.mxu0 0
    %686 = vmatpush1.bf16.msra.mxu0 0
    %687 = vmatprep.subr.bf16.mxu0 0
    %688 = vmatpush1.bf16.msra.mxu0 0
    %689 = vmatprep.subr.bf16.mxu0 0
    %690 = vmatpush1.bf16.msra.mxu0 0
    %691 = vmatprep.subr.bf16.mxu0 0
    %692 = vmatpush1.bf16.msra.mxu0 0
    %693 = vmatprep.subr.bf16.mxu0 0
    %694 = vmatpush1.bf16.msra.mxu0 0
    %695 = vmatprep.subr.bf16.mxu0 0
    %696 = vmatpush1.bf16.msra.mxu0 0
    %697 = vmatprep.subr.bf16.mxu0 0
    %698 = vmatpush1.bf16.msra.mxu0 0
    %699 = vmatprep.subr.bf16.mxu0 0
    %700 = vmatpush1.bf16.msra.mxu0 0
    %701 = vmatprep.subr.bf16.mxu0 0
    %702 = vmatpush1.bf16.msra.mxu0 0
    %703 = vmatprep.subr.bf16.mxu0 0
    %704 = vmatpush1.bf16.msra.mxu0 0
    %705 = vmatprep.mubr.bf16.mxu0 0
    %706 = vmatmul.mubr.bf16.gmra.mrb[0].mxu0 %v671
    %v707 = vpop.f32.mrb[0].mxu0
    %v708 = vadd.f32 0.0, %v707
    %v709 = vpop.f32.mrb[0].mxu0
    %v710 = vpop.f32.mrb[0].mxu0
    %v711 = vpop.f32.mrb[0].mxu0
    %712 = vdwg.mxu0
    %v713 = vadd.f32 %v665, %v708
    %v714 = vxor.u32 %v713, 2147483648
    %v715 = vmul.f32 %v714, 1.442695
    %v716 = vpow.pop %v715
    %v717 = vadd.f32 %v716, 1.0
    %v718 = vrcp.pop %v717
    %v719 = vmul.f32 1.0, %v718
    %v720 = vadd.f32 %v708, %v464
    %722 = vrot.lane.b32.xlu0 %v720, 64
    %v723 = vpop.permute.xlu0 %722
    %v725 = vmul.f32 %v719, %v723
    %727 = vrot.lane.b32.xlu0 %v725, 64
    %v728 = vpop.permute.xlu0 %727
    %v730 = vadd.f32 %v665, %v728
    %v731 = vtanh.pop %v730
    %v732 = vsub.f32 %v657, %v731
    %734 = vrot.lane.b32.xlu0 %v732, 96
    %v735 = vpop.permute.xlu0 %734
    %v737 = vmul.f32 %v719, %v735
    %739 = vrot.lane.b32.xlu0 %v737, 32
    %v740 = vpop.permute.xlu0 %739
    %v742 = vadd.f32 %v731, %v740
    %744 = vrot.lane.b32.xlu0 %v742, 64
    %v745 = vpop.permute.xlu0 %744
    %s747 = scalar_lea.vmem [#allocation3], 24
    %748 = vst.msk [vmem:[%s747] sm:$0xff] %vm412, %v745
    %s749 = scalar_lea.vmem [#allocation2], 32
    %v750 = vld [vmem:[%s749] sm:$0xff]
    %v751 = vpack.c.bf16 %v742, %v742
    %753 = vrot.lane.b32.xlu0 %v751, 64
    %v754 = vpop.permute.xlu0 %753
    %v756 = vsel %vm412, %v754, 0
    %758 = vmatprep.subr.bf16.mxu0 0
    %759 = vmatpush1.bf16.msra.mxu0 %v408
    %760 = vmatprep.subr.bf16.mxu0 0
    %761 = vmatpush1.bf16.msra.mxu0 %v409
    %762 = vmatprep.subr.bf16.mxu0 0
    %763 = vmatpush1.bf16.msra.mxu0 0
    %764 = vmatprep.subr.bf16.mxu0 0
    %765 = vmatpush1.bf16.msra.mxu0 0
    %766 = vmatprep.subr.bf16.mxu0 0
    %767 = vmatpush1.bf16.msra.mxu0 0
    %768 = vmatprep.subr.bf16.mxu0 0
    %769 = vmatpush1.bf16.msra.mxu0 0
    %770 = vmatprep.subr.bf16.mxu0 0
    %771 = vmatpush1.bf16.msra.mxu0 0
    %772 = vmatprep.subr.bf16.mxu0 0
    %773 = vmatpush1.bf16.msra.mxu0 0
    %774 = vmatprep.subr.bf16.mxu0 0
    %775 = vmatpush1.bf16.msra.mxu0 0
    %776 = vmatprep.subr.bf16.mxu0 0
    %777 = vmatpush1.bf16.msra.mxu0 0
    %778 = vmatprep.subr.bf16.mxu0 0
    %779 = vmatpush1.bf16.msra.mxu0 0
    %780 = vmatprep.subr.bf16.mxu0 0
    %781 = vmatpush1.bf16.msra.mxu0 0
    %782 = vmatprep.subr.bf16.mxu0 0
    %783 = vmatpush1.bf16.msra.mxu0 0
    %784 = vmatprep.subr.bf16.mxu0 0
    %785 = vmatpush1.bf16.msra.mxu0 0
    %786 = vmatprep.subr.bf16.mxu0 0
    %787 = vmatpush1.bf16.msra.mxu0 0
    %788 = vmatprep.subr.bf16.mxu0 0
    %789 = vmatpush1.bf16.msra.mxu0 0
    %790 = vmatprep.mubr.bf16.mxu0 0
    %791 = vmatmul.mubr.bf16.gmra.mrb[0].mxu0 %v756
    %v792 = vpop.f32.mrb[0].mxu0
    %v793 = vadd.f32 0.0, %v792
    %v794 = vpop.f32.mrb[0].mxu0
    %v795 = vpop.f32.mrb[0].mxu0
    %v796 = vpop.f32.mrb[0].mxu0
    %797 = vdwg.mxu0
    %v798 = vadd.f32 %v750, %v793
    %v799 = vxor.u32 %v798, 2147483648
    %v800 = vmul.f32 %v799, 1.442695
    %v801 = vpow.pop %v800
    %v802 = vadd.f32 %v801, 1.0
    %v803 = vrcp.pop %v802
    %v804 = vmul.f32 1.0, %v803
    %v805 = vadd.f32 %v793, %v464
    %807 = vrot.lane.b32.xlu0 %v805, 64
    %v808 = vpop.permute.xlu0 %807
    %v810 = vmul.f32 %v804, %v808
    %812 = vrot.lane.b32.xlu0 %v810, 64
    %v813 = vpop.permute.xlu0 %812
    %v815 = vadd.f32 %v750, %v813
    %v816 = vtanh.pop %v815
    %v817 = vsub.f32 %v742, %v816
    %819 = vrot.lane.b32.xlu0 %v817, 96
    %v820 = vpop.permute.xlu0 %819
    %v822 = vmul.f32 %v804, %v820
    %824 = vrot.lane.b32.xlu0 %v822, 32
    %v825 = vpop.permute.xlu0 %824
    %v827 = vadd.f32 %v816, %v825
    %829 = vrot.lane.b32.xlu0 %v827, 64
    %v830 = vpop.permute.xlu0 %829
    %s832 = scalar_lea.vmem [#allocation3], 32
    %833 = vst.msk [vmem:[%s832] sm:$0xff] %vm412, %v830
    %s834 = scalar_lea.vmem [#allocation2], 40
    %v835 = vld [vmem:[%s834] sm:$0xff]
    %v836 = vpack.c.bf16 %v827, %v827
    %838 = vrot.lane.b32.xlu0 %v836, 64
    %v839 = vpop.permute.xlu0 %838
    %v841 = vsel %vm412, %v839, 0
    %843 = vmatprep.subr.bf16.mxu0 0
    %844 = vmatpush1.bf16.msra.mxu0 %v408
    %845 = vmatprep.subr.bf16.mxu0 0
    %846 = vmatpush1.bf16.msra.mxu0 %v409
    %847 = vmatprep.subr.bf16.mxu0 0
    %848 = vmatpush1.bf16.msra.mxu0 0
    %849 = vmatprep.subr.bf16.mxu0 0
    %850 = vmatpush1.bf16.msra.mxu0 0
    %851 = vmatprep.subr.bf16.mxu0 0
    %852 = vmatpush1.bf16.msra.mxu0 0
    %853 = vmatprep.subr.bf16.mxu0 0
    %854 = vmatpush1.bf16.msra.mxu0 0
    %855 = vmatprep.subr.bf16.mxu0 0
    %856 = vmatpush1.bf16.msra.mxu0 0
    %857 = vmatprep.subr.bf16.mxu0 0
    %858 = vmatpush1.bf16.msra.mxu0 0
    %859 = vmatprep.subr.bf16.mxu0 0
    %860 = vmatpush1.bf16.msra.mxu0 0
    %861 = vmatprep.subr.bf16.mxu0 0
    %862 = vmatpush1.bf16.msra.mxu0 0
    %863 = vmatprep.subr.bf16.mxu0 0
    %864 = vmatpush1.bf16.msra.mxu0 0
    %865 = vmatprep.subr.bf16.mxu0 0
    %866 = vmatpush1.bf16.msra.mxu0 0
    %867 = vmatprep.subr.bf16.mxu0 0
    %868 = vmatpush1.bf16.msra.mxu0 0
    %869 = vmatprep.subr.bf16.mxu0 0
    %870 = vmatpush1.bf16.msra.mxu0 0
    %871 = vmatprep.subr.bf16.mxu0 0
    %872 = vmatpush1.bf16.msra.mxu0 0
    %873 = vmatprep.subr.bf16.mxu0 0
    %874 = vmatpush1.bf16.msra.mxu0 0
    %875 = vmatprep.mubr.bf16.mxu0 0
    %876 = vmatmul.mubr.bf16.gmra.mrb[0].mxu0 %v841
    %v877 = vpop.f32.mrb[0].mxu0
    %v878 = vadd.f32 0.0, %v877
    %v879 = vpop.f32.mrb[0].mxu0
    %v880 = vpop.f32.mrb[0].mxu0
    %v881 = vpop.f32.mrb[0].mxu0
    %882 = vdwg.mxu0
    %v883 = vadd.f32 %v835, %v878
    %v884 = vxor.u32 %v883, 2147483648
    %v885 = vmul.f32 %v884, 1.442695
    %v886 = vpow.pop %v885
    %v887 = vadd.f32 %v886, 1.0
    %v888 = vrcp.pop %v887
    %v889 = vmul.f32 1.0, %v888
    %v890 = vadd.f32 %v878, %v464
    %892 = vrot.lane.b32.xlu0 %v890, 64
    %v893 = vpop.permute.xlu0 %892
    %v895 = vmul.f32 %v889, %v893
    %897 = vrot.lane.b32.xlu0 %v895, 64
    %v898 = vpop.permute.xlu0 %897
    %v900 = vadd.f32 %v835, %v898
    %v901 = vtanh.pop %v900
    %v902 = vsub.f32 %v827, %v901
    %904 = vrot.lane.b32.xlu0 %v902, 96
    %v905 = vpop.permute.xlu0 %904
    %v907 = vmul.f32 %v889, %v905
    %909 = vrot.lane.b32.xlu0 %v907, 32
    %v910 = vpop.permute.xlu0 %909
    %v912 = vadd.f32 %v901, %v910
    %914 = vrot.lane.b32.xlu0 %v912, 64
    %v915 = vpop.permute.xlu0 %914
    %s917 = scalar_lea.vmem [#allocation3], 40
    %918 = vst.msk [vmem:[%s917] sm:$0xff] %vm412, %v915
    %s919 = scalar_lea.vmem [#allocation2], 48
    %v920 = vld [vmem:[%s919] sm:$0xff]
    %v921 = vpack.c.bf16 %v912, %v912
    %923 = vrot.lane.b32.xlu0 %v921, 64
    %v924 = vpop.permute.xlu0 %923
    %v926 = vsel %vm412, %v924, 0
    %928 = vmatprep.subr.bf16.mxu0 0
    %929 = vmatpush1.bf16.msra.mxu0 %v408
    %930 = vmatprep.subr.bf16.mxu0 0
    %931 = vmatpush1.bf16.msra.mxu0 %v409
    %932 = vmatprep.subr.bf16.mxu0 0
    %933 = vmatpush1.bf16.msra.mxu0 0
    %934 = vmatprep.subr.bf16.mxu0 0
    %935 = vmatpush1.bf16.msra.mxu0 0
    %936 = vmatprep.subr.bf16.mxu0 0
    %937 = vmatpush1.bf16.msra.mxu0 0
    %938 = vmatprep.subr.bf16.mxu0 0
    %939 = vmatpush1.bf16.msra.mxu0 0
    %940 = vmatprep.subr.bf16.mxu0 0
    %941 = vmatpush1.bf16.msra.mxu0 0
    %942 = vmatprep.subr.bf16.mxu0 0
    %943 = vmatpush1.bf16.msra.mxu0 0
    %944 = vmatprep.subr.bf16.mxu0 0
    %945 = vmatpush1.bf16.msra.mxu0 0
    %946 = vmatprep.subr.bf16.mxu0 0
    %947 = vmatpush1.bf16.msra.mxu0 0
    %948 = vmatprep.subr.bf16.mxu0 0
    %949 = vmatpush1.bf16.msra.mxu0 0
    %950 = vmatprep.subr.bf16.mxu0 0
    %951 = vmatpush1.bf16.msra.mxu0 0
    %952 = vmatprep.subr.bf16.mxu0 0
    %953 = vmatpush1.bf16.msra.mxu0 0
    %954 = vmatprep.subr.bf16.mxu0 0
    %955 = vmatpush1.bf16.msra.mxu0 0
    %956 = vmatprep.subr.bf16.mxu0 0
    %957 = vmatpush1.bf16.msra.mxu0 0
    %958 = vmatprep.subr.bf16.mxu0 0
    %959 = vmatpush1.bf16.msra.mxu0 0
    %960 = vmatprep.mubr.bf16.mxu0 0
    %961 = vmatmul.mubr.bf16.gmra.mrb[0].mxu0 %v926
    %v962 = vpop.f32.mrb[0].mxu0
    %v963 = vadd.f32 0.0, %v962
    %v964 = vpop.f32.mrb[0].mxu0
    %v965 = vpop.f32.mrb[0].mxu0
    %v966 = vpop.f32.mrb[0].mxu0
    %967 = vdwg.mxu0
    %v968 = vadd.f32 %v920, %v963
    %v969 = vxor.u32 %v968, 2147483648
    %v970 = vmul.f32 %v969, 1.442695
    %v971 = vpow.pop %v970
    %v972 = vadd.f32 %v971, 1.0
    %v973 = vrcp.pop %v972
    %v974 = vmul.f32 1.0, %v973
    %v975 = vadd.f32 %v963, %v464
    %977 = vrot.lane.b32.xlu0 %v975, 64
    %v978 = vpop.permute.xlu0 %977
    %v980 = vmul.f32 %v974, %v978
    %982 = vrot.lane.b32.xlu0 %v980, 64
    %v983 = vpop.permute.xlu0 %982
    %v985 = vadd.f32 %v920, %v983
    %v986 = vtanh.pop %v985
    %v987 = vsub.f32 %v912, %v986
    %989 = vrot.lane.b32.xlu0 %v987, 96
    %v990 = vpop.permute.xlu0 %989
    %v992 = vmul.f32 %v974, %v990
    %994 = vrot.lane.b32.xlu0 %v992, 32
    %v995 = vpop.permute.xlu0 %994
    %v997 = vadd.f32 %v986, %v995
    %999 = vrot.lane.b32.xlu0 %v997, 64
    %v1000 = vpop.permute.xlu0 %999
    %s1002 = scalar_lea.vmem [#allocation3], 48
    %1003 = vst.msk [vmem:[%s1002] sm:$0xff] %vm412, %v1000
    %s1004 = scalar_lea.vmem [#allocation2], 56
    %v1005 = vld [vmem:[%s1004] sm:$0xff]
    %v1006 = vpack.c.bf16 %v997, %v997
    %1008 = vrot.lane.b32.xlu0 %v1006, 64
    %v1009 = vpop.permute.xlu0 %1008
    %v1011 = vsel %vm412, %v1009, 0
    %1013 = vmatprep.subr.bf16.mxu0 0
    %1014 = vmatpush1.bf16.msra.mxu0 %v408
    %1015 = vmatprep.subr.bf16.mxu0 0
    %1016 = vmatpush1.bf16.msra.mxu0 %v409
    %1017 = vmatprep.subr.bf16.mxu0 0
    %1018 = vmatpush1.bf16.msra.mxu0 0
    %1019 = vmatprep.subr.bf16.mxu0 0
    %1020 = vmatpush1.bf16.msra.mxu0 0
    %1021 = vmatprep.subr.bf16.mxu0 0
    %1022 = vmatpush1.bf16.msra.mxu0 0
    %1023 = vmatprep.subr.bf16.mxu0 0
    %1024 = vmatpush1.bf16.msra.mxu0 0
    %1025 = vmatprep.subr.bf16.mxu0 0
    %1026 = vmatpush1.bf16.msra.mxu0 0
    %1027 = vmatprep.subr.bf16.mxu0 0
    %1028 = vmatpush1.bf16.msra.mxu0 0
    %1029 = vmatprep.subr.bf16.mxu0 0
    %1030 = vmatpush1.bf16.msra.mxu0 0
    %1031 = vmatprep.subr.bf16.mxu0 0
    %1032 = vmatpush1.bf16.msra.mxu0 0
    %1033 = vmatprep.subr.bf16.mxu0 0
    %1034 = vmatpush1.bf16.msra.mxu0 0
    %1035 = vmatprep.subr.bf16.mxu0 0
    %1036 = vmatpush1.bf16.msra.mxu0 0
    %1037 = vmatprep.subr.bf16.mxu0 0
    %1038 = vmatpush1.bf16.msra.mxu0 0
    %1039 = vmatprep.subr.bf16.mxu0 0
    %1040 = vmatpush1.bf16.msra.mxu0 0
    %1041 = vmatprep.subr.bf16.mxu0 0
    %1042 = vmatpush1.bf16.msra.mxu0 0
    %1043 = vmatprep.subr.bf16.mxu0 0
    %1044 = vmatpush1.bf16.msra.mxu0 0
    %1045 = vmatprep.mubr.bf16.mxu0 0
    %1046 = vmatmul.mubr.bf16.gmra.mrb[0].mxu0 %v1011
    %v1047 = vpop.f32.mrb[0].mxu0
    %v1048 = vadd.f32 0.0, %v1047
    %v1049 = vpop.f32.mrb[0].mxu0
    %v1050 = vpop.f32.mrb[0].mxu0
    %v1051 = vpop.f32.mrb[0].mxu0
    %1052 = vdwg.mxu0
    %v1053 = vadd.f32 %v1005, %v1048
    %v1054 = vxor.u32 %v1053, 2147483648
    %v1055 = vmul.f32 %v1054, 1.442695
    %v1056 = vpow.pop %v1055
    %v1057 = vadd.f32 %v1056, 1.0
    %v1058 = vrcp.pop %v1057
    %v1059 = vmul.f32 1.0, %v1058
    %v1060 = vadd.f32 %v1048, %v464
    %1062 = vrot.lane.b32.xlu0 %v1060, 64
    %v1063 = vpop.permute.xlu0 %1062
    %v1065 = vmul.f32 %v1059, %v1063
    %1067 = vrot.lane.b32.xlu0 %v1065, 64
    %v1068 = vpop.permute.xlu0 %1067
    %v1070 = vadd.f32 %v1005, %v1068
    %v1071 = vtanh.pop %v1070
    %v1072 = vsub.f32 %v997, %v1071
    %1074 = vrot.lane.b32.xlu0 %v1072, 96
    %v1075 = vpop.permute.xlu0 %1074
    %v1077 = vmul.f32 %v1059, %v1075
    %1079 = vrot.lane.b32.xlu0 %v1077, 32
    %v1080 = vpop.permute.xlu0 %1079
    %v1082 = vadd.f32 %v1071, %v1080
    %1084 = vrot.lane.b32.xlu0 %v1082, 64
    %v1085 = vpop.permute.xlu0 %1084
    %s1087 = scalar_lea.vmem [#allocation3], 56
    %1088 = vst.msk [vmem:[%s1087] sm:$0xff] %vm412, %v1085
    %s1089 = scalar_lea.vmem [#allocation2], 64
    %v1090 = vld [vmem:[%s1089] sm:$0xff]
    %v1091 = vpack.c.bf16 %v1082, %v1082
    %1093 = vrot.lane.b32.xlu0 %v1091, 64
    %v1094 = vpop.permute.xlu0 %1093
    %v1096 = vsel %vm412, %v1094, 0
    %1098 = vmatprep.subr.bf16.mxu0 0
    %1099 = vmatpush1.bf16.msra.mxu0 %v408
    %1100 = vmatprep.subr.bf16.mxu0 0
    %1101 = vmatpush1.bf16.msra.mxu0 %v409
    %1102 = vmatprep.subr.bf16.mxu0 0
    %1103 = vmatpush1.bf16.msra.mxu0 0
    %1104 = vmatprep.subr.bf16.mxu0 0
    %1105 = vmatpush1.bf16.msra.mxu0 0
    %1106 = vmatprep.subr.bf16.mxu0 0
    %1107 = vmatpush1.bf16.msra.mxu0 0
    %1108 = vmatprep.subr.bf16.mxu0 0
    %1109 = vmatpush1.bf16.msra.mxu0 0
    %1110 = vmatprep.subr.bf16.mxu0 0
    %1111 = vmatpush1.bf16.msra.mxu0 0
    %1112 = vmatprep.subr.bf16.mxu0 0
    %1113 = vmatpush1.bf16.msra.mxu0 0
    %1114 = vmatprep.subr.bf16.mxu0 0
    %1115 = vmatpush1.bf16.msra.mxu0 0
    %1116 = vmatprep.subr.bf16.mxu0 0
    %1117 = vmatpush1.bf16.msra.mxu0 0
    %1118 = vmatprep.subr.bf16.mxu0 0
    %1119 = vmatpush1.bf16.msra.mxu0 0
    %1120 = vmatprep.subr.bf16.mxu0 0
    %1121 = vmatpush1.bf16.msra.mxu0 0
    %1122 = vmatprep.subr.bf16.mxu0 0
    %1123 = vmatpush1.bf16.msra.mxu0 0
    %1124 = vmatprep.subr.bf16.mxu0 0
    %1125 = vmatpush1.bf16.msra.mxu0 0
    %1126 = vmatprep.subr.bf16.mxu0 0
    %1127 = vmatpush1.bf16.msra.mxu0 0
    %1128 = vmatprep.subr.bf16.mxu0 0
    %1129 = vmatpush1.bf16.msra.mxu0 0
    %1130 = vmatprep.mubr.bf16.mxu0 0
    %1131 = vmatmul.mubr.bf16.gmra.mrb[0].mxu0 %v1096
    %v1132 = vpop.f32.mrb[0].mxu0
    %v1133 = vadd.f32 0.0, %v1132
    %v1134 = vpop.f32.mrb[0].mxu0
    %v1135 = vpop.f32.mrb[0].mxu0
    %v1136 = vpop.f32.mrb[0].mxu0
    %1137 = vdwg.mxu0
    %v1138 = vadd.f32 %v1090, %v1133
    %v1139 = vxor.u32 %v1138, 2147483648
    %v1140 = vmul.f32 %v1139, 1.442695
    %v1141 = vpow.pop %v1140
    %v1142 = vadd.f32 %v1141, 1.0
    %v1143 = vrcp.pop %v1142
    %v1144 = vmul.f32 1.0, %v1143
    %v1145 = vadd.f32 %v1133, %v464
    %1147 = vrot.lane.b32.xlu0 %v1145, 64
    %v1148 = vpop.permute.xlu0 %1147
    %v1150 = vmul.f32 %v1144, %v1148
    %1152 = vrot.lane.b32.xlu0 %v1150, 64
    %v1153 = vpop.permute.xlu0 %1152
    %v1155 = vadd.f32 %v1090, %v1153
    %v1156 = vtanh.pop %v1155
    %v1157 = vsub.f32 %v1082, %v1156
    %1159 = vrot.lane.b32.xlu0 %v1157, 96
    %v1160 = vpop.permute.xlu0 %1159
    %v1162 = vmul.f32 %v1144, %v1160
    %1164 = vrot.lane.b32.xlu0 %v1162, 32
    %v1165 = vpop.permute.xlu0 %1164
    %v1167 = vadd.f32 %v1156, %v1165
    %1169 = vrot.lane.b32.xlu0 %v1167, 64
    %v1170 = vpop.permute.xlu0 %1169
    %s1172 = scalar_lea.vmem [#allocation3], 64
    %1173 = vst.msk [vmem:[%s1172] sm:$0xff] %vm412, %v1170
    %s1174 = scalar_lea.vmem [#allocation2], 72
    %v1175 = vld [vmem:[%s1174] sm:$0xff]
    %v1176 = vpack.c.bf16 %v1167, %v1167
    %1178 = vrot.lane.b32.xlu0 %v1176, 64
    %v1179 = vpop.permute.xlu0 %1178
    %v1181 = vsel %vm412, %v1179, 0
    %1183 = vmatprep.subr.bf16.mxu0 0
    %1184 = vmatpush1.bf16.msra.mxu0 %v408
    %1185 = vmatprep.subr.bf16.mxu0 0
    %1186 = vmatpush1.bf16.msra.mxu0 %v409
    %1187 = vmatprep.subr.bf16.mxu0 0
    %1188 = vmatpush1.bf16.msra.mxu0 0
    %1189 = vmatprep.subr.bf16.mxu0 0
    %1190 = vmatpush1.bf16.msra.mxu0 0
    %1191 = vmatprep.subr.bf16.mxu0 0
    %1192 = vmatpush1.bf16.msra.mxu0 0
    %1193 = vmatprep.subr.bf16.mxu0 0
    %1194 = vmatpush1.bf16.msra.mxu0 0
    %1195 = vmatprep.subr.bf16.mxu0 0
    %1196 = vmatpush1.bf16.msra.mxu0 0
    %1197 = vmatprep.subr.bf16.mxu0 0
    %1198 = vmatpush1.bf16.msra.mxu0 0
    %1199 = vmatprep.subr.bf16.mxu0 0
    %1200 = vmatpush1.bf16.msra.mxu0 0
    %1201 = vmatprep.subr.bf16.mxu0 0
    %1202 = vmatpush1.bf16.msra.mxu0 0
    %1203 = vmatprep.subr.bf16.mxu0 0
    %1204 = vmatpush1.bf16.msra.mxu0 0
    %1205 = vmatprep.subr.bf16.mxu0 0
    %1206 = vmatpush1.bf16.msra.mxu0 0
    %1207 = vmatprep.subr.bf16.mxu0 0
    %1208 = vmatpush1.bf16.msra.mxu0 0
    %1209 = vmatprep.subr.bf16.mxu0 0
    %1210 = vmatpush1.bf16.msra.mxu0 0
    %1211 = vmatprep.subr.bf16.mxu0 0
    %1212 = vmatpush1.bf16.msra.mxu0 0
    %1213 = vmatprep.subr.bf16.mxu0 0
    %1214 = vmatpush1.bf16.msra.mxu0 0
    %1215 = vmatprep.mubr.bf16.mxu0 0
    %1216 = vmatmul.mubr.bf16.gmra.mrb[0].mxu0 %v1181
    %v1217 = vpop.f32.mrb[0].mxu0
    %v1218 = vadd.f32 0.0, %v1217
    %v1219 = vpop.f32.mrb[0].mxu0
    %v1220 = vpop.f32.mrb[0].mxu0
    %v1221 = vpop.f32.mrb[0].mxu0
    %1222 = vdwg.mxu0
    %v1223 = vadd.f32 %v1175, %v1218
    %v1224 = vxor.u32 %v1223, 2147483648
    %v1225 = vmul.f32 %v1224, 1.442695
    %v1226 = vpow.pop %v1225
    %v1227 = vadd.f32 %v1226, 1.0
    %v1228 = vrcp.pop %v1227
    %v1229 = vmul.f32 1.0, %v1228
    %v1230 = vadd.f32 %v1218, %v464
    %1232 = vrot.lane.b32.xlu0 %v1230, 64
    %v1233 = vpop.permute.xlu0 %1232
    %v1235 = vmul.f32 %v1229, %v1233
    %1237 = vrot.lane.b32.xlu0 %v1235, 64
    %v1238 = vpop.permute.xlu0 %1237
    %v1240 = vadd.f32 %v1175, %v1238
    %v1241 = vtanh.pop %v1240
    %v1242 = vsub.f32 %v1167, %v1241
    %1244 = vrot.lane.b32.xlu0 %v1242, 96
    %v1245 = vpop.permute.xlu0 %1244
    %v1247 = vmul.f32 %v1229, %v1245
    %1249 = vrot.lane.b32.xlu0 %v1247, 32
    %v1250 = vpop.permute.xlu0 %1249
    %v1252 = vadd.f32 %v1241, %v1250
    %1254 = vrot.lane.b32.xlu0 %v1252, 64
    %v1255 = vpop.permute.xlu0 %1254
    %s1257 = scalar_lea.vmem [#allocation3], 72
    %1258 = vst.msk [vmem:[%s1257] sm:$0xff] %vm412, %v1255
    %s1259 = scalar_lea.vmem [#allocation2], 80
    %v1260 = vld [vmem:[%s1259] sm:$0xff]
    %v1261 = vpack.c.bf16 %v1252, %v1252
    %1263 = vrot.lane.b32.xlu0 %v1261, 64
    %v1264 = vpop.permute.xlu0 %1263
    %v1266 = vsel %vm412, %v1264, 0
    %1268 = vmatprep.subr.bf16.mxu0 0
    %1269 = vmatpush1.bf16.msra.mxu0 %v408
    %1270 = vmatprep.subr.bf16.mxu0 0
    %1271 = vmatpush1.bf16.msra.mxu0 %v409
    %1272 = vmatprep.subr.bf16.mxu0 0
    %1273 = vmatpush1.bf16.msra.mxu0 0
    %1274 = vmatprep.subr.bf16.mxu0 0
    %1275 = vmatpush1.bf16.msra.mxu0 0
    %1276 = vmatprep.subr.bf16.mxu0 0
    %1277 = vmatpush1.bf16.msra.mxu0 0
    %1278 = vmatprep.subr.bf16.mxu0 0
    %1279 = vmatpush1.bf16.msra.mxu0 0
    %1280 = vmatprep.subr.bf16.mxu0 0
    %1281 = vmatpush1.bf16.msra.mxu0 0
    %1282 = vmatprep.subr.bf16.mxu0 0
    %1283 = vmatpush1.bf16.msra.mxu0 0
    %1284 = vmatprep.subr.bf16.mxu0 0
    %1285 = vmatpush1.bf16.msra.mxu0 0
    %1286 = vmatprep.subr.bf16.mxu0 0
    %1287 = vmatpush1.bf16.msra.mxu0 0
    %1288 = vmatprep.subr.bf16.mxu0 0
    %1289 = vmatpush1.bf16.msra.mxu0 0
    %1290 = vmatprep.subr.bf16.mxu0 0
    %1291 = vmatpush1.bf16.msra.mxu0 0
    %1292 = vmatprep.subr.bf16.mxu0 0
    %1293 = vmatpush1.bf16.msra.mxu0 0
    %1294 = vmatprep.subr.bf16.mxu0 0
    %1295 = vmatpush1.bf16.msra.mxu0 0
    %1296 = vmatprep.subr.bf16.mxu0 0
    %1297 = vmatpush1.bf16.msra.mxu0 0
    %1298 = vmatprep.subr.bf16.mxu0 0
    %1299 = vmatpush1.bf16.msra.mxu0 0
    %1300 = vmatprep.mubr.bf16.mxu0 0
    %1301 = vmatmul.mubr.bf16.gmra.mrb[0].mxu0 %v1266
    %v1302 = vpop.f32.mrb[0].mxu0
    %v1303 = vadd.f32 0.0, %v1302
    %v1304 = vpop.f32.mrb[0].mxu0
    %v1305 = vpop.f32.mrb[0].mxu0
    %v1306 = vpop.f32.mrb[0].mxu0
    %1307 = vdwg.mxu0
    %v1308 = vadd.f32 %v1260, %v1303
    %v1309 = vxor.u32 %v1308, 2147483648
    %v1310 = vmul.f32 %v1309, 1.442695
    %v1311 = vpow.pop %v1310
    %v1312 = vadd.f32 %v1311, 1.0
    %v1313 = vrcp.pop %v1312
    %v1314 = vmul.f32 1.0, %v1313
    %v1315 = vadd.f32 %v1303, %v464
    %1317 = vrot.lane.b32.xlu0 %v1315, 64
    %v1318 = vpop.permute.xlu0 %1317
    %v1320 = vmul.f32 %v1314, %v1318
    %1322 = vrot.lane.b32.xlu0 %v1320, 64
    %v1323 = vpop.permute.xlu0 %1322
    %v1325 = vadd.f32 %v1260, %v1323
    %v1326 = vtanh.pop %v1325
    %v1327 = vsub.f32 %v1252, %v1326
    %1329 = vrot.lane.b32.xlu0 %v1327, 96
    %v1330 = vpop.permute.xlu0 %1329
    %v1332 = vmul.f32 %v1314, %v1330
    %1334 = vrot.lane.b32.xlu0 %v1332, 32
    %v1335 = vpop.permute.xlu0 %1334
    %v1337 = vadd.f32 %v1326, %v1335
    %1339 = vrot.lane.b32.xlu0 %v1337, 64
    %v1340 = vpop.permute.xlu0 %1339
    %s1342 = scalar_lea.vmem [#allocation3], 80
    %1343 = vst.msk [vmem:[%s1342] sm:$0xff] %vm412, %v1340
    %s1344 = scalar_lea.vmem [#allocation2], 88
    %v1345 = vld [vmem:[%s1344] sm:$0xff]
    %v1346 = vpack.c.bf16 %v1337, %v1337
    %1348 = vrot.lane.b32.xlu0 %v1346, 64
    %v1349 = vpop.permute.xlu0 %1348
    %v1351 = vsel %vm412, %v1349, 0
    %1353 = vmatprep.subr.bf16.mxu0 0
    %1354 = vmatpush1.bf16.msra.mxu0 %v408
    %1355 = vmatprep.subr.bf16.mxu0 0
    %1356 = vmatpush1.bf16.msra.mxu0 %v409
    %1357 = vmatprep.subr.bf16.mxu0 0
    %1358 = vmatpush1.bf16.msra.mxu0 0
    %1359 = vmatprep.subr.bf16.mxu0 0
    %1360 = vmatpush1.bf16.msra.mxu0 0
    %1361 = vmatprep.subr.bf16.mxu0 0
    %1362 = vmatpush1.bf16.msra.mxu0 0
    %1363 = vmatprep.subr.bf16.mxu0 0
    %1364 = vmatpush1.bf16.msra.mxu0 0
    %1365 = vmatprep.subr.bf16.mxu0 0
    %1366 = vmatpush1.bf16.msra.mxu0 0
    %1367 = vmatprep.subr.bf16.mxu0 0
    %1368 = vmatpush1.bf16.msra.mxu0 0
    %1369 = vmatprep.subr.bf16.mxu0 0
    %1370 = vmatpush1.bf16.msra.mxu0 0
    %1371 = vmatprep.subr.bf16.mxu0 0
    %1372 = vmatpush1.bf16.msra.mxu0 0
    %1373 = vmatprep.subr.bf16.mxu0 0
    %1374 = vmatpush1.bf16.msra.mxu0 0
    %1375 = vmatprep.subr.bf16.mxu0 0
    %1376 = vmatpush1.bf16.msra.mxu0 0
    %1377 = vmatprep.subr.bf16.mxu0 0
    %1378 = vmatpush1.bf16.msra.mxu0 0
    %1379 = vmatprep.subr.bf16.mxu0 0
    %1380 = vmatpush1.bf16.msra.mxu0 0
    %1381 = vmatprep.subr.bf16.mxu0 0
    %1382 = vmatpush1.bf16.msra.mxu0 0
    %1383 = vmatprep.subr.bf16.mxu0 0
    %1384 = vmatpush1.bf16.msra.mxu0 0
    %1385 = vmatprep.mubr.bf16.mxu0 0
    %1386 = vmatmul.mubr.bf16.gmra.mrb[0].mxu0 %v1351
    %v1387 = vpop.f32.mrb[0].mxu0
    %v1388 = vadd.f32 0.0, %v1387
    %v1389 = vpop.f32.mrb[0].mxu0
    %v1390 = vpop.f32.mrb[0].mxu0
    %v1391 = vpop.f32.mrb[0].mxu0
    %1392 = vdwg.mxu0
    %v1393 = vadd.f32 %v1345, %v1388
    %v1394 = vxor.u32 %v1393, 2147483648
    %v1395 = vmul.f32 %v1394, 1.442695
    %v1396 = vpow.pop %v1395
    %v1397 = vadd.f32 %v1396, 1.0
    %v1398 = vrcp.pop %v1397
    %v1399 = vmul.f32 1.0, %v1398
    %v1400 = vadd.f32 %v1388, %v464
    %1402 = vrot.lane.b32.xlu0 %v1400, 64
    %v1403 = vpop.permute.xlu0 %1402
    %v1405 = vmul.f32 %v1399, %v1403
    %1407 = vrot.lane.b32.xlu0 %v1405, 64
    %v1408 = vpop.permute.xlu0 %1407
    %v1410 = vadd.f32 %v1345, %v1408
    %v1411 = vtanh.pop %v1410
    %v1412 = vsub.f32 %v1337, %v1411
    %1414 = vrot.lane.b32.xlu0 %v1412, 96
    %v1415 = vpop.permute.xlu0 %1414
    %v1417 = vmul.f32 %v1399, %v1415
    %1419 = vrot.lane.b32.xlu0 %v1417, 32
    %v1420 = vpop.permute.xlu0 %1419
    %v1422 = vadd.f32 %v1411, %v1420
    %1424 = vrot.lane.b32.xlu0 %v1422, 64
    %v1425 = vpop.permute.xlu0 %1424
    %s1427 = scalar_lea.vmem [#allocation3], 88
    %1428 = vst.msk [vmem:[%s1427] sm:$0xff] %vm412, %v1425
    %s1429 = scalar_lea.vmem [#allocation2], 96
    %v1430 = vld [vmem:[%s1429] sm:$0xff]
    %v1431 = vpack.c.bf16 %v1422, %v1422
    %1433 = vrot.lane.b32.xlu0 %v1431, 64
    %v1434 = vpop.permute.xlu0 %1433
    %v1436 = vsel %vm412, %v1434, 0
    %1438 = vmatprep.subr.bf16.mxu0 0
    %1439 = vmatpush1.bf16.msra.mxu0 %v408
    %1440 = vmatprep.subr.bf16.mxu0 0
    %1441 = vmatpush1.bf16.msra.mxu0 %v409
    %1442 = vmatprep.subr.bf16.mxu0 0
    %1443 = vmatpush1.bf16.msra.mxu0 0
    %1444 = vmatprep.subr.bf16.mxu0 0
    %1445 = vmatpush1.bf16.msra.mxu0 0
    %1446 = vmatprep.subr.bf16.mxu0 0
    %1447 = vmatpush1.bf16.msra.mxu0 0
    %1448 = vmatprep.subr.bf16.mxu0 0
    %1449 = vmatpush1.bf16.msra.mxu0 0
    %1450 = vmatprep.subr.bf16.mxu0 0
    %1451 = vmatpush1.bf16.msra.mxu0 0
    %1452 = vmatprep.subr.bf16.mxu0 0
    %1453 = vmatpush1.bf16.msra.mxu0 0
    %1454 = vmatprep.subr.bf16.mxu0 0
    %1455 = vmatpush1.bf16.msra.mxu0 0
    %1456 = vmatprep.subr.bf16.mxu0 0
    %1457 = vmatpush1.bf16.msra.mxu0 0
    %1458 = vmatprep.subr.bf16.mxu0 0
    %1459 = vmatpush1.bf16.msra.mxu0 0
    %1460 = vmatprep.subr.bf16.mxu0 0
    %1461 = vmatpush1.bf16.msra.mxu0 0
    %1462 = vmatprep.subr.bf16.mxu0 0
    %1463 = vmatpush1.bf16.msra.mxu0 0
    %1464 = vmatprep.subr.bf16.mxu0 0
    %1465 = vmatpush1.bf16.msra.mxu0 0
    %1466 = vmatprep.subr.bf16.mxu0 0
    %1467 = vmatpush1.bf16.msra.mxu0 0
    %1468 = vmatprep.subr.bf16.mxu0 0
    %1469 = vmatpush1.bf16.msra.mxu0 0
    %1470 = vmatprep.mubr.bf16.mxu0 0
    %1471 = vmatmul.mubr.bf16.gmra.mrb[0].mxu0 %v1436
    %v1472 = vpop.f32.mrb[0].mxu0
    %v1473 = vadd.f32 0.0, %v1472
    %v1474 = vpop.f32.mrb[0].mxu0
    %v1475 = vpop.f32.mrb[0].mxu0
    %v1476 = vpop.f32.mrb[0].mxu0
    %1477 = vdwg.mxu0
    %v1478 = vadd.f32 %v1430, %v1473
    %v1479 = vxor.u32 %v1478, 2147483648
    %v1480 = vmul.f32 %v1479, 1.442695
    %v1481 = vpow.pop %v1480
    %v1482 = vadd.f32 %v1481, 1.0
    %v1483 = vrcp.pop %v1482
    %v1484 = vmul.f32 1.0, %v1483
    %v1485 = vadd.f32 %v1473, %v464
    %1487 = vrot.lane.b32.xlu0 %v1485, 64
    %v1488 = vpop.permute.xlu0 %1487
    %v1490 = vmul.f32 %v1484, %v1488
    %1492 = vrot.lane.b32.xlu0 %v1490, 64
    %v1493 = vpop.permute.xlu0 %1492
    %v1495 = vadd.f32 %v1430, %v1493
    %v1496 = vtanh.pop %v1495
    %v1497 = vsub.f32 %v1422, %v1496
    %1499 = vrot.lane.b32.xlu0 %v1497, 96
    %v1500 = vpop.permute.xlu0 %1499
    %v1502 = vmul.f32 %v1484, %v1500
    %1504 = vrot.lane.b32.xlu0 %v1502, 32
    %v1505 = vpop.permute.xlu0 %1504
    %v1507 = vadd.f32 %v1496, %v1505
    %1509 = vrot.lane.b32.xlu0 %v1507, 64
    %v1510 = vpop.permute.xlu0 %1509
    %s1512 = scalar_lea.vmem [#allocation3], 96
    %1513 = vst.msk [vmem:[%s1512] sm:$0xff] %vm412, %v1510
    %s1514 = scalar_lea.vmem [#allocation2], 104
    %v1515 = vld [vmem:[%s1514] sm:$0xff]
    %v1516 = vpack.c.bf16 %v1507, %v1507
    %1518 = vrot.lane.b32.xlu0 %v1516, 64
    %v1519 = vpop.permute.xlu0 %1518
    %v1521 = vsel %vm412, %v1519, 0
    %1523 = vmatprep.subr.bf16.mxu0 0
    %1524 = vmatpush1.bf16.msra.mxu0 %v408
    %1525 = vmatprep.subr.bf16.mxu0 0
    %1526 = vmatpush1.bf16.msra.mxu0 %v409
    %1527 = vmatprep.subr.bf16.mxu0 0
    %1528 = vmatpush1.bf16.msra.mxu0 0
    %1529 = vmatprep.subr.bf16.mxu0 0
    %1530 = vmatpush1.bf16.msra.mxu0 0
    %1531 = vmatprep.subr.bf16.mxu0 0
    %1532 = vmatpush1.bf16.msra.mxu0 0
    %1533 = vmatprep.subr.bf16.mxu0 0
    %1534 = vmatpush1.bf16.msra.mxu0 0
    %1535 = vmatprep.subr.bf16.mxu0 0
    %1536 = vmatpush1.bf16.msra.mxu0 0
    %1537 = vmatprep.subr.bf16.mxu0 0
    %1538 = vmatpush1.bf16.msra.mxu0 0
    %1539 = vmatprep.subr.bf16.mxu0 0
    %1540 = vmatpush1.bf16.msra.mxu0 0
    %1541 = vmatprep.subr.bf16.mxu0 0
    %1542 = vmatpush1.bf16.msra.mxu0 0
    %1543 = vmatprep.subr.bf16.mxu0 0
    %1544 = vmatpush1.bf16.msra.mxu0 0
    %1545 = vmatprep.subr.bf16.mxu0 0
    %1546 = vmatpush1.bf16.msra.mxu0 0
    %1547 = vmatprep.subr.bf16.mxu0 0
    %1548 = vmatpush1.bf16.msra.mxu0 0
    %1549 = vmatprep.subr.bf16.mxu0 0
    %1550 = vmatpush1.bf16.msra.mxu0 0
    %1551 = vmatprep.subr.bf16.mxu0 0
    %1552 = vmatpush1.bf16.msra.mxu0 0
    %1553 = vmatprep.subr.bf16.mxu0 0
    %1554 = vmatpush1.bf16.msra.mxu0 0
    %1555 = vmatprep.mubr.bf16.mxu0 0
    %1556 = vmatmul.mubr.bf16.gmra.mrb[0].mxu0 %v1521
    %v1557 = vpop.f32.mrb[0].mxu0
    %v1558 = vadd.f32 0.0, %v1557
    %v1559 = vpop.f32.mrb[0].mxu0
    %v1560 = vpop.f32.mrb[0].mxu0
    %v1561 = vpop.f32.mrb[0].mxu0
    %1562 = vdwg.mxu0
    %v1563 = vadd.f32 %v1515, %v1558
    %v1564 = vxor.u32 %v1563, 2147483648
    %v1565 = vmul.f32 %v1564, 1.442695
    %v1566 = vpow.pop %v1565
    %v1567 = vadd.f32 %v1566, 1.0
    %v1568 = vrcp.pop %v1567
    %v1569 = vmul.f32 1.0, %v1568
    %v1570 = vadd.f32 %v1558, %v464
    %1572 = vrot.lane.b32.xlu0 %v1570, 64
    %v1573 = vpop.permute.xlu0 %1572
    %v1575 = vmul.f32 %v1569, %v1573
    %1577 = vrot.lane.b32.xlu0 %v1575, 64
    %v1578 = vpop.permute.xlu0 %1577
    %v1580 = vadd.f32 %v1515, %v1578
    %v1581 = vtanh.pop %v1580
    %v1582 = vsub.f32 %v1507, %v1581
    %1584 = vrot.lane.b32.xlu0 %v1582, 96
    %v1585 = vpop.permute.xlu0 %1584
    %v1587 = vmul.f32 %v1569, %v1585
    %1589 = vrot.lane.b32.xlu0 %v1587, 32
    %v1590 = vpop.permute.xlu0 %1589
    %v1592 = vadd.f32 %v1581, %v1590
    %1594 = vrot.lane.b32.xlu0 %v1592, 64
    %v1595 = vpop.permute.xlu0 %1594
    %s1597 = scalar_lea.vmem [#allocation3], 104
    %1598 = vst.msk [vmem:[%s1597] sm:$0xff] %vm412, %v1595
    %s1599 = scalar_lea.vmem [#allocation2], 112
    %v1600 = vld [vmem:[%s1599] sm:$0xff]
    %v1601 = vpack.c.bf16 %v1592, %v1592
    %1603 = vrot.lane.b32.xlu0 %v1601, 64
    %v1604 = vpop.permute.xlu0 %1603
    %v1606 = vsel %vm412, %v1604, 0
    %1608 = vmatprep.subr.bf16.mxu0 0
    %1609 = vmatpush1.bf16.msra.mxu0 %v408
    %1610 = vmatprep.subr.bf16.mxu0 0
    %1611 = vmatpush1.bf16.msra.mxu0 %v409
    %1612 = vmatprep.subr.bf16.mxu0 0
    %1613 = vmatpush1.bf16.msra.mxu0 0
    %1614 = vmatprep.subr.bf16.mxu0 0
    %1615 = vmatpush1.bf16.msra.mxu0 0
    %1616 = vmatprep.subr.bf16.mxu0 0
    %1617 = vmatpush1.bf16.msra.mxu0 0
    %1618 = vmatprep.subr.bf16.mxu0 0
    %1619 = vmatpush1.bf16.msra.mxu0 0
    %1620 = vmatprep.subr.bf16.mxu0 0
    %1621 = vmatpush1.bf16.msra.mxu0 0
    %1622 = vmatprep.subr.bf16.mxu0 0
    %1623 = vmatpush1.bf16.msra.mxu0 0
    %1624 = vmatprep.subr.bf16.mxu0 0
    %1625 = vmatpush1.bf16.msra.mxu0 0
    %1626 = vmatprep.subr.bf16.mxu0 0
    %1627 = vmatpush1.bf16.msra.mxu0 0
    %1628 = vmatprep.subr.bf16.mxu0 0
    %1629 = vmatpush1.bf16.msra.mxu0 0
    %1630 = vmatprep.subr.bf16.mxu0 0
    %1631 = vmatpush1.bf16.msra.mxu0 0
    %1632 = vmatprep.subr.bf16.mxu0 0
    %1633 = vmatpush1.bf16.msra.mxu0 0
    %1634 = vmatprep.subr.bf16.mxu0 0
    %1635 = vmatpush1.bf16.msra.mxu0 0
    %1636 = vmatprep.subr.bf16.mxu0 0
    %1637 = vmatpush1.bf16.msra.mxu0 0
    %1638 = vmatprep.subr.bf16.mxu0 0
    %1639 = vmatpush1.bf16.msra.mxu0 0
    %1640 = vmatprep.mubr.bf16.mxu0 0
    %1641 = vmatmul.mubr.bf16.gmra.mrb[0].mxu0 %v1606
    %v1642 = vpop.f32.mrb[0].mxu0
    %v1643 = vadd.f32 0.0, %v1642
    %v1644 = vpop.f32.mrb[0].mxu0
    %v1645 = vpop.f32.mrb[0].mxu0
    %v1646 = vpop.f32.mrb[0].mxu0
    %1647 = vdwg.mxu0
    %v1648 = vadd.f32 %v1600, %v1643
    %v1649 = vxor.u32 %v1648, 2147483648
    %v1650 = vmul.f32 %v1649, 1.442695
    %v1651 = vpow.pop %v1650
    %v1652 = vadd.f32 %v1651, 1.0
    %v1653 = vrcp.pop %v1652
    %v1654 = vmul.f32 1.0, %v1653
    %v1655 = vadd.f32 %v1643, %v464
    %1657 = vrot.lane.b32.xlu0 %v1655, 64
    %v1658 = vpop.permute.xlu0 %1657
    %v1660 = vmul.f32 %v1654, %v1658
    %1662 = vrot.lane.b32.xlu0 %v1660, 64
    %v1663 = vpop.permute.xlu0 %1662
    %v1665 = vadd.f32 %v1600, %v1663
    %v1666 = vtanh.pop %v1665
    %v1667 = vsub.f32 %v1592, %v1666
    %1669 = vrot.lane.b32.xlu0 %v1667, 96
    %v1670 = vpop.permute.xlu0 %1669
    %v1672 = vmul.f32 %v1654, %v1670
    %1674 = vrot.lane.b32.xlu0 %v1672, 32
    %v1675 = vpop.permute.xlu0 %1674
    %v1677 = vadd.f32 %v1666, %v1675
    %1679 = vrot.lane.b32.xlu0 %v1677, 64
    %v1680 = vpop.permute.xlu0 %1679
    %s1682 = scalar_lea.vmem [#allocation3], 112
    %1683 = vst.msk [vmem:[%s1682] sm:$0xff] %vm412, %v1680
    %s1684 = scalar_lea.vmem [#allocation2], 120
    %v1685 = vld [vmem:[%s1684] sm:$0xff]
    %v1686 = vpack.c.bf16 %v1677, %v1677
    %1688 = vrot.lane.b32.xlu0 %v1686, 64
    %v1689 = vpop.permute.xlu0 %1688
    %v1691 = vsel %vm412, %v1689, 0
    %1693 = vmatprep.subr.bf16.mxu0 0
    %1694 = vmatpush1.bf16.msra.mxu0 %v408
    %1695 = vmatprep.subr.bf16.mxu0 0
    %1696 = vmatpush1.bf16.msra.mxu0 %v409
    %1697 = vmatprep.subr.bf16.mxu0 0
    %1698 = vmatpush1.bf16.msra.mxu0 0
    %1699 = vmatprep.subr.bf16.mxu0 0
    %1700 = vmatpush1.bf16.msra.mxu0 0
    %1701 = vmatprep.subr.bf16.mxu0 0
    %1702 = vmatpush1.bf16.msra.mxu0 0
    %1703 = vmatprep.subr.bf16.mxu0 0
    %1704 = vmatpush1.bf16.msra.mxu0 0
    %1705 = vmatprep.subr.bf16.mxu0 0
    %1706 = vmatpush1.bf16.msra.mxu0 0
    %1707 = vmatprep.subr.bf16.mxu0 0
    %1708 = vmatpush1.bf16.msra.mxu0 0
    %1709 = vmatprep.subr.bf16.mxu0 0
    %1710 = vmatpush1.bf16.msra.mxu0 0
    %1711 = vmatprep.subr.bf16.mxu0 0
    %1712 = vmatpush1.bf16.msra.mxu0 0
    %1713 = vmatprep.subr.bf16.mxu0 0
    %1714 = vmatpush1.bf16.msra.mxu0 0
    %1715 = vmatprep.subr.bf16.mxu0 0
    %1716 = vmatpush1.bf16.msra.mxu0 0
    %1717 = vmatprep.subr.bf16.mxu0 0
    %1718 = vmatpush1.bf16.msra.mxu0 0
    %1719 = vmatprep.subr.bf16.mxu0 0
    %1720 = vmatpush1.bf16.msra.mxu0 0
    %1721 = vmatprep.subr.bf16.mxu0 0
    %1722 = vmatpush1.bf16.msra.mxu0 0
    %1723 = vmatprep.subr.bf16.mxu0 0
    %1724 = vmatpush1.bf16.msra.mxu0 0
    %1725 = vmatprep.mubr.bf16.mxu0 0
    %1726 = vmatmul.mubr.bf16.gmra.mrb[0].mxu0 %v1691
    %v1727 = vpop.f32.mrb[0].mxu0
    %v1728 = vadd.f32 0.0, %v1727
    %v1729 = vpop.f32.mrb[0].mxu0
    %v1730 = vpop.f32.mrb[0].mxu0
    %v1731 = vpop.f32.mrb[0].mxu0
    %1732 = vdwg.mxu0
    %v1733 = vadd.f32 %v1685, %v1728
    %v1734 = vxor.u32 %v1733, 2147483648
    %v1735 = vmul.f32 %v1734, 1.442695
    %v1736 = vpow.pop %v1735
    %v1737 = vadd.f32 %v1736, 1.0
    %v1738 = vrcp.pop %v1737
    %v1739 = vmul.f32 1.0, %v1738
    %v1740 = vadd.f32 %v1728, %v464
    %1742 = vrot.lane.b32.xlu0 %v1740, 64
    %v1743 = vpop.permute.xlu0 %1742
    %v1745 = vmul.f32 %v1739, %v1743
    %1747 = vrot.lane.b32.xlu0 %v1745, 64
    %v1748 = vpop.permute.xlu0 %1747
    %v1750 = vadd.f32 %v1685, %v1748
    %v1751 = vtanh.pop %v1750
    %v1752 = vsub.f32 %v1677, %v1751
    %1754 = vrot.lane.b32.xlu0 %v1752, 96
    %v1755 = vpop.permute.xlu0 %1754
    %v1757 = vmul.f32 %v1739, %v1755
    %1759 = vrot.lane.b32.xlu0 %v1757, 32
    %v1760 = vpop.permute.xlu0 %1759
    %v1762 = vadd.f32 %v1751, %v1760
    %1764 = vrot.lane.b32.xlu0 %v1762, 64
    %v1765 = vpop.permute.xlu0 %1764
    %s1767 = scalar_lea.vmem [#allocation3], 120
    %1768 = vst.msk [vmem:[%s1767] sm:$0xff] %vm412, %v1765
    %v1769 = vld [vmem:[#allocation3] sm:$0xff]
    %v1770 = vld [vmem:[#allocation3 + $0x8] sm:$0xff]
    %v1771 = vld [vmem:[#allocation3 + $0x10] sm:$0xff]
    %v1772 = vld [vmem:[#allocation3 + $0x18] sm:$0xff]
    %v1773 = vld [vmem:[#allocation3 + $0x20] sm:$0xff]
    %v1774 = vld [vmem:[#allocation3 + $0x28] sm:$0xff]
    %v1775 = vld [vmem:[#allocation3 + $0x30] sm:$0xff]
    %v1776 = vld [vmem:[#allocation3 + $0x38] sm:$0xff]
    %v1777 = vld [vmem:[#allocation3 + $0x40] sm:$0xff]
    %v1778 = vld [vmem:[#allocation3 + $0x48] sm:$0xff]
    %v1779 = vld [vmem:[#allocation3 + $0x50] sm:$0xff]
    %v1780 = vld [vmem:[#allocation3 + $0x58] sm:$0xff]
    %v1781 = vld [vmem:[#allocation3 + $0x60] sm:$0xff]
    %v1782 = vld [vmem:[#allocation3 + $0x68] sm:$0xff]
    %v1783 = vld [vmem:[#allocation3 + $0x70] sm:$0xff]
    %v1784 = vld [vmem:[#allocation3 + $0x78] sm:$0xff]
    %v1785 = vpack.c.bf16 %v1770, %v1769
    %v1786 = vpack.c.bf16 %v1772, %v1771
    %v1787 = vpack.c.bf16 %v1774, %v1773
    %v1788 = vpack.c.bf16 %v1776, %v1775
    %v1789 = vpack.c.bf16 %v1778, %v1777
    %v1790 = vpack.c.bf16 %v1780, %v1779
    %v1791 = vpack.c.bf16 %v1782, %v1781
    %v1792 = vpack.c.bf16 %v1784, %v1783
    %v1793 = vld [vmem:[#allocation13] sm:$0xf]
    %v1794 = vld [vmem:[#allocation13 + $0x4] sm:$0xf]
    %v1795 = vld [vmem:[#allocation13 + $0x8] sm:$0xf]
    %v1796 = vld [vmem:[#allocation13 + $0xc] sm:$0xf]
    %v1797 = vld [vmem:[#allocation16] sm:$0x1]
    %v1799 = vlaneseq
    %v1800 = vshrl.u32 %v1799, 7
    %v1801 = vsub.s32 0, %v1800
    %v1802 = vrot.slane %v1797, %v1801
    %v1808 = vunpack.c.l.b16 %v1793
    %v1809 = vunpack.c.l.b16 %v1794
    %v1810 = vunpack.c.l.b16 %v1795
    %v1811 = vunpack.c.l.b16 %v1796
    %v1812 = vpack.c.b16 %v1809, %v1808
    %v1813 = vpack.c.b16 %v1811, %v1810
    %v1817 = vsel %vm412, %v1785, 0
    %v1820 = vsel %vm412, %v1786, 0
    %v1823 = vsel %vm412, %v1787, 0
    %v1826 = vsel %vm412, %v1788, 0
    %v1829 = vsel %vm412, %v1789, 0
    %v1832 = vsel %vm412, %v1790, 0
    %v1835 = vsel %vm412, %v1791, 0
    %v1838 = vsel %vm412, %v1792, 0
    %1840 = vmatprep.subr.bf16.mxu0 0
    %1841 = vmatpush1.bf16.msra.mxu0 %v1812
    %1842 = vmatprep.subr.bf16.mxu0 0
    %1843 = vmatpush1.bf16.msra.mxu0 %v1813
    %1844 = vmatprep.subr.bf16.mxu0 0
    %1845 = vmatpush1.bf16.msra.mxu0 0
    %1846 = vmatprep.subr.bf16.mxu0 0
    %1847 = vmatpush1.bf16.msra.mxu0 0
    %1848 = vmatprep.subr.bf16.mxu0 0
    %1849 = vmatpush1.bf16.msra.mxu0 0
    %1850 = vmatprep.subr.bf16.mxu0 0
    %1851 = vmatpush1.bf16.msra.mxu0 0
    %1852 = vmatprep.subr.bf16.mxu0 0
    %1853 = vmatpush1.bf16.msra.mxu0 0
    %1854 = vmatprep.subr.bf16.mxu0 0
    %1855 = vmatpush1.bf16.msra.mxu0 0
    %1856 = vmatprep.subr.bf16.mxu0 0
    %1857 = vmatpush1.bf16.msra.mxu0 0
    %1858 = vmatprep.subr.bf16.mxu0 0
    %1859 = vmatpush1.bf16.msra.mxu0 0
    %1860 = vmatprep.subr.bf16.mxu0 0
    %1861 = vmatpush1.bf16.msra.mxu0 0
    %1862 = vmatprep.subr.bf16.mxu0 0
    %1863 = vmatpush1.bf16.msra.mxu0 0
    %1864 = vmatprep.subr.bf16.mxu0 0
    %1865 = vmatpush1.bf16.msra.mxu0 0
    %1866 = vmatprep.subr.bf16.mxu0 0
    %1867 = vmatpush1.bf16.msra.mxu0 0
    %1868 = vmatprep.subr.bf16.mxu0 0
    %1869 = vmatpush1.bf16.msra.mxu0 0
    %1870 = vmatprep.subr.bf16.mxu0 0
    %1871 = vmatpush1.bf16.msra.mxu0 0
    %1872 = vmatprep.mubr.bf16.mxu0 0
    %1873 = vmatmul.mubr.bf16.gmra.mrb[0].mxu0 %v1817
    %v1874 = vpop.f32.mrb[0].mxu0
    %v1875 = vadd.f32 %v1802, %v1874
    %v1876 = vpop.f32.mrb[0].mxu0
    %v1877 = vpop.f32.mrb[0].mxu0
    %v1878 = vadd.f32 %v1802, %v1877
    %v1879 = vpop.f32.mrb[0].mxu0
    %1880 = vmatprep.mubr.bf16.mxu0 0
    %1881 = vmatmul.mubr.bf16.gmra.mrb[0].mxu0 %v1820
    %v1882 = vpop.f32.mrb[0].mxu0
    %v1883 = vadd.f32 %v1802, %v1882
    %v1884 = vpop.f32.mrb[0].mxu0
    %v1885 = vpop.f32.mrb[0].mxu0
    %v1886 = vadd.f32 %v1802, %v1885
    %v1887 = vpop.f32.mrb[0].mxu0
    %1888 = vmatprep.mubr.bf16.mxu0 0
    %1889 = vmatmul.mubr.bf16.gmra.mrb[0].mxu0 %v1823
    %v1890 = vpop.f32.mrb[0].mxu0
    %v1891 = vadd.f32 %v1802, %v1890
    %v1892 = vpop.f32.mrb[0].mxu0
    %v1893 = vpop.f32.mrb[0].mxu0
    %v1894 = vadd.f32 %v1802, %v1893
    %v1895 = vpop.f32.mrb[0].mxu0
    %1896 = vmatprep.mubr.bf16.mxu0 0
    %1897 = vmatmul.mubr.bf16.gmra.mrb[0].mxu0 %v1826
    %v1898 = vpop.f32.mrb[0].mxu0
    %v1899 = vadd.f32 %v1802, %v1898
    %v1900 = vpop.f32.mrb[0].mxu0
    %v1901 = vpop.f32.mrb[0].mxu0
    %v1902 = vadd.f32 %v1802, %v1901
    %v1903 = vpop.f32.mrb[0].mxu0
    %1904 = vmatprep.mubr.bf16.mxu0 0
    %1905 = vmatmul.mubr.bf16.gmra.mrb[0].mxu0 %v1829
    %v1906 = vpop.f32.mrb[0].mxu0
    %v1907 = vadd.f32 %v1802, %v1906
    %v1908 = vpop.f32.mrb[0].mxu0
    %v1909 = vpop.f32.mrb[0].mxu0
    %v1910 = vadd.f32 %v1802, %v1909
    %v1911 = vpop.f32.mrb[0].mxu0
    %1912 = vmatprep.mubr.bf16.mxu0 0
    %1913 = vmatmul.mubr.bf16.gmra.mrb[0].mxu0 %v1832
    %v1914 = vpop.f32.mrb[0].mxu0
    %v1915 = vadd.f32 %v1802, %v1914
    %v1916 = vpop.f32.mrb[0].mxu0
    %v1917 = vpop.f32.mrb[0].mxu0
    %v1918 = vadd.f32 %v1802, %v1917
    %v1919 = vpop.f32.mrb[0].mxu0
    %1920 = vmatprep.mubr.bf16.mxu0 0
    %1921 = vmatmul.mubr.bf16.gmra.mrb[0].mxu0 %v1835
    %v1922 = vpop.f32.mrb[0].mxu0
    %v1923 = vadd.f32 %v1802, %v1922
    %v1924 = vpop.f32.mrb[0].mxu0
    %v1925 = vpop.f32.mrb[0].mxu0
    %v1926 = vadd.f32 %v1802, %v1925
    %v1927 = vpop.f32.mrb[0].mxu0
    %1928 = vmatprep.mubr.bf16.mxu0 0
    %1929 = vmatmul.mubr.bf16.gmra.mrb[0].mxu0 %v1838
    %v1930 = vpop.f32.mrb[0].mxu0
    %v1931 = vadd.f32 %v1802, %v1930
    %v1932 = vpop.f32.mrb[0].mxu0
    %v1933 = vpop.f32.mrb[0].mxu0
    %v1934 = vadd.f32 %v1802, %v1933
    %v1935 = vpop.f32.mrb[0].mxu0
    %1936 = vdwg.mxu0
    %1937 = vst.msk [vmem:[#allocation2] sm:$0xff] %vm372, %v1875
    %1938 = vst.msk [vmem:[#allocation2 + $0x8] sm:$0xff] %vm372, %v1878
    %1939 = vst.msk [vmem:[#allocation2 + $0x10] sm:$0xff] %vm372, %v1883
    %1940 = vst.msk [vmem:[#allocation2 + $0x18] sm:$0xff] %vm372, %v1886
    %1941 = vst.msk [vmem:[#allocation2 + $0x20] sm:$0xff] %vm372, %v1891
    %1942 = vst.msk [vmem:[#allocation2 + $0x28] sm:$0xff] %vm372, %v1894
    %1943 = vst.msk [vmem:[#allocation2 + $0x30] sm:$0xff] %vm372, %v1899
    %1944 = vst.msk [vmem:[#allocation2 + $0x38] sm:$0xff] %vm372, %v1902
    %1945 = vst.msk [vmem:[#allocation2 + $0x40] sm:$0xff] %vm372, %v1907
    %1946 = vst.msk [vmem:[#allocation2 + $0x48] sm:$0xff] %vm372, %v1910
    %1947 = vst.msk [vmem:[#allocation2 + $0x50] sm:$0xff] %vm372, %v1915
    %1948 = vst.msk [vmem:[#allocation2 + $0x58] sm:$0xff] %vm372, %v1918
    %1949 = vst.msk [vmem:[#allocation2 + $0x60] sm:$0xff] %vm372, %v1923
    %1950 = vst.msk [vmem:[#allocation2 + $0x68] sm:$0xff] %vm372, %v1926
    %1951 = vst.msk [vmem:[#allocation2 + $0x70] sm:$0xff] %vm372, %v1931
    %1952 = vst.msk [vmem:[#allocation2 + $0x78] sm:$0xff] %vm372, %v1934
    %v1953 = vld [vmem:[#allocation15] sm:$0xf]
    %v1954 = vld [vmem:[#allocation15 + $0x4] sm:$0xf]
    %v1955 = vld [vmem:[#allocation15 + $0x8] sm:$0xf]
    %v1956 = vld [vmem:[#allocation15 + $0xc] sm:$0xf]
    %v1957 = vld [vmem:[#allocation18] sm:$0x1]
    %v1959 = vlaneseq
    %v1960 = vshrl.u32 %v1959, 7
    %v1961 = vsub.s32 0, %v1960
    %v1962 = vrot.slane %v1957, %v1961
    %v1963 = vld [vmem:[#allocation2] sm:$0xff]
    %v1968 = vunpack.c.l.b16 %v1953
    %v1969 = vunpack.c.l.b16 %v1954
    %v1970 = vunpack.c.l.b16 %v1955
    %v1971 = vunpack.c.l.b16 %v1956
    %v1972 = vpack.c.b16 %v1969, %v1968
    %v1973 = vpack.c.b16 %v1971, %v1970
    %1976 = vmatprep.subr.bf16.mxu0 0
    %1977 = vmatpush1.bf16.msra.mxu0 %v1972
    %1978 = vmatprep.subr.bf16.mxu0 0
    %1979 = vmatpush1.bf16.msra.mxu0 %v1973
    %1980 = vmatprep.subr.bf16.mxu0 0
    %1981 = vmatpush1.bf16.msra.mxu0 0
    %1982 = vmatprep.subr.bf16.mxu0 0
    %1983 = vmatpush1.bf16.msra.mxu0 0
    %1984 = vmatprep.subr.bf16.mxu0 0
    %1985 = vmatpush1.bf16.msra.mxu0 0
    %1986 = vmatprep.subr.bf16.mxu0 0
    %1987 = vmatpush1.bf16.msra.mxu0 0
    %1988 = vmatprep.subr.bf16.mxu0 0
    %1989 = vmatpush1.bf16.msra.mxu0 0
    %1990 = vmatprep.subr.bf16.mxu0 0
    %1991 = vmatpush1.bf16.msra.mxu0 0
    %1992 = vmatprep.subr.bf16.mxu0 0
    %1993 = vmatpush1.bf16.msra.mxu0 0
    %1994 = vmatprep.subr.bf16.mxu0 0
    %1995 = vmatpush1.bf16.msra.mxu0 0
    %1996 = vmatprep.subr.bf16.mxu0 0
    %1997 = vmatpush1.bf16.msra.mxu0 0
    %1998 = vmatprep.subr.bf16.mxu0 0
    %1999 = vmatpush1.bf16.msra.mxu0 0
    %2000 = vmatprep.subr.bf16.mxu0 0
    %2001 = vmatpush1.bf16.msra.mxu0 0
    %2002 = vmatprep.subr.bf16.mxu0 0
    %2003 = vmatpush1.bf16.msra.mxu0 0
    %2004 = vmatprep.subr.bf16.mxu0 0
    %2005 = vmatpush1.bf16.msra.mxu0 0
    %2006 = vmatprep.subr.bf16.mxu0 0
    %2007 = vmatpush1.bf16.msra.mxu0 0
    %2008 = vmatprep.mubr.bf16.mxu0 0
    %2009 = vmatmul.mubr.bf16.gmra.mrb[0].mxu0 %v414
    %v2010 = vpop.f32.mrb[0].mxu0
    %v2011 = vadd.f32 0.0, %v2010
    %v2012 = vpop.f32.mrb[0].mxu0
    %v2013 = vpop.f32.mrb[0].mxu0
    %v2014 = vpop.f32.mrb[0].mxu0
    %2015 = vdwg.mxu0
    %v2016 = vadd.f32 %v1963, %v2011
    %v2017 = vxor.u32 %v2016, 2147483648
    %v2018 = vmul.f32 %v2017, 1.442695
    %v2019 = vpow.pop %v2018
    %v2020 = vadd.f32 %v2019, 1.0
    %v2021 = vrcp.pop %v2020
    %v2022 = vmul.f32 1.0, %v2021
    %2023 = vrot.lane.b32.xlu0 %v1962, 64
    %v2024 = vpop.permute.xlu0 %2023
    %v2026 = vadd.f32 %v2011, %v2024
    %2028 = vrot.lane.b32.xlu0 %v2026, 64
    %v2029 = vpop.permute.xlu0 %2028
    %v2031 = vmul.f32 %v2022, %v2029
    %2033 = vrot.lane.b32.xlu0 %v2031, 64
    %v2034 = vpop.permute.xlu0 %2033
    %v2036 = vadd.f32 %v1963, %v2034
    %v2037 = vtanh.pop %v2036
    %v2038 = vsub.f32 0.0, %v2037
    %2040 = vrot.lane.b32.xlu0 %v2038, 96
    %v2041 = vpop.permute.xlu0 %2040
    %v2043 = vmul.f32 %v2022, %v2041
    %2045 = vrot.lane.b32.xlu0 %v2043, 32
    %v2046 = vpop.permute.xlu0 %2045
    %v2048 = vadd.f32 %v2037, %v2046
    %2050 = vrot.lane.b32.xlu0 %v2048, 64
    %v2051 = vpop.permute.xlu0 %2050
    %2053 = vst.msk [vmem:[#allocation3] sm:$0xff] %vm412, %v2051
    %v2054 = vld [vmem:[%s494] sm:$0xff]
    %v2055 = vpack.c.bf16 %v2048, %v2048
    %2057 = vrot.lane.b32.xlu0 %v2055, 64
    %v2058 = vpop.permute.xlu0 %2057
    %v2060 = vsel %vm412, %v2058, 0
    %2062 = vmatprep.subr.bf16.mxu0 0
    %2063 = vmatpush1.bf16.msra.mxu0 %v1972
    %2064 = vmatprep.subr.bf16.mxu0 0
    %2065 = vmatpush1.bf16.msra.mxu0 %v1973
    %2066 = vmatprep.subr.bf16.mxu0 0
    %2067 = vmatpush1.bf16.msra.mxu0 0
    %2068 = vmatprep.subr.bf16.mxu0 0
    %2069 = vmatpush1.bf16.msra.mxu0 0
    %2070 = vmatprep.subr.bf16.mxu0 0
    %2071 = vmatpush1.bf16.msra.mxu0 0
    %2072 = vmatprep.subr.bf16.mxu0 0
    %2073 = vmatpush1.bf16.msra.mxu0 0
    %2074 = vmatprep.subr.bf16.mxu0 0
    %2075 = vmatpush1.bf16.msra.mxu0 0
    %2076 = vmatprep.subr.bf16.mxu0 0
    %2077 = vmatpush1.bf16.msra.mxu0 0
    %2078 = vmatprep.subr.bf16.mxu0 0
    %2079 = vmatpush1.bf16.msra.mxu0 0
    %2080 = vmatprep.subr.bf16.mxu0 0
    %2081 = vmatpush1.bf16.msra.mxu0 0
    %2082 = vmatprep.subr.bf16.mxu0 0
    %2083 = vmatpush1.bf16.msra.mxu0 0
    %2084 = vmatprep.subr.bf16.mxu0 0
    %2085 = vmatpush1.bf16.msra.mxu0 0
    %2086 = vmatprep.subr.bf16.mxu0 0
    %2087 = vmatpush1.bf16.msra.mxu0 0
    %2088 = vmatprep.subr.bf16.mxu0 0
    %2089 = vmatpush1.bf16.msra.mxu0 0
    %2090 = vmatprep.subr.bf16.mxu0 0
    %2091 = vmatpush1.bf16.msra.mxu0 0
    %2092 = vmatprep.subr.bf16.mxu0 0
    %2093 = vmatpush1.bf16.msra.mxu0 0
    %2094 = vmatprep.mubr.bf16.mxu0 0
    %2095 = vmatmul.mubr.bf16.gmra.mrb[0].mxu0 %v2060
    %v2096 = vpop.f32.mrb[0].mxu0
    %v2097 = vadd.f32 0.0, %v2096
    %v2098 = vpop.f32.mrb[0].mxu0
    %v2099 = vpop.f32.mrb[0].mxu0
    %v2100 = vpop.f32.mrb[0].mxu0
    %2101 = vdwg.mxu0
    %v2102 = vadd.f32 %v2054, %v2097
    %v2103 = vxor.u32 %v2102, 2147483648
    %v2104 = vmul.f32 %v2103, 1.442695
    %v2105 = vpow.pop %v2104
    %v2106 = vadd.f32 %v2105, 1.0
    %v2107 = vrcp.pop %v2106
    %v2108 = vmul.f32 1.0, %v2107
    %v2109 = vadd.f32 %v2097, %v2024
    %2111 = vrot.lane.b32.xlu0 %v2109, 64
    %v2112 = vpop.permute.xlu0 %2111
    %v2114 = vmul.f32 %v2108, %v2112
    %2116 = vrot.lane.b32.xlu0 %v2114, 64
    %v2117 = vpop.permute.xlu0 %2116
    %v2119 = vadd.f32 %v2054, %v2117
    %v2120 = vtanh.pop %v2119
    %v2121 = vsub.f32 %v2048, %v2120
    %2123 = vrot.lane.b32.xlu0 %v2121, 96
    %v2124 = vpop.permute.xlu0 %2123
    %v2126 = vmul.f32 %v2108, %v2124
    %2128 = vrot.lane.b32.xlu0 %v2126, 32
    %v2129 = vpop.permute.xlu0 %2128
    %v2131 = vadd.f32 %v2120, %v2129
    %2133 = vrot.lane.b32.xlu0 %v2131, 64
    %v2134 = vpop.permute.xlu0 %2133
    %2136 = vst.msk [vmem:[%s577] sm:$0xff] %vm412, %v2134
    %v2137 = vld [vmem:[%s579] sm:$0xff]
    %v2138 = vpack.c.bf16 %v2131, %v2131
    %2140 = vrot.lane.b32.xlu0 %v2138, 64
    %v2141 = vpop.permute.xlu0 %2140
    %v2143 = vsel %vm412, %v2141, 0
    %2145 = vmatprep.subr.bf16.mxu0 0
    %2146 = vmatpush1.bf16.msra.mxu0 %v1972
    %2147 = vmatprep.subr.bf16.mxu0 0
    %2148 = vmatpush1.bf16.msra.mxu0 %v1973
    %2149 = vmatprep.subr.bf16.mxu0 0
    %2150 = vmatpush1.bf16.msra.mxu0 0
    %2151 = vmatprep.subr.bf16.mxu0 0
    %2152 = vmatpush1.bf16.msra.mxu0 0
    %2153 = vmatprep.subr.bf16.mxu0 0
    %2154 = vmatpush1.bf16.msra.mxu0 0
    %2155 = vmatprep.subr.bf16.mxu0 0
    %2156 = vmatpush1.bf16.msra.mxu0 0
    %2157 = vmatprep.subr.bf16.mxu0 0
    %2158 = vmatpush1.bf16.msra.mxu0 0
    %2159 = vmatprep.subr.bf16.mxu0 0
    %2160 = vmatpush1.bf16.msra.mxu0 0
    %2161 = vmatprep.subr.bf16.mxu0 0
    %2162 = vmatpush1.bf16.msra.mxu0 0
    %2163 = vmatprep.subr.bf16.mxu0 0
    %2164 = vmatpush1.bf16.msra.mxu0 0
    %2165 = vmatprep.subr.bf16.mxu0 0
    %2166 = vmatpush1.bf16.msra.mxu0 0
    %2167 = vmatprep.subr.bf16.mxu0 0
    %2168 = vmatpush1.bf16.msra.mxu0 0
    %2169 = vmatprep.subr.bf16.mxu0 0
    %2170 = vmatpush1.bf16.msra.mxu0 0
    %2171 = vmatprep.subr.bf16.mxu0 0
    %2172 = vmatpush1.bf16.msra.mxu0 0
    %2173 = vmatprep.subr.bf16.mxu0 0
    %2174 = vmatpush1.bf16.msra.mxu0 0
    %2175 = vmatprep.subr.bf16.mxu0 0
    %2176 = vmatpush1.bf16.msra.mxu0 0
    %2177 = vmatprep.mubr.bf16.mxu0 0
    %2178 = vmatmul.mubr.bf16.gmra.mrb[0].mxu0 %v2143
    %v2179 = vpop.f32.mrb[0].mxu0
    %v2180 = vadd.f32 0.0, %v2179
    %v2181 = vpop.f32.mrb[0].mxu0
    %v2182 = vpop.f32.mrb[0].mxu0
    %v2183 = vpop.f32.mrb[0].mxu0
    %2184 = vdwg.mxu0
    %v2185 = vadd.f32 %v2137, %v2180
    %v2186 = vxor.u32 %v2185, 2147483648
    %v2187 = vmul.f32 %v2186, 1.442695
    %v2188 = vpow.pop %v2187
    %v2189 = vadd.f32 %v2188, 1.0
    %v2190 = vrcp.pop %v2189
    %v2191 = vmul.f32 1.0, %v2190
    %v2192 = vadd.f32 %v2180, %v2024
    %2194 = vrot.lane.b32.xlu0 %v2192, 64
    %v2195 = vpop.permute.xlu0 %2194
    %v2197 = vmul.f32 %v2191, %v2195
    %2199 = vrot.lane.b32.xlu0 %v2197, 64
    %v2200 = vpop.permute.xlu0 %2199
    %v2202 = vadd.f32 %v2137, %v2200
    %v2203 = vtanh.pop %v2202
    %v2204 = vsub.f32 %v2131, %v2203
    %2206 = vrot.lane.b32.xlu0 %v2204, 96
    %v2207 = vpop.permute.xlu0 %2206
    %v2209 = vmul.f32 %v2191, %v2207
    %2211 = vrot.lane.b32.xlu0 %v2209, 32
    %v2212 = vpop.permute.xlu0 %2211
    %v2214 = vadd.f32 %v2203, %v2212
    %2216 = vrot.lane.b32.xlu0 %v2214, 64
    %v2217 = vpop.permute.xlu0 %2216
    %2219 = vst.msk [vmem:[%s662] sm:$0xff] %vm412, %v2217
    %v2220 = vld [vmem:[%s664] sm:$0xff]
    %v2221 = vpack.c.bf16 %v2214, %v2214
    %2223 = vrot.lane.b32.xlu0 %v2221, 64
    %v2224 = vpop.permute.xlu0 %2223
    %v2226 = vsel %vm412, %v2224, 0
    %2228 = vmatprep.subr.bf16.mxu0 0
    %2229 = vmatpush1.bf16.msra.mxu0 %v1972
    %2230 = vmatprep.subr.bf16.mxu0 0
    %2231 = vmatpush1.bf16.msra.mxu0 %v1973
    %2232 = vmatprep.subr.bf16.mxu0 0
    %2233 = vmatpush1.bf16.msra.mxu0 0
    %2234 = vmatprep.subr.bf16.mxu0 0
    %2235 = vmatpush1.bf16.msra.mxu0 0
    %2236 = vmatprep.subr.bf16.mxu0 0
    %2237 = vmatpush1.bf16.msra.mxu0 0
    %2238 = vmatprep.subr.bf16.mxu0 0
    %2239 = vmatpush1.bf16.msra.mxu0 0
    %2240 = vmatprep.subr.bf16.mxu0 0
    %2241 = vmatpush1.bf16.msra.mxu0 0
    %2242 = vmatprep.subr.bf16.mxu0 0
    %2243 = vmatpush1.bf16.msra.mxu0 0
    %2244 = vmatprep.subr.bf16.mxu0 0
    %2245 = vmatpush1.bf16.msra.mxu0 0
    %2246 = vmatprep.subr.bf16.mxu0 0
    %2247 = vmatpush1.bf16.msra.mxu0 0
    %2248 = vmatprep.subr.bf16.mxu0 0
    %2249 = vmatpush1.bf16.msra.mxu0 0
    %2250 = vmatprep.subr.bf16.mxu0 0
    %2251 = vmatpush1.bf16.msra.mxu0 0
    %2252 = vmatprep.subr.bf16.mxu0 0
    %2253 = vmatpush1.bf16.msra.mxu0 0
    %2254 = vmatprep.subr.bf16.mxu0 0
    %2255 = vmatpush1.bf16.msra.mxu0 0
    %2256 = vmatprep.subr.bf16.mxu0 0
    %2257 = vmatpush1.bf16.msra.mxu0 0
    %2258 = vmatprep.subr.bf16.mxu0 0
    %2259 = vmatpush1.bf16.msra.mxu0 0
    %2260 = vmatprep.mubr.bf16.mxu0 0
    %2261 = vmatmul.mubr.bf16.gmra.mrb[0].mxu0 %v2226
    %v2262 = vpop.f32.mrb[0].mxu0
    %v2263 = vadd.f32 0.0, %v2262
    %v2264 = vpop.f32.mrb[0].mxu0
    %v2265 = vpop.f32.mrb[0].mxu0
    %v2266 = vpop.f32.mrb[0].mxu0
    %2267 = vdwg.mxu0
    %v2268 = vadd.f32 %v2220, %v2263
    %v2269 = vxor.u32 %v2268, 2147483648
    %v2270 = vmul.f32 %v2269, 1.442695
    %v2271 = vpow.pop %v2270
    %v2272 = vadd.f32 %v2271, 1.0
    %v2273 = vrcp.pop %v2272
    %v2274 = vmul.f32 1.0, %v2273
    %v2275 = vadd.f32 %v2263, %v2024
    %2277 = vrot.lane.b32.xlu0 %v2275, 64
    %v2278 = vpop.permute.xlu0 %2277
    %v2280 = vmul.f32 %v2274, %v2278
    %2282 = vrot.lane.b32.xlu0 %v2280, 64
    %v2283 = vpop.permute.xlu0 %2282
    %v2285 = vadd.f32 %v2220, %v2283
    %v2286 = vtanh.pop %v2285
    %v2287 = vsub.f32 %v2214, %v2286
    %2289 = vrot.lane.b32.xlu0 %v2287, 96
    %v2290 = vpop.permute.xlu0 %2289
    %v2292 = vmul.f32 %v2274, %v2290
    %2294 = vrot.lane.b32.xlu0 %v2292, 32
    %v2295 = vpop.permute.xlu0 %2294
    %v2297 = vadd.f32 %v2286, %v2295
    %2299 = vrot.lane.b32.xlu0 %v2297, 64
    %v2300 = vpop.permute.xlu0 %2299
    %2302 = vst.msk [vmem:[%s747] sm:$0xff] %vm412, %v2300
    %v2303 = vld [vmem:[%s749] sm:$0xff]
    %v2304 = vpack.c.bf16 %v2297, %v2297
    %2306 = vrot.lane.b32.xlu0 %v2304, 64
    %v2307 = vpop.permute.xlu0 %2306
    %v2309 = vsel %vm412, %v2307, 0
    %2311 = vmatprep.subr.bf16.mxu0 0
    %2312 = vmatpush1.bf16.msra.mxu0 %v1972
    %2313 = vmatprep.subr.bf16.mxu0 0
    %2314 = vmatpush1.bf16.msra.mxu0 %v1973
    %2315 = vmatprep.subr.bf16.mxu0 0
    %2316 = vmatpush1.bf16.msra.mxu0 0
    %2317 = vmatprep.subr.bf16.mxu0 0
    %2318 = vmatpush1.bf16.msra.mxu0 0
    %2319 = vmatprep.subr.bf16.mxu0 0
    %2320 = vmatpush1.bf16.msra.mxu0 0
    %2321 = vmatprep.subr.bf16.mxu0 0
    %2322 = vmatpush1.bf16.msra.mxu0 0
    %2323 = vmatprep.subr.bf16.mxu0 0
    %2324 = vmatpush1.bf16.msra.mxu0 0
    %2325 = vmatprep.subr.bf16.mxu0 0
    %2326 = vmatpush1.bf16.msra.mxu0 0
    %2327 = vmatprep.subr.bf16.mxu0 0
    %2328 = vmatpush1.bf16.msra.mxu0 0
    %2329 = vmatprep.subr.bf16.mxu0 0
    %2330 = vmatpush1.bf16.msra.mxu0 0
    %2331 = vmatprep.subr.bf16.mxu0 0
    %2332 = vmatpush1.bf16.msra.mxu0 0
    %2333 = vmatprep.subr.bf16.mxu0 0
    %2334 = vmatpush1.bf16.msra.mxu0 0
    %2335 = vmatprep.subr.bf16.mxu0 0
    %2336 = vmatpush1.bf16.msra.mxu0 0
    %2337 = vmatprep.subr.bf16.mxu0 0
    %2338 = vmatpush1.bf16.msra.mxu0 0
    %2339 = vmatprep.subr.bf16.mxu0 0
    %2340 = vmatpush1.bf16.msra.mxu0 0
    %2341 = vmatprep.subr.bf16.mxu0 0
    %2342 = vmatpush1.bf16.msra.mxu0 0
    %2343 = vmatprep.mubr.bf16.mxu0 0
    %2344 = vmatmul.mubr.bf16.gmra.mrb[0].mxu0 %v2309
    %v2345 = vpop.f32.mrb[0].mxu0
    %v2346 = vadd.f32 0.0, %v2345
    %v2347 = vpop.f32.mrb[0].mxu0
    %v2348 = vpop.f32.mrb[0].mxu0
    %v2349 = vpop.f32.mrb[0].mxu0
    %2350 = vdwg.mxu0
    %v2351 = vadd.f32 %v2303, %v2346
    %v2352 = vxor.u32 %v2351, 2147483648
    %v2353 = vmul.f32 %v2352, 1.442695
    %v2354 = vpow.pop %v2353
    %v2355 = vadd.f32 %v2354, 1.0
    %v2356 = vrcp.pop %v2355
    %v2357 = vmul.f32 1.0, %v2356
    %v2358 = vadd.f32 %v2346, %v2024
    %2360 = vrot.lane.b32.xlu0 %v2358, 64
    %v2361 = vpop.permute.xlu0 %2360
    %v2363 = vmul.f32 %v2357, %v2361
    %2365 = vrot.lane.b32.xlu0 %v2363, 64
    %v2366 = vpop.permute.xlu0 %2365
    %v2368 = vadd.f32 %v2303, %v2366
    %v2369 = vtanh.pop %v2368
    %v2370 = vsub.f32 %v2297, %v2369
    %2372 = vrot.lane.b32.xlu0 %v2370, 96
    %v2373 = vpop.permute.xlu0 %2372
    %v2375 = vmul.f32 %v2357, %v2373
    %2377 = vrot.lane.b32.xlu0 %v2375, 32
    %v2378 = vpop.permute.xlu0 %2377
    %v2380 = vadd.f32 %v2369, %v2378
    %2382 = vrot.lane.b32.xlu0 %v2380, 64
    %v2383 = vpop.permute.xlu0 %2382
    %2385 = vst.msk [vmem:[%s832] sm:$0xff] %vm412, %v2383
    %v2386 = vld [vmem:[%s834] sm:$0xff]
    %v2387 = vpack.c.bf16 %v2380, %v2380
    %2389 = vrot.lane.b32.xlu0 %v2387, 64
    %v2390 = vpop.permute.xlu0 %2389
    %v2392 = vsel %vm412, %v2390, 0
    %2394 = vmatprep.subr.bf16.mxu0 0
    %2395 = vmatpush1.bf16.msra.mxu0 %v1972
    %2396 = vmatprep.subr.bf16.mxu0 0
    %2397 = vmatpush1.bf16.msra.mxu0 %v1973
    %2398 = vmatprep.subr.bf16.mxu0 0
    %2399 = vmatpush1.bf16.msra.mxu0 0
    %2400 = vmatprep.subr.bf16.mxu0 0
    %2401 = vmatpush1.bf16.msra.mxu0 0
    %2402 = vmatprep.subr.bf16.mxu0 0
    %2403 = vmatpush1.bf16.msra.mxu0 0
    %2404 = vmatprep.subr.bf16.mxu0 0
    %2405 = vmatpush1.bf16.msra.mxu0 0
    %2406 = vmatprep.subr.bf16.mxu0 0
    %2407 = vmatpush1.bf16.msra.mxu0 0
    %2408 = vmatprep.subr.bf16.mxu0 0
    %2409 = vmatpush1.bf16.msra.mxu0 0
    %2410 = vmatprep.subr.bf16.mxu0 0
    %2411 = vmatpush1.bf16.msra.mxu0 0
    %2412 = vmatprep.subr.bf16.mxu0 0
    %2413 = vmatpush1.bf16.msra.mxu0 0
    %2414 = vmatprep.subr.bf16.mxu0 0
    %2415 = vmatpush1.bf16.msra.mxu0 0
    %2416 = vmatprep.subr.bf16.mxu0 0
    %2417 = vmatpush1.bf16.msra.mxu0 0
    %2418 = vmatprep.subr.bf16.mxu0 0
    %2419 = vmatpush1.bf16.msra.mxu0 0
    %2420 = vmatprep.subr.bf16.mxu0 0
    %2421 = vmatpush1.bf16.msra.mxu0 0
    %2422 = vmatprep.subr.bf16.mxu0 0
    %2423 = vmatpush1.bf16.msra.mxu0 0
    %2424 = vmatprep.subr.bf16.mxu0 0
    %2425 = vmatpush1.bf16.msra.mxu0 0
    %2426 = vmatprep.mubr.bf16.mxu0 0
    %2427 = vmatmul.mubr.bf16.gmra.mrb[0].mxu0 %v2392
    %v2428 = vpop.f32.mrb[0].mxu0
    %v2429 = vadd.f32 0.0, %v2428
    %v2430 = vpop.f32.mrb[0].mxu0
    %v2431 = vpop.f32.mrb[0].mxu0
    %v2432 = vpop.f32.mrb[0].mxu0
    %2433 = vdwg.mxu0
    %v2434 = vadd.f32 %v2386, %v2429
    %v2435 = vxor.u32 %v2434, 2147483648
    %v2436 = vmul.f32 %v2435, 1.442695
    %v2437 = vpow.pop %v2436
    %v2438 = vadd.f32 %v2437, 1.0
    %v2439 = vrcp.pop %v2438
    %v2440 = vmul.f32 1.0, %v2439
    %v2441 = vadd.f32 %v2429, %v2024
    %2443 = vrot.lane.b32.xlu0 %v2441, 64
    %v2444 = vpop.permute.xlu0 %2443
    %v2446 = vmul.f32 %v2440, %v2444
    %2448 = vrot.lane.b32.xlu0 %v2446, 64
    %v2449 = vpop.permute.xlu0 %2448
    %v2451 = vadd.f32 %v2386, %v2449
    %v2452 = vtanh.pop %v2451
    %v2453 = vsub.f32 %v2380, %v2452
    %2455 = vrot.lane.b32.xlu0 %v2453, 96
    %v2456 = vpop.permute.xlu0 %2455
    %v2458 = vmul.f32 %v2440, %v2456
    %2460 = vrot.lane.b32.xlu0 %v2458, 32
    %v2461 = vpop.permute.xlu0 %2460
    %v2463 = vadd.f32 %v2452, %v2461
    %2465 = vrot.lane.b32.xlu0 %v2463, 64
    %v2466 = vpop.permute.xlu0 %2465
    %2468 = vst.msk [vmem:[%s917] sm:$0xff] %vm412, %v2466
    %v2469 = vld [vmem:[%s919] sm:$0xff]
    %v2470 = vpack.c.bf16 %v2463, %v2463
    %2472 = vrot.lane.b32.xlu0 %v2470, 64
    %v2473 = vpop.permute.xlu0 %2472
    %v2475 = vsel %vm412, %v2473, 0
    %2477 = vmatprep.subr.bf16.mxu0 0
    %2478 = vmatpush1.bf16.msra.mxu0 %v1972
    %2479 = vmatprep.subr.bf16.mxu0 0
    %2480 = vmatpush1.bf16.msra.mxu0 %v1973
    %2481 = vmatprep.subr.bf16.mxu0 0
    %2482 = vmatpush1.bf16.msra.mxu0 0
    %2483 = vmatprep.subr.bf16.mxu0 0
    %2484 = vmatpush1.bf16.msra.mxu0 0
    %2485 = vmatprep.subr.bf16.mxu0 0
    %2486 = vmatpush1.bf16.msra.mxu0 0
    %2487 = vmatprep.subr.bf16.mxu0 0
    %2488 = vmatpush1.bf16.msra.mxu0 0
    %2489 = vmatprep.subr.bf16.mxu0 0
    %2490 = vmatpush1.bf16.msra.mxu0 0
    %2491 = vmatprep.subr.bf16.mxu0 0
    %2492 = vmatpush1.bf16.msra.mxu0 0
    %2493 = vmatprep.subr.bf16.mxu0 0
    %2494 = vmatpush1.bf16.msra.mxu0 0
    %2495 = vmatprep.subr.bf16.mxu0 0
    %2496 = vmatpush1.bf16.msra.mxu0 0
    %2497 = vmatprep.subr.bf16.mxu0 0
    %2498 = vmatpush1.bf16.msra.mxu0 0
    %2499 = vmatprep.subr.bf16.mxu0 0
    %2500 = vmatpush1.bf16.msra.mxu0 0
    %2501 = vmatprep.subr.bf16.mxu0 0
    %2502 = vmatpush1.bf16.msra.mxu0 0
    %2503 = vmatprep.subr.bf16.mxu0 0
    %2504 = vmatpush1.bf16.msra.mxu0 0
    %2505 = vmatprep.subr.bf16.mxu0 0
    %2506 = vmatpush1.bf16.msra.mxu0 0
    %2507 = vmatprep.subr.bf16.mxu0 0
    %2508 = vmatpush1.bf16.msra.mxu0 0
    %2509 = vmatprep.mubr.bf16.mxu0 0
    %2510 = vmatmul.mubr.bf16.gmra.mrb[0].mxu0 %v2475
    %v2511 = vpop.f32.mrb[0].mxu0
    %v2512 = vadd.f32 0.0, %v2511
    %v2513 = vpop.f32.mrb[0].mxu0
    %v2514 = vpop.f32.mrb[0].mxu0
    %v2515 = vpop.f32.mrb[0].mxu0
    %2516 = vdwg.mxu0
    %v2517 = vadd.f32 %v2469, %v2512
    %v2518 = vxor.u32 %v2517, 2147483648
    %v2519 = vmul.f32 %v2518, 1.442695
    %v2520 = vpow.pop %v2519
    %v2521 = vadd.f32 %v2520, 1.0
    %v2522 = vrcp.pop %v2521
    %v2523 = vmul.f32 1.0, %v2522
    %v2524 = vadd.f32 %v2512, %v2024
    %2526 = vrot.lane.b32.xlu0 %v2524, 64
    %v2527 = vpop.permute.xlu0 %2526
    %v2529 = vmul.f32 %v2523, %v2527
    %2531 = vrot.lane.b32.xlu0 %v2529, 64
    %v2532 = vpop.permute.xlu0 %2531
    %v2534 = vadd.f32 %v2469, %v2532
    %v2535 = vtanh.pop %v2534
    %v2536 = vsub.f32 %v2463, %v2535
    %2538 = vrot.lane.b32.xlu0 %v2536, 96
    %v2539 = vpop.permute.xlu0 %2538
    %v2541 = vmul.f32 %v2523, %v2539
    %2543 = vrot.lane.b32.xlu0 %v2541, 32
    %v2544 = vpop.permute.xlu0 %2543
    %v2546 = vadd.f32 %v2535, %v2544
    %2548 = vrot.lane.b32.xlu0 %v2546, 64
    %v2549 = vpop.permute.xlu0 %2548
    %2551 = vst.msk [vmem:[%s1002] sm:$0xff] %vm412, %v2549
    %v2552 = vld [vmem:[%s1004] sm:$0xff]
    %v2553 = vpack.c.bf16 %v2546, %v2546
    %2555 = vrot.lane.b32.xlu0 %v2553, 64
    %v2556 = vpop.permute.xlu0 %2555
    %v2558 = vsel %vm412, %v2556, 0
    %2560 = vmatprep.subr.bf16.mxu0 0
    %2561 = vmatpush1.bf16.msra.mxu0 %v1972
    %2562 = vmatprep.subr.bf16.mxu0 0
    %2563 = vmatpush1.bf16.msra.mxu0 %v1973
    %2564 = vmatprep.subr.bf16.mxu0 0
    %2565 = vmatpush1.bf16.msra.mxu0 0
    %2566 = vmatprep.subr.bf16.mxu0 0
    %2567 = vmatpush1.bf16.msra.mxu0 0
    %2568 = vmatprep.subr.bf16.mxu0 0
    %2569 = vmatpush1.bf16.msra.mxu0 0
    %2570 = vmatprep.subr.bf16.mxu0 0
    %2571 = vmatpush1.bf16.msra.mxu0 0
    %2572 = vmatprep.subr.bf16.mxu0 0
    %2573 = vmatpush1.bf16.msra.mxu0 0
    %2574 = vmatprep.subr.bf16.mxu0 0
    %2575 = vmatpush1.bf16.msra.mxu0 0
    %2576 = vmatprep.subr.bf16.mxu0 0
    %2577 = vmatpush1.bf16.msra.mxu0 0
    %2578 = vmatprep.subr.bf16.mxu0 0
    %2579 = vmatpush1.bf16.msra.mxu0 0
    %2580 = vmatprep.subr.bf16.mxu0 0
    %2581 = vmatpush1.bf16.msra.mxu0 0
    %2582 = vmatprep.subr.bf16.mxu0 0
    %2583 = vmatpush1.bf16.msra.mxu0 0
    %2584 = vmatprep.subr.bf16.mxu0 0
    %2585 = vmatpush1.bf16.msra.mxu0 0
    %2586 = vmatprep.subr.bf16.mxu0 0
    %2587 = vmatpush1.bf16.msra.mxu0 0
    %2588 = vmatprep.subr.bf16.mxu0 0
    %2589 = vmatpush1.bf16.msra.mxu0 0
    %2590 = vmatprep.subr.bf16.mxu0 0
    %2591 = vmatpush1.bf16.msra.mxu0 0
    %2592 = vmatprep.mubr.bf16.mxu0 0
    %2593 = vmatmul.mubr.bf16.gmra.mrb[0].mxu0 %v2558
    %v2594 = vpop.f32.mrb[0].mxu0
    %v2595 = vadd.f32 0.0, %v2594
    %v2596 = vpop.f32.mrb[0].mxu0
    %v2597 = vpop.f32.mrb[0].mxu0
    %v2598 = vpop.f32.mrb[0].mxu0
    %2599 = vdwg.mxu0
    %v2600 = vadd.f32 %v2552, %v2595
    %v2601 = vxor.u32 %v2600, 2147483648
    %v2602 = vmul.f32 %v2601, 1.442695
    %v2603 = vpow.pop %v2602
    %v2604 = vadd.f32 %v2603, 1.0
    %v2605 = vrcp.pop %v2604
    %v2606 = vmul.f32 1.0, %v2605
    %v2607 = vadd.f32 %v2595, %v2024
    %2609 = vrot.lane.b32.xlu0 %v2607, 64
    %v2610 = vpop.permute.xlu0 %2609
    %v2612 = vmul.f32 %v2606, %v2610
    %2614 = vrot.lane.b32.xlu0 %v2612, 64
    %v2615 = vpop.permute.xlu0 %2614
    %v2617 = vadd.f32 %v2552, %v2615
    %v2618 = vtanh.pop %v2617
    %v2619 = vsub.f32 %v2546, %v2618
    %2621 = vrot.lane.b32.xlu0 %v2619, 96
    %v2622 = vpop.permute.xlu0 %2621
    %v2624 = vmul.f32 %v2606, %v2622
    %2626 = vrot.lane.b32.xlu0 %v2624, 32
    %v2627 = vpop.permute.xlu0 %2626
    %v2629 = vadd.f32 %v2618, %v2627
    %2631 = vrot.lane.b32.xlu0 %v2629, 64
    %v2632 = vpop.permute.xlu0 %2631
    %2634 = vst.msk [vmem:[%s1087] sm:$0xff] %vm412, %v2632
    %v2635 = vld [vmem:[%s1089] sm:$0xff]
    %v2636 = vpack.c.bf16 %v2629, %v2629
    %2638 = vrot.lane.b32.xlu0 %v2636, 64
    %v2639 = vpop.permute.xlu0 %2638
    %v2641 = vsel %vm412, %v2639, 0
    %2643 = vmatprep.subr.bf16.mxu0 0
    %2644 = vmatpush1.bf16.msra.mxu0 %v1972
    %2645 = vmatprep.subr.bf16.mxu0 0
    %2646 = vmatpush1.bf16.msra.mxu0 %v1973
    %2647 = vmatprep.subr.bf16.mxu0 0
    %2648 = vmatpush1.bf16.msra.mxu0 0
    %2649 = vmatprep.subr.bf16.mxu0 0
    %2650 = vmatpush1.bf16.msra.mxu0 0
    %2651 = vmatprep.subr.bf16.mxu0 0
    %2652 = vmatpush1.bf16.msra.mxu0 0
    %2653 = vmatprep.subr.bf16.mxu0 0
    %2654 = vmatpush1.bf16.msra.mxu0 0
    %2655 = vmatprep.subr.bf16.mxu0 0
    %2656 = vmatpush1.bf16.msra.mxu0 0
    %2657 = vmatprep.subr.bf16.mxu0 0
    %2658 = vmatpush1.bf16.msra.mxu0 0
    %2659 = vmatprep.subr.bf16.mxu0 0
    %2660 = vmatpush1.bf16.msra.mxu0 0
    %2661 = vmatprep.subr.bf16.mxu0 0
    %2662 = vmatpush1.bf16.msra.mxu0 0
    %2663 = vmatprep.subr.bf16.mxu0 0
    %2664 = vmatpush1.bf16.msra.mxu0 0
    %2665 = vmatprep.subr.bf16.mxu0 0
    %2666 = vmatpush1.bf16.msra.mxu0 0
    %2667 = vmatprep.subr.bf16.mxu0 0
    %2668 = vmatpush1.bf16.msra.mxu0 0
    %2669 = vmatprep.subr.bf16.mxu0 0
    %2670 = vmatpush1.bf16.msra.mxu0 0
    %2671 = vmatprep.subr.bf16.mxu0 0
    %2672 = vmatpush1.bf16.msra.mxu0 0
    %2673 = vmatprep.subr.bf16.mxu0 0
    %2674 = vmatpush1.bf16.msra.mxu0 0
    %2675 = vmatprep.mubr.bf16.mxu0 0
    %2676 = vmatmul.mubr.bf16.gmra.mrb[0].mxu0 %v2641
    %v2677 = vpop.f32.mrb[0].mxu0
    %v2678 = vadd.f32 0.0, %v2677
    %v2679 = vpop.f32.mrb[0].mxu0
    %v2680 = vpop.f32.mrb[0].mxu0
    %v2681 = vpop.f32.mrb[0].mxu0
    %2682 = vdwg.mxu0
    %v2683 = vadd.f32 %v2635, %v2678
    %v2684 = vxor.u32 %v2683, 2147483648
    %v2685 = vmul.f32 %v2684, 1.442695
    %v2686 = vpow.pop %v2685
    %v2687 = vadd.f32 %v2686, 1.0
    %v2688 = vrcp.pop %v2687
    %v2689 = vmul.f32 1.0, %v2688
    %v2690 = vadd.f32 %v2678, %v2024
    %2692 = vrot.lane.b32.xlu0 %v2690, 64
    %v2693 = vpop.permute.xlu0 %2692
    %v2695 = vmul.f32 %v2689, %v2693
    %2697 = vrot.lane.b32.xlu0 %v2695, 64
    %v2698 = vpop.permute.xlu0 %2697
    %v2700 = vadd.f32 %v2635, %v2698
    %v2701 = vtanh.pop %v2700
    %v2702 = vsub.f32 %v2629, %v2701
    %2704 = vrot.lane.b32.xlu0 %v2702, 96
    %v2705 = vpop.permute.xlu0 %2704
    %v2707 = vmul.f32 %v2689, %v2705
    %2709 = vrot.lane.b32.xlu0 %v2707, 32
    %v2710 = vpop.permute.xlu0 %2709
    %v2712 = vadd.f32 %v2701, %v2710
    %2714 = vrot.lane.b32.xlu0 %v2712, 64
    %v2715 = vpop.permute.xlu0 %2714
    %2717 = vst.msk [vmem:[%s1172] sm:$0xff] %vm412, %v2715
    %v2718 = vld [vmem:[%s1174] sm:$0xff]
    %v2719 = vpack.c.bf16 %v2712, %v2712
    %2721 = vrot.lane.b32.xlu0 %v2719, 64
    %v2722 = vpop.permute.xlu0 %2721
    %v2724 = vsel %vm412, %v2722, 0
    %2726 = vmatprep.subr.bf16.mxu0 0
    %2727 = vmatpush1.bf16.msra.mxu0 %v1972
    %2728 = vmatprep.subr.bf16.mxu0 0
    %2729 = vmatpush1.bf16.msra.mxu0 %v1973
    %2730 = vmatprep.subr.bf16.mxu0 0
    %2731 = vmatpush1.bf16.msra.mxu0 0
    %2732 = vmatprep.subr.bf16.mxu0 0
    %2733 = vmatpush1.bf16.msra.mxu0 0
    %2734 = vmatprep.subr.bf16.mxu0 0
    %2735 = vmatpush1.bf16.msra.mxu0 0
    %2736 = vmatprep.subr.bf16.mxu0 0
    %2737 = vmatpush1.bf16.msra.mxu0 0
    %2738 = vmatprep.subr.bf16.mxu0 0
    %2739 = vmatpush1.bf16.msra.mxu0 0
    %2740 = vmatprep.subr.bf16.mxu0 0
    %2741 = vmatpush1.bf16.msra.mxu0 0
    %2742 = vmatprep.subr.bf16.mxu0 0
    %2743 = vmatpush1.bf16.msra.mxu0 0
    %2744 = vmatprep.subr.bf16.mxu0 0
    %2745 = vmatpush1.bf16.msra.mxu0 0
    %2746 = vmatprep.subr.bf16.mxu0 0
    %2747 = vmatpush1.bf16.msra.mxu0 0
    %2748 = vmatprep.subr.bf16.mxu0 0
    %2749 = vmatpush1.bf16.msra.mxu0 0
    %2750 = vmatprep.subr.bf16.mxu0 0
    %2751 = vmatpush1.bf16.msra.mxu0 0
    %2752 = vmatprep.subr.bf16.mxu0 0
    %2753 = vmatpush1.bf16.msra.mxu0 0
    %2754 = vmatprep.subr.bf16.mxu0 0
    %2755 = vmatpush1.bf16.msra.mxu0 0
    %2756 = vmatprep.subr.bf16.mxu0 0
    %2757 = vmatpush1.bf16.msra.mxu0 0
    %2758 = vmatprep.mubr.bf16.mxu0 0
    %2759 = vmatmul.mubr.bf16.gmra.mrb[0].mxu0 %v2724
    %v2760 = vpop.f32.mrb[0].mxu0
    %v2761 = vadd.f32 0.0, %v2760
    %v2762 = vpop.f32.mrb[0].mxu0
    %v2763 = vpop.f32.mrb[0].mxu0
    %v2764 = vpop.f32.mrb[0].mxu0
    %2765 = vdwg.mxu0
    %v2766 = vadd.f32 %v2718, %v2761
    %v2767 = vxor.u32 %v2766, 2147483648
    %v2768 = vmul.f32 %v2767, 1.442695
    %v2769 = vpow.pop %v2768
    %v2770 = vadd.f32 %v2769, 1.0
    %v2771 = vrcp.pop %v2770
    %v2772 = vmul.f32 1.0, %v2771
    %v2773 = vadd.f32 %v2761, %v2024
    %2775 = vrot.lane.b32.xlu0 %v2773, 64
    %v2776 = vpop.permute.xlu0 %2775
    %v2778 = vmul.f32 %v2772, %v2776
    %2780 = vrot.lane.b32.xlu0 %v2778, 64
    %v2781 = vpop.permute.xlu0 %2780
    %v2783 = vadd.f32 %v2718, %v2781
    %v2784 = vtanh.pop %v2783
    %v2785 = vsub.f32 %v2712, %v2784
    %2787 = vrot.lane.b32.xlu0 %v2785, 96
    %v2788 = vpop.permute.xlu0 %2787
    %v2790 = vmul.f32 %v2772, %v2788
    %2792 = vrot.lane.b32.xlu0 %v2790, 32
    %v2793 = vpop.permute.xlu0 %2792
    %v2795 = vadd.f32 %v2784, %v2793
    %2797 = vrot.lane.b32.xlu0 %v2795, 64
    %v2798 = vpop.permute.xlu0 %2797
    %2800 = vst.msk [vmem:[%s1257] sm:$0xff] %vm412, %v2798
    %v2801 = vld [vmem:[%s1259] sm:$0xff]
    %v2802 = vpack.c.bf16 %v2795, %v2795
    %2804 = vrot.lane.b32.xlu0 %v2802, 64
    %v2805 = vpop.permute.xlu0 %2804
    %v2807 = vsel %vm412, %v2805, 0
    %2809 = vmatprep.subr.bf16.mxu0 0
    %2810 = vmatpush1.bf16.msra.mxu0 %v1972
    %2811 = vmatprep.subr.bf16.mxu0 0
    %2812 = vmatpush1.bf16.msra.mxu0 %v1973
    %2813 = vmatprep.subr.bf16.mxu0 0
    %2814 = vmatpush1.bf16.msra.mxu0 0
    %2815 = vmatprep.subr.bf16.mxu0 0
    %2816 = vmatpush1.bf16.msra.mxu0 0
    %2817 = vmatprep.subr.bf16.mxu0 0
    %2818 = vmatpush1.bf16.msra.mxu0 0
    %2819 = vmatprep.subr.bf16.mxu0 0
    %2820 = vmatpush1.bf16.msra.mxu0 0
    %2821 = vmatprep.subr.bf16.mxu0 0
    %2822 = vmatpush1.bf16.msra.mxu0 0
    %2823 = vmatprep.subr.bf16.mxu0 0
    %2824 = vmatpush1.bf16.msra.mxu0 0
    %2825 = vmatprep.subr.bf16.mxu0 0
    %2826 = vmatpush1.bf16.msra.mxu0 0
    %2827 = vmatprep.subr.bf16.mxu0 0
    %2828 = vmatpush1.bf16.msra.mxu0 0
    %2829 = vmatprep.subr.bf16.mxu0 0
    %2830 = vmatpush1.bf16.msra.mxu0 0
    %2831 = vmatprep.subr.bf16.mxu0 0
    %2832 = vmatpush1.bf16.msra.mxu0 0
    %2833 = vmatprep.subr.bf16.mxu0 0
    %2834 = vmatpush1.bf16.msra.mxu0 0
    %2835 = vmatprep.subr.bf16.mxu0 0
    %2836 = vmatpush1.bf16.msra.mxu0 0
    %2837 = vmatprep.subr.bf16.mxu0 0
    %2838 = vmatpush1.bf16.msra.mxu0 0
    %2839 = vmatprep.subr.bf16.mxu0 0
    %2840 = vmatpush1.bf16.msra.mxu0 0
    %2841 = vmatprep.mubr.bf16.mxu0 0
    %2842 = vmatmul.mubr.bf16.gmra.mrb[0].mxu0 %v2807
    %v2843 = vpop.f32.mrb[0].mxu0
    %v2844 = vadd.f32 0.0, %v2843
    %v2845 = vpop.f32.mrb[0].mxu0
    %v2846 = vpop.f32.mrb[0].mxu0
    %v2847 = vpop.f32.mrb[0].mxu0
    %2848 = vdwg.mxu0
    %v2849 = vadd.f32 %v2801, %v2844
    %v2850 = vxor.u32 %v2849, 2147483648
    %v2851 = vmul.f32 %v2850, 1.442695
    %v2852 = vpow.pop %v2851
    %v2853 = vadd.f32 %v2852, 1.0
    %v2854 = vrcp.pop %v2853
    %v2855 = vmul.f32 1.0, %v2854
    %v2856 = vadd.f32 %v2844, %v2024
    %2858 = vrot.lane.b32.xlu0 %v2856, 64
    %v2859 = vpop.permute.xlu0 %2858
    %v2861 = vmul.f32 %v2855, %v2859
    %2863 = vrot.lane.b32.xlu0 %v2861, 64
    %v2864 = vpop.permute.xlu0 %2863
    %v2866 = vadd.f32 %v2801, %v2864
    %v2867 = vtanh.pop %v2866
    %v2868 = vsub.f32 %v2795, %v2867
    %2870 = vrot.lane.b32.xlu0 %v2868, 96
    %v2871 = vpop.permute.xlu0 %2870
    %v2873 = vmul.f32 %v2855, %v2871
    %2875 = vrot.lane.b32.xlu0 %v2873, 32
    %v2876 = vpop.permute.xlu0 %2875
    %v2878 = vadd.f32 %v2867, %v2876
    %2880 = vrot.lane.b32.xlu0 %v2878, 64
    %v2881 = vpop.permute.xlu0 %2880
    %2883 = vst.msk [vmem:[%s1342] sm:$0xff] %vm412, %v2881
    %v2884 = vld [vmem:[%s1344] sm:$0xff]
    %v2885 = vpack.c.bf16 %v2878, %v2878
    %2887 = vrot.lane.b32.xlu0 %v2885, 64
    %v2888 = vpop.permute.xlu0 %2887
    %v2890 = vsel %vm412, %v2888, 0
    %2892 = vmatprep.subr.bf16.mxu0 0
    %2893 = vmatpush1.bf16.msra.mxu0 %v1972
    %2894 = vmatprep.subr.bf16.mxu0 0
    %2895 = vmatpush1.bf16.msra.mxu0 %v1973
    %2896 = vmatprep.subr.bf16.mxu0 0
    %2897 = vmatpush1.bf16.msra.mxu0 0
    %2898 = vmatprep.subr.bf16.mxu0 0
    %2899 = vmatpush1.bf16.msra.mxu0 0
    %2900 = vmatprep.subr.bf16.mxu0 0
    %2901 = vmatpush1.bf16.msra.mxu0 0
    %2902 = vmatprep.subr.bf16.mxu0 0
    %2903 = vmatpush1.bf16.msra.mxu0 0
    %2904 = vmatprep.subr.bf16.mxu0 0
    %2905 = vmatpush1.bf16.msra.mxu0 0
    %2906 = vmatprep.subr.bf16.mxu0 0
    %2907 = vmatpush1.bf16.msra.mxu0 0
    %2908 = vmatprep.subr.bf16.mxu0 0
    %2909 = vmatpush1.bf16.msra.mxu0 0
    %2910 = vmatprep.subr.bf16.mxu0 0
    %2911 = vmatpush1.bf16.msra.mxu0 0
    %2912 = vmatprep.subr.bf16.mxu0 0
    %2913 = vmatpush1.bf16.msra.mxu0 0
    %2914 = vmatprep.subr.bf16.mxu0 0
    %2915 = vmatpush1.bf16.msra.mxu0 0
    %2916 = vmatprep.subr.bf16.mxu0 0
    %2917 = vmatpush1.bf16.msra.mxu0 0
    %2918 = vmatprep.subr.bf16.mxu0 0
    %2919 = vmatpush1.bf16.msra.mxu0 0
    %2920 = vmatprep.subr.bf16.mxu0 0
    %2921 = vmatpush1.bf16.msra.mxu0 0
    %2922 = vmatprep.subr.bf16.mxu0 0
    %2923 = vmatpush1.bf16.msra.mxu0 0
    %2924 = vmatprep.mubr.bf16.mxu0 0
    %2925 = vmatmul.mubr.bf16.gmra.mrb[0].mxu0 %v2890
    %v2926 = vpop.f32.mrb[0].mxu0
    %v2927 = vadd.f32 0.0, %v2926
    %v2928 = vpop.f32.mrb[0].mxu0
    %v2929 = vpop.f32.mrb[0].mxu0
    %v2930 = vpop.f32.mrb[0].mxu0
    %2931 = vdwg.mxu0
    %v2932 = vadd.f32 %v2884, %v2927
    %v2933 = vxor.u32 %v2932, 2147483648
    %v2934 = vmul.f32 %v2933, 1.442695
    %v2935 = vpow.pop %v2934
    %v2936 = vadd.f32 %v2935, 1.0
    %v2937 = vrcp.pop %v2936
    %v2938 = vmul.f32 1.0, %v2937
    %v2939 = vadd.f32 %v2927, %v2024
    %2941 = vrot.lane.b32.xlu0 %v2939, 64
    %v2942 = vpop.permute.xlu0 %2941
    %v2944 = vmul.f32 %v2938, %v2942
    %2946 = vrot.lane.b32.xlu0 %v2944, 64
    %v2947 = vpop.permute.xlu0 %2946
    %v2949 = vadd.f32 %v2884, %v2947
    %v2950 = vtanh.pop %v2949
    %v2951 = vsub.f32 %v2878, %v2950
    %2953 = vrot.lane.b32.xlu0 %v2951, 96
    %v2954 = vpop.permute.xlu0 %2953
    %v2956 = vmul.f32 %v2938, %v2954
    %2958 = vrot.lane.b32.xlu0 %v2956, 32
    %v2959 = vpop.permute.xlu0 %2958
    %v2961 = vadd.f32 %v2950, %v2959
    %2963 = vrot.lane.b32.xlu0 %v2961, 64
    %v2964 = vpop.permute.xlu0 %2963
    %2966 = vst.msk [vmem:[%s1427] sm:$0xff] %vm412, %v2964
    %v2967 = vld [vmem:[%s1429] sm:$0xff]
    %v2968 = vpack.c.bf16 %v2961, %v2961
    %2970 = vrot.lane.b32.xlu0 %v2968, 64
    %v2971 = vpop.permute.xlu0 %2970
    %v2973 = vsel %vm412, %v2971, 0
    %2975 = vmatprep.subr.bf16.mxu0 0
    %2976 = vmatpush1.bf16.msra.mxu0 %v1972
    %2977 = vmatprep.subr.bf16.mxu0 0
    %2978 = vmatpush1.bf16.msra.mxu0 %v1973
    %2979 = vmatprep.subr.bf16.mxu0 0
    %2980 = vmatpush1.bf16.msra.mxu0 0
    %2981 = vmatprep.subr.bf16.mxu0 0
    %2982 = vmatpush1.bf16.msra.mxu0 0
    %2983 = vmatprep.subr.bf16.mxu0 0
    %2984 = vmatpush1.bf16.msra.mxu0 0
    %2985 = vmatprep.subr.bf16.mxu0 0
    %2986 = vmatpush1.bf16.msra.mxu0 0
    %2987 = vmatprep.subr.bf16.mxu0 0
    %2988 = vmatpush1.bf16.msra.mxu0 0
    %2989 = vmatprep.subr.bf16.mxu0 0
    %2990 = vmatpush1.bf16.msra.mxu0 0
    %2991 = vmatprep.subr.bf16.mxu0 0
    %2992 = vmatpush1.bf16.msra.mxu0 0
    %2993 = vmatprep.subr.bf16.mxu0 0
    %2994 = vmatpush1.bf16.msra.mxu0 0
    %2995 = vmatprep.subr.bf16.mxu0 0
    %2996 = vmatpush1.bf16.msra.mxu0 0
    %2997 = vmatprep.subr.bf16.mxu0 0
    %2998 = vmatpush1.bf16.msra.mxu0 0
    %2999 = vmatprep.subr.bf16.mxu0 0
    %3000 = vmatpush1.bf16.msra.mxu0 0
    %3001 = vmatprep.subr.bf16.mxu0 0
    %3002 = vmatpush1.bf16.msra.mxu0 0
    %3003 = vmatprep.subr.bf16.mxu0 0
    %3004 = vmatpush1.bf16.msra.mxu0 0
    %3005 = vmatprep.subr.bf16.mxu0 0
    %3006 = vmatpush1.bf16.msra.mxu0 0
    %3007 = vmatprep.mubr.bf16.mxu0 0
    %3008 = vmatmul.mubr.bf16.gmra.mrb[0].mxu0 %v2973
    %v3009 = vpop.f32.mrb[0].mxu0
    %v3010 = vadd.f32 0.0, %v3009
    %v3011 = vpop.f32.mrb[0].mxu0
    %v3012 = vpop.f32.mrb[0].mxu0
    %v3013 = vpop.f32.mrb[0].mxu0
    %3014 = vdwg.mxu0
    %v3015 = vadd.f32 %v2967, %v3010
    %v3016 = vxor.u32 %v3015, 2147483648
    %v3017 = vmul.f32 %v3016, 1.442695
    %v3018 = vpow.pop %v3017
    %v3019 = vadd.f32 %v3018, 1.0
    %v3020 = vrcp.pop %v3019
    %v3021 = vmul.f32 1.0, %v3020
    %v3022 = vadd.f32 %v3010, %v2024
    %3024 = vrot.lane.b32.xlu0 %v3022, 64
    %v3025 = vpop.permute.xlu0 %3024
    %v3027 = vmul.f32 %v3021, %v3025
    %3029 = vrot.lane.b32.xlu0 %v3027, 64
    %v3030 = vpop.permute.xlu0 %3029
    %v3032 = vadd.f32 %v2967, %v3030
    %v3033 = vtanh.pop %v3032
    %v3034 = vsub.f32 %v2961, %v3033
    %3036 = vrot.lane.b32.xlu0 %v3034, 96
    %v3037 = vpop.permute.xlu0 %3036
    %v3039 = vmul.f32 %v3021, %v3037
    %3041 = vrot.lane.b32.xlu0 %v3039, 32
    %v3042 = vpop.permute.xlu0 %3041
    %v3044 = vadd.f32 %v3033, %v3042
    %3046 = vrot.lane.b32.xlu0 %v3044, 64
    %v3047 = vpop.permute.xlu0 %3046
    %3049 = vst.msk [vmem:[%s1512] sm:$0xff] %vm412, %v3047
    %v3050 = vld [vmem:[%s1514] sm:$0xff]
    %v3051 = vpack.c.bf16 %v3044, %v3044
    %3053 = vrot.lane.b32.xlu0 %v3051, 64
    %v3054 = vpop.permute.xlu0 %3053
    %v3056 = vsel %vm412, %v3054, 0
    %3058 = vmatprep.subr.bf16.mxu0 0
    %3059 = vmatpush1.bf16.msra.mxu0 %v1972
    %3060 = vmatprep.subr.bf16.mxu0 0
    %3061 = vmatpush1.bf16.msra.mxu0 %v1973
    %3062 = vmatprep.subr.bf16.mxu0 0
    %3063 = vmatpush1.bf16.msra.mxu0 0
    %3064 = vmatprep.subr.bf16.mxu0 0
    %3065 = vmatpush1.bf16.msra.mxu0 0
    %3066 = vmatprep.subr.bf16.mxu0 0
    %3067 = vmatpush1.bf16.msra.mxu0 0
    %3068 = vmatprep.subr.bf16.mxu0 0
    %3069 = vmatpush1.bf16.msra.mxu0 0
    %3070 = vmatprep.subr.bf16.mxu0 0
    %3071 = vmatpush1.bf16.msra.mxu0 0
    %3072 = vmatprep.subr.bf16.mxu0 0
    %3073 = vmatpush1.bf16.msra.mxu0 0
    %3074 = vmatprep.subr.bf16.mxu0 0
    %3075 = vmatpush1.bf16.msra.mxu0 0
    %3076 = vmatprep.subr.bf16.mxu0 0
    %3077 = vmatpush1.bf16.msra.mxu0 0
    %3078 = vmatprep.subr.bf16.mxu0 0
    %3079 = vmatpush1.bf16.msra.mxu0 0
    %3080 = vmatprep.subr.bf16.mxu0 0
    %3081 = vmatpush1.bf16.msra.mxu0 0
    %3082 = vmatprep.subr.bf16.mxu0 0
    %3083 = vmatpush1.bf16.msra.mxu0 0
    %3084 = vmatprep.subr.bf16.mxu0 0
    %3085 = vmatpush1.bf16.msra.mxu0 0
    %3086 = vmatprep.subr.bf16.mxu0 0
    %3087 = vmatpush1.bf16.msra.mxu0 0
    %3088 = vmatprep.subr.bf16.mxu0 0
    %3089 = vmatpush1.bf16.msra.mxu0 0
    %3090 = vmatprep.mubr.bf16.mxu0 0
    %3091 = vmatmul.mubr.bf16.gmra.mrb[0].mxu0 %v3056
    %v3092 = vpop.f32.mrb[0].mxu0
    %v3093 = vadd.f32 0.0, %v3092
    %v3094 = vpop.f32.mrb[0].mxu0
    %v3095 = vpop.f32.mrb[0].mxu0
    %v3096 = vpop.f32.mrb[0].mxu0
    %3097 = vdwg.mxu0
    %v3098 = vadd.f32 %v3050, %v3093
    %v3099 = vxor.u32 %v3098, 2147483648
    %v3100 = vmul.f32 %v3099, 1.442695
    %v3101 = vpow.pop %v3100
    %v3102 = vadd.f32 %v3101, 1.0
    %v3103 = vrcp.pop %v3102
    %v3104 = vmul.f32 1.0, %v3103
    %v3105 = vadd.f32 %v3093, %v2024
    %3107 = vrot.lane.b32.xlu0 %v3105, 64
    %v3108 = vpop.permute.xlu0 %3107
    %v3110 = vmul.f32 %v3104, %v3108
    %3112 = vrot.lane.b32.xlu0 %v3110, 64
    %v3113 = vpop.permute.xlu0 %3112
    %v3115 = vadd.f32 %v3050, %v3113
    %v3116 = vtanh.pop %v3115
    %v3117 = vsub.f32 %v3044, %v3116
    %3119 = vrot.lane.b32.xlu0 %v3117, 96
    %v3120 = vpop.permute.xlu0 %3119
    %v3122 = vmul.f32 %v3104, %v3120
    %3124 = vrot.lane.b32.xlu0 %v3122, 32
    %v3125 = vpop.permute.xlu0 %3124
    %v3127 = vadd.f32 %v3116, %v3125
    %3129 = vrot.lane.b32.xlu0 %v3127, 64
    %v3130 = vpop.permute.xlu0 %3129
    %3132 = vst.msk [vmem:[%s1597] sm:$0xff] %vm412, %v3130
    %v3133 = vld [vmem:[%s1599] sm:$0xff]
    %v3134 = vpack.c.bf16 %v3127, %v3127
    %3136 = vrot.lane.b32.xlu0 %v3134, 64
    %v3137 = vpop.permute.xlu0 %3136
    %v3139 = vsel %vm412, %v3137, 0
    %3141 = vmatprep.subr.bf16.mxu0 0
    %3142 = vmatpush1.bf16.msra.mxu0 %v1972
    %3143 = vmatprep.subr.bf16.mxu0 0
    %3144 = vmatpush1.bf16.msra.mxu0 %v1973
    %3145 = vmatprep.subr.bf16.mxu0 0
    %3146 = vmatpush1.bf16.msra.mxu0 0
    %3147 = vmatprep.subr.bf16.mxu0 0
    %3148 = vmatpush1.bf16.msra.mxu0 0
    %3149 = vmatprep.subr.bf16.mxu0 0
    %3150 = vmatpush1.bf16.msra.mxu0 0
    %3151 = vmatprep.subr.bf16.mxu0 0
    %3152 = vmatpush1.bf16.msra.mxu0 0
    %3153 = vmatprep.subr.bf16.mxu0 0
    %3154 = vmatpush1.bf16.msra.mxu0 0
    %3155 = vmatprep.subr.bf16.mxu0 0
    %3156 = vmatpush1.bf16.msra.mxu0 0
    %3157 = vmatprep.subr.bf16.mxu0 0
    %3158 = vmatpush1.bf16.msra.mxu0 0
    %3159 = vmatprep.subr.bf16.mxu0 0
    %3160 = vmatpush1.bf16.msra.mxu0 0
    %3161 = vmatprep.subr.bf16.mxu0 0
    %3162 = vmatpush1.bf16.msra.mxu0 0
    %3163 = vmatprep.subr.bf16.mxu0 0
    %3164 = vmatpush1.bf16.msra.mxu0 0
    %3165 = vmatprep.subr.bf16.mxu0 0
    %3166 = vmatpush1.bf16.msra.mxu0 0
    %3167 = vmatprep.subr.bf16.mxu0 0
    %3168 = vmatpush1.bf16.msra.mxu0 0
    %3169 = vmatprep.subr.bf16.mxu0 0
    %3170 = vmatpush1.bf16.msra.mxu0 0
    %3171 = vmatprep.subr.bf16.mxu0 0
    %3172 = vmatpush1.bf16.msra.mxu0 0
    %3173 = vmatprep.mubr.bf16.mxu0 0
    %3174 = vmatmul.mubr.bf16.gmra.mrb[0].mxu0 %v3139
    %v3175 = vpop.f32.mrb[0].mxu0
    %v3176 = vadd.f32 0.0, %v3175
    %v3177 = vpop.f32.mrb[0].mxu0
    %v3178 = vpop.f32.mrb[0].mxu0
    %v3179 = vpop.f32.mrb[0].mxu0
    %3180 = vdwg.mxu0
    %v3181 = vadd.f32 %v3133, %v3176
    %v3182 = vxor.u32 %v3181, 2147483648
    %v3183 = vmul.f32 %v3182, 1.442695
    %v3184 = vpow.pop %v3183
    %v3185 = vadd.f32 %v3184, 1.0
    %v3186 = vrcp.pop %v3185
    %v3187 = vmul.f32 1.0, %v3186
    %v3188 = vadd.f32 %v3176, %v2024
    %3190 = vrot.lane.b32.xlu0 %v3188, 64
    %v3191 = vpop.permute.xlu0 %3190
    %v3193 = vmul.f32 %v3187, %v3191
    %3195 = vrot.lane.b32.xlu0 %v3193, 64
    %v3196 = vpop.permute.xlu0 %3195
    %v3198 = vadd.f32 %v3133, %v3196
    %v3199 = vtanh.pop %v3198
    %v3200 = vsub.f32 %v3127, %v3199
    %3202 = vrot.lane.b32.xlu0 %v3200, 96
    %v3203 = vpop.permute.xlu0 %3202
    %v3205 = vmul.f32 %v3187, %v3203
    %3207 = vrot.lane.b32.xlu0 %v3205, 32
    %v3208 = vpop.permute.xlu0 %3207
    %v3210 = vadd.f32 %v3199, %v3208
    %3212 = vrot.lane.b32.xlu0 %v3210, 64
    %v3213 = vpop.permute.xlu0 %3212
    %3215 = vst.msk [vmem:[%s1682] sm:$0xff] %vm412, %v3213
    %v3216 = vld [vmem:[%s1684] sm:$0xff]
    %v3217 = vpack.c.bf16 %v3210, %v3210
    %3219 = vrot.lane.b32.xlu0 %v3217, 64
    %v3220 = vpop.permute.xlu0 %3219
    %v3222 = vsel %vm412, %v3220, 0
    %3224 = vmatprep.subr.bf16.mxu0 0
    %3225 = vmatpush1.bf16.msra.mxu0 %v1972
    %3226 = vmatprep.subr.bf16.mxu0 0
    %3227 = vmatpush1.bf16.msra.mxu0 %v1973
    %3228 = vmatprep.subr.bf16.mxu0 0
    %3229 = vmatpush1.bf16.msra.mxu0 0
    %3230 = vmatprep.subr.bf16.mxu0 0
    %3231 = vmatpush1.bf16.msra.mxu0 0
    %3232 = vmatprep.subr.bf16.mxu0 0
    %3233 = vmatpush1.bf16.msra.mxu0 0
    %3234 = vmatprep.subr.bf16.mxu0 0
    %3235 = vmatpush1.bf16.msra.mxu0 0
    %3236 = vmatprep.subr.bf16.mxu0 0
    %3237 = vmatpush1.bf16.msra.mxu0 0
    %3238 = vmatprep.subr.bf16.mxu0 0
    %3239 = vmatpush1.bf16.msra.mxu0 0
    %3240 = vmatprep.subr.bf16.mxu0 0
    %3241 = vmatpush1.bf16.msra.mxu0 0
    %3242 = vmatprep.subr.bf16.mxu0 0
    %3243 = vmatpush1.bf16.msra.mxu0 0
    %3244 = vmatprep.subr.bf16.mxu0 0
    %3245 = vmatpush1.bf16.msra.mxu0 0
    %3246 = vmatprep.subr.bf16.mxu0 0
    %3247 = vmatpush1.bf16.msra.mxu0 0
    %3248 = vmatprep.subr.bf16.mxu0 0
    %3249 = vmatpush1.bf16.msra.mxu0 0
    %3250 = vmatprep.subr.bf16.mxu0 0
    %3251 = vmatpush1.bf16.msra.mxu0 0
    %3252 = vmatprep.subr.bf16.mxu0 0
    %3253 = vmatpush1.bf16.msra.mxu0 0
    %3254 = vmatprep.subr.bf16.mxu0 0
    %3255 = vmatpush1.bf16.msra.mxu0 0
    %3256 = vmatprep.mubr.bf16.mxu0 0
    %3257 = vmatmul.mubr.bf16.gmra.mrb[0].mxu0 %v3222
    %v3258 = vpop.f32.mrb[0].mxu0
    %v3259 = vadd.f32 0.0, %v3258
    %v3260 = vpop.f32.mrb[0].mxu0
    %v3261 = vpop.f32.mrb[0].mxu0
    %v3262 = vpop.f32.mrb[0].mxu0
    %3263 = vdwg.mxu0
    %v3264 = vadd.f32 %v3216, %v3259
    %v3265 = vxor.u32 %v3264, 2147483648
    %v3266 = vmul.f32 %v3265, 1.442695
    %v3267 = vpow.pop %v3266
    %v3268 = vadd.f32 %v3267, 1.0
    %v3269 = vrcp.pop %v3268
    %v3270 = vmul.f32 1.0, %v3269
    %v3271 = vadd.f32 %v3259, %v2024
    %3273 = vrot.lane.b32.xlu0 %v3271, 64
    %v3274 = vpop.permute.xlu0 %3273
    %v3276 = vmul.f32 %v3270, %v3274
    %3278 = vrot.lane.b32.xlu0 %v3276, 64
    %v3279 = vpop.permute.xlu0 %3278
    %v3281 = vadd.f32 %v3216, %v3279
    %v3282 = vtanh.pop %v3281
    %v3283 = vsub.f32 %v3210, %v3282
    %3285 = vrot.lane.b32.xlu0 %v3283, 96
    %v3286 = vpop.permute.xlu0 %3285
    %v3288 = vmul.f32 %v3270, %v3286
    %3290 = vrot.lane.b32.xlu0 %v3288, 32
    %v3291 = vpop.permute.xlu0 %3290
    %v3293 = vadd.f32 %v3282, %v3291
    %3295 = vrot.lane.b32.xlu0 %v3293, 64
    %v3296 = vpop.permute.xlu0 %3295
    %3298 = vst.msk [vmem:[%s1767] sm:$0xff] %vm412, %v3296
    %v3299 = vld [vmem:[#allocation3] sm:$0xff]
    %v3300 = vld [vmem:[#allocation3 + $0x8] sm:$0xff]
    %v3301 = vld [vmem:[#allocation3 + $0x10] sm:$0xff]
    %v3302 = vld [vmem:[#allocation3 + $0x18] sm:$0xff]
    %v3303 = vld [vmem:[#allocation3 + $0x20] sm:$0xff]
    %v3304 = vld [vmem:[#allocation3 + $0x28] sm:$0xff]
    %v3305 = vld [vmem:[#allocation3 + $0x30] sm:$0xff]
    %v3306 = vld [vmem:[#allocation3 + $0x38] sm:$0xff]
    %v3307 = vld [vmem:[#allocation3 + $0x40] sm:$0xff]
    %v3308 = vld [vmem:[#allocation3 + $0x48] sm:$0xff]
    %v3309 = vld [vmem:[#allocation3 + $0x50] sm:$0xff]
    %v3310 = vld [vmem:[#allocation3 + $0x58] sm:$0xff]
    %v3311 = vld [vmem:[#allocation3 + $0x60] sm:$0xff]
    %v3312 = vld [vmem:[#allocation3 + $0x68] sm:$0xff]
    %v3313 = vld [vmem:[#allocation3 + $0x70] sm:$0xff]
    %v3314 = vld [vmem:[#allocation3 + $0x78] sm:$0xff]
    %v3315 = vpack.c.bf16 %v3300, %v3299
    %v3316 = vpack.c.bf16 %v3302, %v3301
    %v3317 = vpack.c.bf16 %v3304, %v3303
    %v3318 = vpack.c.bf16 %v3306, %v3305
    %v3319 = vpack.c.bf16 %v3308, %v3307
    %v3320 = vpack.c.bf16 %v3310, %v3309
    %v3321 = vpack.c.bf16 %v3312, %v3311
    %v3322 = vpack.c.bf16 %v3314, %v3313
    %v3323 = vld [vmem:[#allocation19] sm:$0xf]
    %v3324 = vld [vmem:[#allocation19 + $0x4] sm:$0xf]
    %v3325 = vld [vmem:[#allocation19 + $0x8] sm:$0xf]
    %v3326 = vld [vmem:[#allocation19 + $0xc] sm:$0xf]
    %v3327 = vld [vmem:[#allocation21] sm:$0x1]
    %v3329 = vlaneseq
    %v3330 = vshrl.u32 %v3329, 7
    %v3331 = vsub.s32 0, %v3330
    %v3332 = vrot.slane %v3327, %v3331
    %v3338 = vunpack.c.l.b16 %v3323
    %v3339 = vunpack.c.l.b16 %v3324
    %v3340 = vunpack.c.l.b16 %v3325
    %v3341 = vunpack.c.l.b16 %v3326
    %v3342 = vpack.c.b16 %v3339, %v3338
    %v3343 = vpack.c.b16 %v3341, %v3340
    %v3347 = vsel %vm412, %v3315, 0
    %v3350 = vsel %vm412, %v3316, 0
    %v3353 = vsel %vm412, %v3317, 0
    %v3356 = vsel %vm412, %v3318, 0
    %v3359 = vsel %vm412, %v3319, 0
    %v3362 = vsel %vm412, %v3320, 0
    %v3365 = vsel %vm412, %v3321, 0
    %v3368 = vsel %vm412, %v3322, 0
    %3370 = vmatprep.subr.bf16.mxu0 0
    %3371 = vmatpush1.bf16.msra.mxu0 %v3342
    %3372 = vmatprep.subr.bf16.mxu0 0
    %3373 = vmatpush1.bf16.msra.mxu0 %v3343
    %3374 = vmatprep.subr.bf16.mxu0 0
    %3375 = vmatpush1.bf16.msra.mxu0 0
    %3376 = vmatprep.subr.bf16.mxu0 0
    %3377 = vmatpush1.bf16.msra.mxu0 0
    %3378 = vmatprep.subr.bf16.mxu0 0
    %3379 = vmatpush1.bf16.msra.mxu0 0
    %3380 = vmatprep.subr.bf16.mxu0 0
    %3381 = vmatpush1.bf16.msra.mxu0 0
    %3382 = vmatprep.subr.bf16.mxu0 0
    %3383 = vmatpush1.bf16.msra.mxu0 0
    %3384 = vmatprep.subr.bf16.mxu0 0
    %3385 = vmatpush1.bf16.msra.mxu0 0
    %3386 = vmatprep.subr.bf16.mxu0 0
    %3387 = vmatpush1.bf16.msra.mxu0 0
    %3388 = vmatprep.subr.bf16.mxu0 0
    %3389 = vmatpush1.bf16.msra.mxu0 0
    %3390 = vmatprep.subr.bf16.mxu0 0
    %3391 = vmatpush1.bf16.msra.mxu0 0
    %3392 = vmatprep.subr.bf16.mxu0 0
    %3393 = vmatpush1.bf16.msra.mxu0 0
    %3394 = vmatprep.subr.bf16.mxu0 0
    %3395 = vmatpush1.bf16.msra.mxu0 0
    %3396 = vmatprep.subr.bf16.mxu0 0
    %3397 = vmatpush1.bf16.msra.mxu0 0
    %3398 = vmatprep.subr.bf16.mxu0 0
    %3399 = vmatpush1.bf16.msra.mxu0 0
    %3400 = vmatprep.subr.bf16.mxu0 0
    %3401 = vmatpush1.bf16.msra.mxu0 0
    %3402 = vmatprep.mubr.bf16.mxu0 0
    %3403 = vmatmul.mubr.bf16.gmra.mrb[0].mxu0 %v3347
    %v3404 = vpop.f32.mrb[0].mxu0
    %v3405 = vadd.f32 %v3332, %v3404
    %v3406 = vpop.f32.mrb[0].mxu0
    %v3407 = vpop.f32.mrb[0].mxu0
    %v3408 = vadd.f32 %v3332, %v3407
    %v3409 = vpop.f32.mrb[0].mxu0
    %3410 = vmatprep.mubr.bf16.mxu0 0
    %3411 = vmatmul.mubr.bf16.gmra.mrb[0].mxu0 %v3350
    %v3412 = vpop.f32.mrb[0].mxu0
    %v3413 = vadd.f32 %v3332, %v3412
    %v3414 = vpop.f32.mrb[0].mxu0
    %v3415 = vpop.f32.mrb[0].mxu0
    %v3416 = vadd.f32 %v3332, %v3415
    %v3417 = vpop.f32.mrb[0].mxu0
    %3418 = vmatprep.mubr.bf16.mxu0 0
    %3419 = vmatmul.mubr.bf16.gmra.mrb[0].mxu0 %v3353
    %v3420 = vpop.f32.mrb[0].mxu0
    %v3421 = vadd.f32 %v3332, %v3420
    %v3422 = vpop.f32.mrb[0].mxu0
    %v3423 = vpop.f32.mrb[0].mxu0
    %v3424 = vadd.f32 %v3332, %v3423
    %v3425 = vpop.f32.mrb[0].mxu0
    %3426 = vmatprep.mubr.bf16.mxu0 0
    %3427 = vmatmul.mubr.bf16.gmra.mrb[0].mxu0 %v3356
    %v3428 = vpop.f32.mrb[0].mxu0
    %v3429 = vadd.f32 %v3332, %v3428
    %v3430 = vpop.f32.mrb[0].mxu0
    %v3431 = vpop.f32.mrb[0].mxu0
    %v3432 = vadd.f32 %v3332, %v3431
    %v3433 = vpop.f32.mrb[0].mxu0
    %3434 = vmatprep.mubr.bf16.mxu0 0
    %3435 = vmatmul.mubr.bf16.gmra.mrb[0].mxu0 %v3359
    %v3436 = vpop.f32.mrb[0].mxu0
    %v3437 = vadd.f32 %v3332, %v3436
    %v3438 = vpop.f32.mrb[0].mxu0
    %v3439 = vpop.f32.mrb[0].mxu0
    %v3440 = vadd.f32 %v3332, %v3439
    %v3441 = vpop.f32.mrb[0].mxu0
    %3442 = vmatprep.mubr.bf16.mxu0 0
    %3443 = vmatmul.mubr.bf16.gmra.mrb[0].mxu0 %v3362
    %v3444 = vpop.f32.mrb[0].mxu0
    %v3445 = vadd.f32 %v3332, %v3444
    %v3446 = vpop.f32.mrb[0].mxu0
    %v3447 = vpop.f32.mrb[0].mxu0
    %v3448 = vadd.f32 %v3332, %v3447
    %v3449 = vpop.f32.mrb[0].mxu0
    %3450 = vmatprep.mubr.bf16.mxu0 0
    %3451 = vmatmul.mubr.bf16.gmra.mrb[0].mxu0 %v3365
    %v3452 = vpop.f32.mrb[0].mxu0
    %v3453 = vadd.f32 %v3332, %v3452
    %v3454 = vpop.f32.mrb[0].mxu0
    %v3455 = vpop.f32.mrb[0].mxu0
    %v3456 = vadd.f32 %v3332, %v3455
    %v3457 = vpop.f32.mrb[0].mxu0
    %3458 = vmatprep.mubr.bf16.mxu0 0
    %3459 = vmatmul.mubr.bf16.gmra.mrb[0].mxu0 %v3368
    %v3460 = vpop.f32.mrb[0].mxu0
    %v3461 = vadd.f32 %v3332, %v3460
    %v3462 = vpop.f32.mrb[0].mxu0
    %v3463 = vpop.f32.mrb[0].mxu0
    %v3464 = vadd.f32 %v3332, %v3463
    %v3465 = vpop.f32.mrb[0].mxu0
    %3466 = vdwg.mxu0
    %3467 = vst [vmem:[#allocation22] sm:$0xff] %v3405
    %3468 = vst [vmem:[#allocation22 + $0x8] sm:$0xff] %v3408
    %3469 = vst [vmem:[#allocation22 + $0x10] sm:$0xff] %v3413
    %3470 = vst [vmem:[#allocation22 + $0x18] sm:$0xff] %v3416
    %3471 = vst [vmem:[#allocation22 + $0x20] sm:$0xff] %v3421
    %3472 = vst [vmem:[#allocation22 + $0x28] sm:$0xff] %v3424
    %3473 = vst [vmem:[#allocation22 + $0x30] sm:$0xff] %v3429
    %3474 = vst [vmem:[#allocation22 + $0x38] sm:$0xff] %v3432
    %3475 = vst [vmem:[#allocation22 + $0x40] sm:$0xff] %v3437
    %3476 = vst [vmem:[#allocation22 + $0x48] sm:$0xff] %v3440
    %3477 = vst [vmem:[#allocation22 + $0x50] sm:$0xff] %v3445
    %3478 = vst [vmem:[#allocation22 + $0x58] sm:$0xff] %v3448
    %3479 = vst [vmem:[#allocation22 + $0x60] sm:$0xff] %v3453
    %3480 = vst [vmem:[#allocation22 + $0x68] sm:$0xff] %v3456
    %3481 = vst [vmem:[#allocation22 + $0x70] sm:$0xff] %v3461
    %3482 = vst [vmem:[#allocation22 + $0x78] sm:$0xff] %v3464
    // Predicated region
    $region90: #{tpu_custom_call.1} parent=1 // pred_check
      _
    $region91: #{tpu_custom_call.1} parent=1 // pred_check_branch
      %3484 = sbr.rel (0) target = $region93
    $region92: #{tpu_custom_call.1} parent=1 // pred_region
      %s3486 = ssub.s32 2048, 2048
      %3487 = vsyncadd [#allocation6], %s3486
      %s3488 = sshll.u32 [#allocation22], 4
      %s3489 = int_to_ptr.vmem [resolvable:$true] %s3488
      %3494 = dma.vmem_to_hbm [thread:$0]  %s3489, 2048, %s11, [#allocation6], 128, 128, 8
    $region93: #{tpu_custom_call.1} parent=1 // pred_fallthru
      _
    // Predicated region
    $region94: #{tpu_custom_call.1} parent=1 // pred_check
      _
    $region95: #{tpu_custom_call.1} parent=1 // pred_check_branch
      %3496 = sbr.rel (0) target = $region97
    $region96: #{tpu_custom_call.1} parent=1 // pred_region
      %3497 = dma.done [#allocation6], 2048
    $region97: #{tpu_custom_call.1} parent=1 // pred_fallthru
      _
    %3498 = vsyncpa [#allocation5], 1
    %3499 = vsyncpa [#allocation8], 1
    %3500 = vsyncpa [#allocation11], 1
    %3501 = vsyncpa [#allocation14], 1
    %3502 = vsyncpa [#allocation17], 1
    %3503 = vsyncpa [#allocation20], 1
    %3504 = vsyncpa [#allocation6], 1

</llo_original>
